<compile_context>
chip_gen: v7x
topology: tpu7x:2x2x1
jax: 0.10.0
libtpu: 0.0.40
codegen_flags: <defaults>
</compile_context>

<pallas_src>
import functools

import jax
import jax.numpy as jnp
import numpy as np
from jax import lax
from jax.experimental import pallas as pl
from jax.experimental.pallas import tpu as pltpu


def _resblock_gen_kernel(x_ref, s1_ref, t1_ref, w1_ref, b1_ref,
                         d0_ref, d1_ref, d2_ref, bout_ref, out_ref,
                         xpad_ref, h00_ref, h01_ref, h10_ref, h11_ref,
                         *, TH, W, Cin, Cout):
    f32 = jnp.float32
    bf16 = jnp.bfloat16

    r = pl.program_id(1)
    last_r = pl.num_programs(1) - 1
    row0 = r * TH                 # window start into the 2-row zero-padded x block

    THW = TH * W
    M1 = (TH + 2) * W             # conv1 emits TH+2 h1 rows (1-row halo for conv2)

    def mm(lhs, wmat):            # bf16 MXU operands, f32 accumulation
        return jnp.dot(lhs, wmat, preferred_element_type=f32)

    # ---- x rows r*TH-2 .. r*TH+TH+1 (low-res), from the padded VMEM block -----
    xwin = x_ref[0, pl.ds(row0, TH + 4)]                   # (TH+4, W, Cin) f32

    # ---- BN1 (folded scale/shift) + ReLU; cast to bf16 exactly once -----------
    xa = jnp.maximum(xwin * s1_ref[0] + t1_ref[0], 0.0).astype(bf16)

    # ---- zero-padded activation copy in bf16 VMEM scratch ----------------------
    # The interior lives at column offset 2 so every scratch store is bf16
    # pack-aligned.  Column halo is re-zeroed every step (interior is fully
    # rewritten); the row halo is only zeroed on the image-border row blocks.
    xpad_ref[:, 0:2, :] = jnp.zeros((TH + 4, 2, Cin), bf16)
    xpad_ref[:, W + 2:W + 4, :] = jnp.zeros((TH + 4, 2, Cin), bf16)
    xpad_ref[:, 2:W + 2, :] = xa

    @pl.when(r == 0)
    def _():   # rows above the image are conv1's zero padding, not BN1(0)
        xpad_ref[0:2, :, :] = jnp.zeros((2, W + 4, Cin), bf16)

    @pl.when(r == last_r)
    def _():   # rows below the image
        xpad_ref[TH + 2:TH + 4, :, :] = jnp.zeros((2, W + 4, Cin), bf16)

    xp = xpad_ref[...]                                     # (TH+4, W+4, Cin) bf16

    # column windows for horizontal taps 0, 1, 2 (interior starts at column 2)
    c0, c1, c2 = slice(1, W + 1), slice(2, W + 2), slice(3, W + 3)

    # ---- conv1 (+ BN2 folded) with the 2x upsample folded into the taps -------
    # one matmul per output parity (a, b): both ky and kx taps folded -> K = 4*Cin
    xcat = (jnp.concatenate([xp[0:TH + 2], xp[1:TH + 3]], axis=-1),   # a = 0
            jnp.concatenate([xp[1:TH + 3], xp[2:TH + 4]], axis=-1))   # a = 1
    bias1 = b1_ref[0]

    hrefs = {(0, 0): h00_ref, (0, 1): h01_ref, (1, 0): h10_ref, (1, 1): h11_ref}
    for a in (0, 1):
        for b in (0, 1):
            ca, cb = (c0, c1) if b == 0 else (c1, c2)
            lhs = jnp.concatenate([xcat[a][:, ca], xcat[a][:, cb]], axis=-1)
            acc1 = mm(lhs.reshape(M1, 4 * Cin), w1_ref[2 * a + b])
            h = jnp.maximum(acc1 + bias1, 0.0).astype(bf16)
            ref = hrefs[(a, b)]
            ref[:, 0:2, :] = jnp.zeros((TH + 2, 2, Cout), bf16)
            ref[:, W + 2:W + 4, :] = jnp.zeros((TH + 2, 2, Cout), bf16)
            ref[:, 2:W + 2, :] = h.reshape(TH + 2, W, Cout)

    # conv2's spatial zero padding: the h1 rows just outside the image are zero
    # (NOT conv1 applied to zero-padded x), so overwrite them on the border blocks.
    @pl.when(r == 0)
    def _():
        for ref in (h00_ref, h01_ref, h10_ref, h11_ref):
            ref[0:1, :, :] = jnp.zeros((1, W + 4, Cout), bf16)

    @pl.when(r == last_r)
    def _():
        for ref in (h00_ref, h01_ref, h10_ref, h11_ref):
            ref[TH + 1:TH + 2, :, :] = jnp.zeros((1, W + 4, Cout), bf16)

    hp = {ab: ref[...] for ab, ref in hrefs.items()}       # (TH+2, W+4, Cout) bf16

    # ---- conv2: vertical im2col mixes the two row-parity planes (K = 3*Cout) ---
    # channel blocks are ordered by the original vertical tap dy = 0, 1, 2
    vcat = {
        (0, 0): jnp.concatenate([hp[(1, 0)][0:TH], hp[(0, 0)][1:TH + 1],
                                 hp[(1, 0)][1:TH + 1]], axis=-1),
        (0, 1): jnp.concatenate([hp[(1, 1)][0:TH], hp[(0, 1)][1:TH + 1],
                                 hp[(1, 1)][1:TH + 1]], axis=-1),
        (1, 0): jnp.concatenate([hp[(0, 0)][1:TH + 1], hp[(1, 0)][1:TH + 1],
                                 hp[(0, 0)][2:TH + 2]], axis=-1),
        (1, 1): jnp.concatenate([hp[(0, 1)][1:TH + 1], hp[(1, 1)][1:TH + 1],
                                 hp[(0, 1)][2:TH + 2]], axis=-1),
    }

    def piece(ab, cw):   # one parity plane's LHS slice for one horizontal tap
        return vcat[ab][:, cw].reshape(THW, 3 * Cout)

    # bypass 1x1 conv input: raw x rows of this block (parity independent), folded
    # into the dx = 1 matmul via Cin extra K columns
    xb = xwin[2:TH + 2].astype(bf16).reshape(THW, Cin)

    # the 4 output parity planes are stacked along M -> one matmul per tap
    lhs0 = jnp.concatenate([piece((0, 1), c0), piece((0, 0), c1),
                            piece((1, 1), c0), piece((1, 0), c1)], axis=0)
    lhs1 = jnp.concatenate(
        [jnp.concatenate([piece((0, 0), c1), xb], axis=-1),
         jnp.concatenate([piece((0, 1), c1), xb], axis=-1),
         jnp.concatenate([piece((1, 0), c1), xb], axis=-1),
         jnp.concatenate([piece((1, 1), c1), xb], axis=-1)], axis=0)
    lhs2 = jnp.concatenate([piece((0, 1), c1), piece((0, 0), c2),
                            piece((1, 1), c1), piece((1, 0), c2)], axis=0)

    acc = mm(lhs0, d0_ref[...]) + mm(lhs1, d1_ref[...]) + mm(lhs2, d2_ref[...])

    # plane k = 2*a + b holds output pixels (2i + a, 2j + b); stored directly,
    # no per-parity stacking pass.
    out_ref[0] = (acc + bout_ref[0]).reshape(4, TH, W, Cout).astype(out_ref.dtype)


def _vmem_limit_bytes():
    """~3/4 of physical VMEM: headroom for double-buffered I/O + internal scratch."""
    try:
        cap = int(pltpu.get_tpu_info().vmem_capacity_bytes)
    except Exception:   # older jax / abstract tracing: fall back to a safe value
        cap = 64 * 1024 * 1024
    return (cap * 3) // 4


def res_block_generator(x_nchw, params, *, row_tile=8):
    """ResBlockGenerator forward. x_nchw: (N, Cin, H, W) -> (N, Cout, 2H, 2W)."""
    (w1, b1, w2, b2, wb, bb, g1, be1, m1, v1, g2, be2, m2, v2) = params
    N, Cin, H, W = x_nchw.shape
    Cout = w1.shape[0]
    eps = 1e-5

    # row tile: largest value <= row_tile that divides H (whole image if H small)
    th = max(1, min(row_tile, H))
    while H % th:
        th -= 1
    R = H // th

    # BatchNorm (eval mode) folded into per-channel affine transforms.
    s1 = g1 / jnp.sqrt(v1 + eps)
    t1 = be1 - m1 * s1
    s2 = g2 / jnp.sqrt(v2 + eps)
    w1f = w1 * s2[:, None, None, None]        # BN2 folded into conv1 weights
    b1f = (b1 - m2) * s2 + be2                # ... and bias

    # ---- pack conv weights for the parity-plane / K-folded matmuls ------------
    def fold_rows(w, a):   # (O, I, 3, 3) -> (O, I, 2, 3): fold 2x upsample along H
        if a == 0:
            return jnp.stack([w[:, :, 0, :], w[:, :, 1, :] + w[:, :, 2, :]], axis=2)
        return jnp.stack([w[:, :, 0, :] + w[:, :, 1, :], w[:, :, 2, :]], axis=2)

    def fold_cols(w, b):   # (O, I, 2, 3) -> (O, I, 2, 2): fold 2x upsample along W
        if b == 0:
            return jnp.stack([w[:, :, :, 0], w[:, :, :, 1] + w[:, :, :, 2]], axis=3)
        return jnp.stack([w[:, :, :, 0] + w[:, :, :, 1], w[:, :, :, 2]], axis=3)

    mats = []
    for a in (0, 1):
        for b in (0, 1):
            wab = fold_cols(fold_rows(w1f, a), b)                    # (O, I, 2, 2)
            wa0 = jnp.transpose(wab[:, :, :, 0], (2, 1, 0)).reshape(2 * Cin, Cout)
            wa1 = jnp.transpose(wab[:, :, :, 1], (2, 1, 0)).reshape(2 * Cin, Cout)
            mats.append(jnp.concatenate([wa0, wa1], axis=0))         # (4*Cin, Cout)
    w1k = jnp.stack(mats, axis=0).astype(jnp.bfloat16)               # (4, 4*Cin, Cout)

    # conv2 tap matrices: d_dx[dy*Cout + ci, co] = w2[co, ci, dy, dx]
    w2k = jnp.transpose(w2, (3, 2, 1, 0)).reshape(3, 3 * Cout, Cout)
    wbk = jnp.transpose(wb[:, :, 0, 0], (1, 0))                      # (Cin, Cout)
    d0 = w2k[0].astype(jnp.bfloat16)
    d1 = jnp.concatenate([w2k[1], wbk], axis=0).astype(jnp.bfloat16)  # bypass folded
    d2 = w2k[2].astype(jnp.bfloat16)

    s1k = s1.reshape(1, Cin).astype(jnp.float32)
    t1k = t1.reshape(1, Cin).astype(jnp.float32)
    b1k = b1f.reshape(1, Cout).astype(jnp.float32)
    boutk = (b2 + bb).reshape(1, Cout).astype(jnp.float32)           # conv2 + bypass bias

    x_nhwc = jnp.transpose(x_nchw, (0, 2, 3, 1)).astype(jnp.float32)
    x_pad = jnp.pad(x_nhwc, ((0, 0), (2, 2), (0, 0), (0, 0)))        # 2-row zero halo

    kernel = functools.partial(_resblock_gen_kernel, TH=th, W=W, Cin=Cin, Cout=Cout)
    out_k = pl.pallas_call(
        kernel,
        out_shape=jax.ShapeDtypeStruct((N, 4, H, W, Cout), jnp.float32),
        grid_spec=pltpu.PrefetchScalarGridSpec(
            num_scalar_prefetch=0,
            grid=(N, R),
            in_specs=[
                pl.BlockSpec((1, H + 4, W, Cin), lambda n, r: (n, 0, 0, 0)),
                pl.BlockSpec((1, Cin), lambda n, r: (0, 0)),
                pl.BlockSpec((1, Cin), lambda n, r: (0, 0)),
                pl.BlockSpec((4, 4 * Cin, Cout), lambda n, r: (0, 0, 0)),
                pl.BlockSpec((1, Cout), lambda n, r: (0, 0)),
                pl.BlockSpec((3 * Cout, Cout), lambda n, r: (0, 0)),
                pl.BlockSpec((3 * Cout + Cin, Cout), lambda n, r: (0, 0)),
                pl.BlockSpec((3 * Cout, Cout), lambda n, r: (0, 0)),
                pl.BlockSpec((1, Cout), lambda n, r: (0, 0)),
            ],
            out_specs=pl.BlockSpec((1, 4, th, W, Cout),
                                   lambda n, r: (n, 0, r, 0, 0)),
            scratch_shapes=[
                pltpu.VMEM((th + 4, W + 4, Cin), jnp.bfloat16),
                pltpu.VMEM((th + 2, W + 4, Cout), jnp.bfloat16),
                pltpu.VMEM((th + 2, W + 4, Cout), jnp.bfloat16),
                pltpu.VMEM((th + 2, W + 4, Cout), jnp.bfloat16),
                pltpu.VMEM((th + 2, W + 4, Cout), jnp.bfloat16),
            ],
        ),
        compiler_params=pltpu.CompilerParams(
            dimension_semantics=("parallel", "parallel"),
            vmem_limit_bytes=_vmem_limit_bytes(),
        ),
    )(x_pad, s1k, t1k, w1k, b1k, d0, d1, d2, boutk)

    # (N, 4, H, W, Cout) -> NCHW (N, Cout, 2H, 2W): plane k = 2a + b holds pixel
    # (2i + a, 2j + b).  Single fused transpose/reshape pass in the wrapper.
    out = out_k.reshape(N, 2, 2, H, W, Cout)
    out = jnp.transpose(out, (0, 5, 3, 1, 4, 2))
    return out.reshape(N, Cout, 2 * H, 2 * W)


# --------------------------- parameter construction ---------------------------

def _xavier_uniform(key, shape, gain):
    fan_out = shape[0] * shape[2] * shape[3]
    fan_in = shape[1] * shape[2] * shape[3]
    a = gain * np.sqrt(6.0 / (fan_in + fan_out))
    return jax.random.uniform(key, shape, jnp.float32, -a, a)


def _conv_bias(key, shape):
    fan_in = shape[1] * shape[2] * shape[3]
    bound = 1.0 / np.sqrt(fan_in)
    return jax.random.uniform(key, (shape[0],), jnp.float32, -bound, bound)


def _bf16_round(w):
    # share bf16-representable weights between the kernel and the f32 reference
    return w.astype(jnp.bfloat16).astype(jnp.float32)


def make_params(key, cin, cout):
    ks = jax.random.split(key, 14)
    w1 = _bf16_round(_xavier_uniform(ks[0], (cout, cin, 3, 3), np.sqrt(2)))
    b1 = _conv_bias(ks[1], (cout, cin, 3, 3))
    w2 = _bf16_round(_xavier_uniform(ks[2], (cout, cout, 3, 3), np.sqrt(2)))
    b2 = _conv_bias(ks[3], (cout, cout, 3, 3))
    wb = _bf16_round(_xavier_uniform(ks[4], (cout, cin, 1, 1), 1.0))
    bb = _conv_bias(ks[5], (cout, cin, 1, 1))
    # BatchNorm affine params + running stats (eval-mode forward).
    g1 = jax.random.uniform(ks[6], (cin,), jnp.float32, 0.5, 1.5)
    be1 = 0.2 * jax.random.normal(ks[7], (cin,), jnp.float32)
    m1 = 0.2 * jax.random.normal(ks[8], (cin,), jnp.float32)
    v1 = jax.random.uniform(ks[9], (cin,), jnp.float32, 0.5, 1.5)
    g2 = jax.random.uniform(ks[10], (cout,), jnp.float32, 0.5, 1.5)
    be2 = 0.2 * jax.random.normal(ks[11], (cout,), jnp.float32)
    m2 = 0.2 * jax.random.normal(ks[12], (cout,), jnp.float32)
    v2 = jax.random.uniform(ks[13], (cout,), jnp.float32, 0.5, 1.5)
    return (w1, b1, w2, b2, wb, bb, g1, be1, m1, v1, g2, be2, m2, v2)


# ----------------------------- pure-JAX reference -----------------------------

def reference(x, params):
    (w1, b1, w2, b2, wb, bb, g1, be1, m1, v1, g2, be2, m2, v2) = params
    eps = 1e-5

    def bn(y, g, be, m, v):
        s = g / jnp.sqrt(v + eps)
        return (y - m[None, :, None, None]) * s[None, :, None, None] \
            + be[None, :, None, None]

    def conv(y, w, bias, pad):
        out = lax.conv_general_dilated(
            y, w, window_strides=(1, 1), padding=[(pad, pad), (pad, pad)],
            dimension_numbers=("NCHW", "OIHW", "NCHW"))
        return out + bias[None, :, None, None]

    def up2(y):
        return jnp.repeat(jnp.repeat(y, 2, axis=2), 2, axis=3)

    h = up2(jax.nn.relu(bn(x, g1, be1, m1, v1)))
    h = conv(h, w1, b1, 1)
    h = jax.nn.relu(bn(h, g2, be2, m2, v2))
    h = conv(h, w2, b2, 1)
    return h + conv(up2(x), wb, bb, 0)


if __name__ == "__main__":
    key = jax.random.PRNGKey(0)
    kx, kp = jax.random.split(key)

    N, Cin, Cout, H, W = 2, 4, 8, 16, 16
    x = jax.random.normal(kx, (N, Cin, H, W), jnp.float32)
    params = make_params(kp, Cin, Cout)

    # row_tile=4 -> 4 row blocks per image: exercises the first / interior / last
    # row-block paths of the spatially tiled kernel.
    fwd = jax.jit(functools.partial(res_block_generator, row_tile=4))
    out = jax.block_until_ready(fwd(x, params))
    assert out.shape == (N, Cout, 2 * H, 2 * W)

    ref = reference(x, params)
    np.testing.assert_allclose(np.asarray(out), np.asarray(ref),
                               rtol=5e-2, atol=5e-2)
    print("KERNEL_OK")
</pallas_src>

<mosaic_0001>
module attributes {stable_mosaic.version = 11 : i64} {
  func.func @_resblock_gen_kernel(%arg0: i32, %arg1: i32, %arg2: memref<1x20x16x4xf32, #tpu.memory_space<vmem>>, %arg3: memref<1x4xf32, #tpu.memory_space<vmem>>, %arg4: memref<1x4xf32, #tpu.memory_space<vmem>>, %arg5: memref<4x16x8xbf16, #tpu.memory_space<vmem>>, %arg6: memref<1x8xf32, #tpu.memory_space<vmem>>, %arg7: memref<24x8xbf16, #tpu.memory_space<vmem>>, %arg8: memref<28x8xbf16, #tpu.memory_space<vmem>>, %arg9: memref<24x8xbf16, #tpu.memory_space<vmem>>, %arg10: memref<1x8xf32, #tpu.memory_space<vmem>>, %arg11: memref<1x4x4x16x8xf32, #tpu.memory_space<vmem>>, %arg12: memref<8x20x4xbf16, #tpu.memory_space<vmem>>, %arg13: memref<6x20x8xbf16, #tpu.memory_space<vmem>>, %arg14: memref<6x20x8xbf16, #tpu.memory_space<vmem>>, %arg15: memref<6x20x8xbf16, #tpu.memory_space<vmem>>, %arg16: memref<6x20x8xbf16, #tpu.memory_space<vmem>>) attributes {dimension_semantics = [#tpu.dimension_semantics<parallel>, #tpu.dimension_semantics<parallel>], iteration_bounds = array<i64: 2, 4>, scalar_prefetch = 0 : i64, scratch_operands = 5 : i64, tpu.core_type = #tpu.core_type<tc>, window_params = [{transform_indices = @transform_0, window_bounds = array<i64: 1, 20, 16, 4>}, {pipeline_mode = #tpu.pipeline_mode<synchronous>, transform_indices = @transform_1, window_bounds = array<i64: 1, 4>}, {pipeline_mode = #tpu.pipeline_mode<synchronous>, transform_indices = @transform_2, window_bounds = array<i64: 1, 4>}, {pipeline_mode = #tpu.pipeline_mode<synchronous>, transform_indices = @transform_3, window_bounds = array<i64: 4, 16, 8>}, {pipeline_mode = #tpu.pipeline_mode<synchronous>, transform_indices = @transform_4, window_bounds = array<i64: 1, 8>}, {pipeline_mode = #tpu.pipeline_mode<synchronous>, transform_indices = @transform_5, window_bounds = array<i64: 24, 8>}, {pipeline_mode = #tpu.pipeline_mode<synchronous>, transform_indices = @transform_6, window_bounds = array<i64: 28, 8>}, {pipeline_mode = #tpu.pipeline_mode<synchronous>, transform_indices = @transform_7, window_bounds = array<i64: 24, 8>}, {pipeline_mode = #tpu.pipeline_mode<synchronous>, transform_indices = @transform_8, window_bounds = array<i64: 1, 8>}, {transform_indices = @transform_9, window_bounds = array<i64: 1, 4, 4, 16, 8>}]} {
    %c4_i32 = arith.constant 4 : i32
    %0 = arith.muli %arg1, %c4_i32 : i32
    %c0 = arith.constant 0 : index
    %1 = arith.index_cast %0 : i32 to index
    %c0_0 = arith.constant 0 : index
    %c0_1 = arith.constant 0 : index
    %2 = vector.load %arg2[%c0, %1, %c0_0, %c0_1] : memref<1x20x16x4xf32, #tpu.memory_space<vmem>>, vector<1x8x16x4xf32>
    %3 = vector.shape_cast %2 : vector<1x8x16x4xf32> to vector<8x16x4xf32>
    %c0_2 = arith.constant 0 : index
    %c0_3 = arith.constant 0 : index
    %4 = vector.load %arg3[%c0_2, %c0_3] : memref<1x4xf32, #tpu.memory_space<vmem>>, vector<1x4xf32>
    %5 = vector.shape_cast %4 : vector<1x4xf32> to vector<4xf32>
    %6 = vector.shape_cast %5 : vector<4xf32> to vector<1x1x4xf32>
    %7 = vector.broadcast %6 : vector<1x1x4xf32> to vector<8x16x4xf32>
    %8 = arith.mulf %3, %7 : vector<8x16x4xf32>
    %c0_4 = arith.constant 0 : index
    %c0_5 = arith.constant 0 : index
    %9 = vector.load %arg4[%c0_4, %c0_5] : memref<1x4xf32, #tpu.memory_space<vmem>>, vector<1x4xf32>
    %10 = vector.shape_cast %9 : vector<1x4xf32> to vector<4xf32>
    %11 = vector.shape_cast %10 : vector<4xf32> to vector<1x1x4xf32>
    %12 = vector.broadcast %11 : vector<1x1x4xf32> to vector<8x16x4xf32>
    %13 = arith.addf %8, %12 : vector<8x16x4xf32>
    %cst = arith.constant 0.000000e+00 : f32
    %14 = vector.broadcast %cst : f32 to vector<8x16x4xf32>
    %15 = arith.maximumf %13, %14 : vector<8x16x4xf32>
    %16 = arith.truncf %15 : vector<8x16x4xf32> to vector<8x16x4xbf16>
    %cst_6 = arith.constant 0.000000e+00 : bf16
    %17 = vector.broadcast %cst_6 : bf16 to vector<8x2x4xbf16>
    %c0_7 = arith.constant 0 : index
    %c0_8 = arith.constant 0 : index
    %c0_9 = arith.constant 0 : index
    %18 = vector.load %arg12[%c0_7, %c0_8, %c0_9] : memref<8x20x4xbf16, #tpu.memory_space<vmem>>, vector<8x2x4xbf16>
    tpu.vector_store %arg12[%c0_7, %c0_8, %c0_9], %17 {strides = array<i32>} : memref<8x20x4xbf16, #tpu.memory_space<vmem>>, vector<8x2x4xbf16>,
    %cst_10 = arith.constant 0.000000e+00 : bf16
    %19 = vector.broadcast %cst_10 : bf16 to vector<8x2x4xbf16>
    %c0_11 = arith.constant 0 : index
    %c18 = arith.constant 18 : index
    %c0_12 = arith.constant 0 : index
    %20 = vector.load %arg12[%c0_11, %c18, %c0_12] : memref<8x20x4xbf16, #tpu.memory_space<vmem>>, vector<8x2x4xbf16>
    tpu.vector_store %arg12[%c0_11, %c18, %c0_12], %19 {strides = array<i32>} : memref<8x20x4xbf16, #tpu.memory_space<vmem>>, vector<8x2x4xbf16>,
    %c0_13 = arith.constant 0 : index
    %c2 = arith.constant 2 : index
    %c0_14 = arith.constant 0 : index
    %21 = vector.load %arg12[%c0_13, %c2, %c0_14] : memref<8x20x4xbf16, #tpu.memory_space<vmem>>, vector<8x16x4xbf16>
    tpu.vector_store %arg12[%c0_13, %c2, %c0_14], %16 {strides = array<i32>} : memref<8x20x4xbf16, #tpu.memory_space<vmem>>, vector<8x16x4xbf16>,
    %c0_i32 = arith.constant 0 : i32
    %22 = arith.cmpi eq, %arg1, %c0_i32 : i32
    %23 = arith.extui %22 : i1 to i32
    %c0_i32_15 = arith.constant 0 : i32
    %24 = arith.cmpi ne, %23, %c0_i32_15 : i32
    scf.if %24 {
      %cst_116 = arith.constant 0.000000e+00 : bf16
      %190 = vector.broadcast %cst_116 : bf16 to vector<2x20x4xbf16>
      %c0_117 = arith.constant 0 : index
      %c0_118 = arith.constant 0 : index
      %c0_119 = arith.constant 0 : index
      %191 = vector.load %arg12[%c0_117, %c0_118, %c0_119] : memref<8x20x4xbf16, #tpu.memory_space<vmem>>, vector<2x20x4xbf16>
      tpu.vector_store %arg12[%c0_117, %c0_118, %c0_119], %190 {strides = array<i32>} : memref<8x20x4xbf16, #tpu.memory_space<vmem>>, vector<2x20x4xbf16>,
    } else {
    }
    %c3_i32 = arith.constant 3 : i32
    %25 = arith.cmpi eq, %arg1, %c3_i32 : i32
    %26 = arith.extui %25 : i1 to i32
    %c0_i32_16 = arith.constant 0 : i32
    %27 = arith.cmpi ne, %26, %c0_i32_16 : i32
    scf.if %27 {
      %cst_116 = arith.constant 0.000000e+00 : bf16
      %190 = vector.broadcast %cst_116 : bf16 to vector<2x20x4xbf16>
      %c6 = arith.constant 6 : index
      %c0_117 = arith.constant 0 : index
      %c0_118 = arith.constant 0 : index
      %191 = vector.load %arg12[%c6, %c0_117, %c0_118] : memref<8x20x4xbf16, #tpu.memory_space<vmem>>, vector<2x20x4xbf16>
      tpu.vector_store %arg12[%c6, %c0_117, %c0_118], %190 {strides = array<i32>} : memref<8x20x4xbf16, #tpu.memory_space<vmem>>, vector<2x20x4xbf16>,
    } else {
    }
    %c0_17 = arith.constant 0 : index
    %c0_18 = arith.constant 0 : index
    %c0_19 = arith.constant 0 : index
    %28 = vector.load %arg12[%c0_17, %c0_18, %c0_19] : memref<8x20x4xbf16, #tpu.memory_space<vmem>>, vector<8x20x4xbf16>
    %29 = vector.extract_strided_slice %28 {offsets = [0, 0, 0], sizes = [6, 20, 4], strides = [1, 1, 1]} : vector<8x20x4xbf16> to vector<6x20x4xbf16>
    %30 = vector.extract_strided_slice %28 {offsets = [1, 0, 0], sizes = [6, 20, 4], strides = [1, 1, 1]} : vector<8x20x4xbf16> to vector<6x20x4xbf16>
    %31 = tpu.concatenate %29, %30 in 2 : vector<6x20x4xbf16>, vector<6x20x4xbf16> -> vector<6x20x8xbf16>
    %32 = vector.extract_strided_slice %28 {offsets = [1, 0, 0], sizes = [6, 20, 4], strides = [1, 1, 1]} : vector<8x20x4xbf16> to vector<6x20x4xbf16>
    %33 = vector.extract_strided_slice %28 {offsets = [2, 0, 0], sizes = [6, 20, 4], strides = [1, 1, 1]} : vector<8x20x4xbf16> to vector<6x20x4xbf16>
    %34 = tpu.concatenate %32, %33 in 2 : vector<6x20x4xbf16>, vector<6x20x4xbf16> -> vector<6x20x8xbf16>
    %c0_20 = arith.constant 0 : index
    %c0_21 = arith.constant 0 : index
    %35 = vector.load %arg6[%c0_20, %c0_21] : memref<1x8xf32, #tpu.memory_space<vmem>>, vector<1x8xf32>
    %36 = vector.shape_cast %35 : vector<1x8xf32> to vector<8xf32>
    %37 = vector.extract_strided_slice %31 {offsets = [0, 1, 0], sizes = [6, 16, 8], strides = [1, 1, 1]} : vector<6x20x8xbf16> to vector<6x16x8xbf16>
    %38 = vector.extract_strided_slice %31 {offsets = [0, 2, 0], sizes = [6, 16, 8], strides = [1, 1, 1]} : vector<6x20x8xbf16> to vector<6x16x8xbf16>
    %39 = tpu.concatenate %37, %38 in 2 : vector<6x16x8xbf16>, vector<6x16x8xbf16> -> vector<6x16x16xbf16>
    %40 = vector.shape_cast %39 : vector<6x16x16xbf16> to vector<96x16xbf16>
    %c0_22 = arith.constant 0 : index
    %c0_23 = arith.constant 0 : index
    %c0_24 = arith.constant 0 : index
    %41 = vector.load %arg5[%c0_22, %c0_23, %c0_24] : memref<4x16x8xbf16, #tpu.memory_space<vmem>>, vector<1x16x8xbf16>
    %42 = vector.shape_cast %41 : vector<1x16x8xbf16> to vector<16x8xbf16>
    %cst_25 = arith.constant dense<0.000000e+00> : vector<96x8xf32>
    %43 = tpu.matmul %40, %42, %cst_25 {dimension_numbers = #tpu.dot_dimension_numbers<[1], [0], [0], [1], [0, 0, 1, 1], [], []>} : vector<96x16xbf16>, vector<16x8xbf16>, vector<96x8xf32> -> vector<96x8xf32>
    %44 = vector.shape_cast %36 : vector<8xf32> to vector<1x8xf32>
    %45 = vector.broadcast %44 : vector<1x8xf32> to vector<96x8xf32>
    %46 = arith.addf %43, %45 : vector<96x8xf32>
    %cst_26 = arith.constant 0.000000e+00 : f32
    %47 = vector.broadcast %cst_26 : f32 to vector<96x8xf32>
    %48 = arith.maximumf %46, %47 : vector<96x8xf32>
    %49 = arith.truncf %48 : vector<96x8xf32> to vector<96x8xbf16>
    %cst_27 = arith.constant 0.000000e+00 : bf16
    %50 = vector.broadcast %cst_27 : bf16 to vector<6x2x8xbf16>
    %c0_28 = arith.constant 0 : index
    %c0_29 = arith.constant 0 : index
    %c0_30 = arith.constant 0 : index
    %51 = vector.load %arg13[%c0_28, %c0_29, %c0_30] : memref<6x20x8xbf16, #tpu.memory_space<vmem>>, vector<6x2x8xbf16>
    tpu.vector_store %arg13[%c0_28, %c0_29, %c0_30], %50 {strides = array<i32>} : memref<6x20x8xbf16, #tpu.memory_space<vmem>>, vector<6x2x8xbf16>,
    %cst_31 = arith.constant 0.000000e+00 : bf16
    %52 = vector.broadcast %cst_31 : bf16 to vector<6x2x8xbf16>
    %c0_32 = arith.constant 0 : index
    %c18_33 = arith.constant 18 : index
    %c0_34 = arith.constant 0 : index
    %53 = vector.load %arg13[%c0_32, %c18_33, %c0_34] : memref<6x20x8xbf16, #tpu.memory_space<vmem>>, vector<6x2x8xbf16>
    tpu.vector_store %arg13[%c0_32, %c18_33, %c0_34], %52 {strides = array<i32>} : memref<6x20x8xbf16, #tpu.memory_space<vmem>>, vector<6x2x8xbf16>,
    %54 = vector.shape_cast %49 : vector<96x8xbf16> to vector<6x16x8xbf16>
    %c0_35 = arith.constant 0 : index
    %c2_36 = arith.constant 2 : index
    %c0_37 = arith.constant 0 : index
    %55 = vector.load %arg13[%c0_35, %c2_36, %c0_37] : memref<6x20x8xbf16, #tpu.memory_space<vmem>>, vector<6x16x8xbf16>
    tpu.vector_store %arg13[%c0_35, %c2_36, %c0_37], %54 {strides = array<i32>} : memref<6x20x8xbf16, #tpu.memory_space<vmem>>, vector<6x16x8xbf16>,
    %56 = vector.extract_strided_slice %31 {offsets = [0, 2, 0], sizes = [6, 16, 8], strides = [1, 1, 1]} : vector<6x20x8xbf16> to vector<6x16x8xbf16>
    %57 = vector.extract_strided_slice %31 {offsets = [0, 3, 0], sizes = [6, 16, 8], strides = [1, 1, 1]} : vector<6x20x8xbf16> to vector<6x16x8xbf16>
    %58 = tpu.concatenate %56, %57 in 2 : vector<6x16x8xbf16>, vector<6x16x8xbf16> -> vector<6x16x16xbf16>
    %59 = vector.shape_cast %58 : vector<6x16x16xbf16> to vector<96x16xbf16>
    %c1 = arith.constant 1 : index
    %c0_38 = arith.constant 0 : index
    %c0_39 = arith.constant 0 : index
    %60 = vector.load %arg5[%c1, %c0_38, %c0_39] : memref<4x16x8xbf16, #tpu.memory_space<vmem>>, vector<1x16x8xbf16>
    %61 = vector.shape_cast %60 : vector<1x16x8xbf16> to vector<16x8xbf16>
    %cst_40 = arith.constant dense<0.000000e+00> : vector<96x8xf32>
    %62 = tpu.matmul %59, %61, %cst_40 {dimension_numbers = #tpu.dot_dimension_numbers<[1], [0], [0], [1], [0, 0, 1, 1], [], []>} : vector<96x16xbf16>, vector<16x8xbf16>, vector<96x8xf32> -> vector<96x8xf32>
    %63 = vector.shape_cast %36 : vector<8xf32> to vector<1x8xf32>
    %64 = vector.broadcast %63 : vector<1x8xf32> to vector<96x8xf32>
    %65 = arith.addf %62, %64 : vector<96x8xf32>
    %cst_41 = arith.constant 0.000000e+00 : f32
    %66 = vector.broadcast %cst_41 : f32 to vector<96x8xf32>
    %67 = arith.maximumf %65, %66 : vector<96x8xf32>
    %68 = arith.truncf %67 : vector<96x8xf32> to vector<96x8xbf16>
    %cst_42 = arith.constant 0.000000e+00 : bf16
    %69 = vector.broadcast %cst_42 : bf16 to vector<6x2x8xbf16>
    %c0_43 = arith.constant 0 : index
    %c0_44 = arith.constant 0 : index
    %c0_45 = arith.constant 0 : index
    %70 = vector.load %arg14[%c0_43, %c0_44, %c0_45] : memref<6x20x8xbf16, #tpu.memory_space<vmem>>, vector<6x2x8xbf16>
    tpu.vector_store %arg14[%c0_43, %c0_44, %c0_45], %69 {strides = array<i32>} : memref<6x20x8xbf16, #tpu.memory_space<vmem>>, vector<6x2x8xbf16>,
    %cst_46 = arith.constant 0.000000e+00 : bf16
    %71 = vector.broadcast %cst_46 : bf16 to vector<6x2x8xbf16>
    %c0_47 = arith.constant 0 : index
    %c18_48 = arith.constant 18 : index
    %c0_49 = arith.constant 0 : index
    %72 = vector.load %arg14[%c0_47, %c18_48, %c0_49] : memref<6x20x8xbf16, #tpu.memory_space<vmem>>, vector<6x2x8xbf16>
    tpu.vector_store %arg14[%c0_47, %c18_48, %c0_49], %71 {strides = array<i32>} : memref<6x20x8xbf16, #tpu.memory_space<vmem>>, vector<6x2x8xbf16>,
    %73 = vector.shape_cast %68 : vector<96x8xbf16> to vector<6x16x8xbf16>
    %c0_50 = arith.constant 0 : index
    %c2_51 = arith.constant 2 : index
    %c0_52 = arith.constant 0 : index
    %74 = vector.load %arg14[%c0_50, %c2_51, %c0_52] : memref<6x20x8xbf16, #tpu.memory_space<vmem>>, vector<6x16x8xbf16>
    tpu.vector_store %arg14[%c0_50, %c2_51, %c0_52], %73 {strides = array<i32>} : memref<6x20x8xbf16, #tpu.memory_space<vmem>>, vector<6x16x8xbf16>,
    %75 = vector.extract_strided_slice %34 {offsets = [0, 1, 0], sizes = [6, 16, 8], strides = [1, 1, 1]} : vector<6x20x8xbf16> to vector<6x16x8xbf16>
    %76 = vector.extract_strided_slice %34 {offsets = [0, 2, 0], sizes = [6, 16, 8], strides = [1, 1, 1]} : vector<6x20x8xbf16> to vector<6x16x8xbf16>
    %77 = tpu.concatenate %75, %76 in 2 : vector<6x16x8xbf16>, vector<6x16x8xbf16> -> vector<6x16x16xbf16>
    %78 = vector.shape_cast %77 : vector<6x16x16xbf16> to vector<96x16xbf16>
    %c2_53 = arith.constant 2 : index
    %c0_54 = arith.constant 0 : index
    %c0_55 = arith.constant 0 : index
    %79 = vector.load %arg5[%c2_53, %c0_54, %c0_55] : memref<4x16x8xbf16, #tpu.memory_space<vmem>>, vector<1x16x8xbf16>
    %80 = vector.shape_cast %79 : vector<1x16x8xbf16> to vector<16x8xbf16>
    %cst_56 = arith.constant dense<0.000000e+00> : vector<96x8xf32>
    %81 = tpu.matmul %78, %80, %cst_56 {dimension_numbers = #tpu.dot_dimension_numbers<[1], [0], [0], [1], [0, 0, 1, 1], [], []>} : vector<96x16xbf16>, vector<16x8xbf16>, vector<96x8xf32> -> vector<96x8xf32>
    %82 = vector.shape_cast %36 : vector<8xf32> to vector<1x8xf32>
    %83 = vector.broadcast %82 : vector<1x8xf32> to vector<96x8xf32>
    %84 = arith.addf %81, %83 : vector<96x8xf32>
    %cst_57 = arith.constant 0.000000e+00 : f32
    %85 = vector.broadcast %cst_57 : f32 to vector<96x8xf32>
    %86 = arith.maximumf %84, %85 : vector<96x8xf32>
    %87 = arith.truncf %86 : vector<96x8xf32> to vector<96x8xbf16>
    %cst_58 = arith.constant 0.000000e+00 : bf16
    %88 = vector.broadcast %cst_58 : bf16 to vector<6x2x8xbf16>
    %c0_59 = arith.constant 0 : index
    %c0_60 = arith.constant 0 : index
    %c0_61 = arith.constant 0 : index
    %89 = vector.load %arg15[%c0_59, %c0_60, %c0_61] : memref<6x20x8xbf16, #tpu.memory_space<vmem>>, vector<6x2x8xbf16>
    tpu.vector_store %arg15[%c0_59, %c0_60, %c0_61], %88 {strides = array<i32>} : memref<6x20x8xbf16, #tpu.memory_space<vmem>>, vector<6x2x8xbf16>,
    %cst_62 = arith.constant 0.000000e+00 : bf16
    %90 = vector.broadcast %cst_62 : bf16 to vector<6x2x8xbf16>
    %c0_63 = arith.constant 0 : index
    %c18_64 = arith.constant 18 : index
    %c0_65 = arith.constant 0 : index
    %91 = vector.load %arg15[%c0_63, %c18_64, %c0_65] : memref<6x20x8xbf16, #tpu.memory_space<vmem>>, vector<6x2x8xbf16>
    tpu.vector_store %arg15[%c0_63, %c18_64, %c0_65], %90 {strides = array<i32>} : memref<6x20x8xbf16, #tpu.memory_space<vmem>>, vector<6x2x8xbf16>,
    %92 = vector.shape_cast %87 : vector<96x8xbf16> to vector<6x16x8xbf16>
    %c0_66 = arith.constant 0 : index
    %c2_67 = arith.constant 2 : index
    %c0_68 = arith.constant 0 : index
    %93 = vector.load %arg15[%c0_66, %c2_67, %c0_68] : memref<6x20x8xbf16, #tpu.memory_space<vmem>>, vector<6x16x8xbf16>
    tpu.vector_store %arg15[%c0_66, %c2_67, %c0_68], %92 {strides = array<i32>} : memref<6x20x8xbf16, #tpu.memory_space<vmem>>, vector<6x16x8xbf16>,
    %94 = vector.extract_strided_slice %34 {offsets = [0, 2, 0], sizes = [6, 16, 8], strides = [1, 1, 1]} : vector<6x20x8xbf16> to vector<6x16x8xbf16>
    %95 = vector.extract_strided_slice %34 {offsets = [0, 3, 0], sizes = [6, 16, 8], strides = [1, 1, 1]} : vector<6x20x8xbf16> to vector<6x16x8xbf16>
    %96 = tpu.concatenate %94, %95 in 2 : vector<6x16x8xbf16>, vector<6x16x8xbf16> -> vector<6x16x16xbf16>
    %97 = vector.shape_cast %96 : vector<6x16x16xbf16> to vector<96x16xbf16>
    %c3 = arith.constant 3 : index
    %c0_69 = arith.constant 0 : index
    %c0_70 = arith.constant 0 : index
    %98 = vector.load %arg5[%c3, %c0_69, %c0_70] : memref<4x16x8xbf16, #tpu.memory_space<vmem>>, vector<1x16x8xbf16>
    %99 = vector.shape_cast %98 : vector<1x16x8xbf16> to vector<16x8xbf16>
    %cst_71 = arith.constant dense<0.000000e+00> : vector<96x8xf32>
    %100 = tpu.matmul %97, %99, %cst_71 {dimension_numbers = #tpu.dot_dimension_numbers<[1], [0], [0], [1], [0, 0, 1, 1], [], []>} : vector<96x16xbf16>, vector<16x8xbf16>, vector<96x8xf32> -> vector<96x8xf32>
    %101 = vector.shape_cast %36 : vector<8xf32> to vector<1x8xf32>
    %102 = vector.broadcast %101 : vector<1x8xf32> to vector<96x8xf32>
    %103 = arith.addf %100, %102 : vector<96x8xf32>
    %cst_72 = arith.constant 0.000000e+00 : f32
    %104 = vector.broadcast %cst_72 : f32 to vector<96x8xf32>
    %105 = arith.maximumf %103, %104 : vector<96x8xf32>
    %106 = arith.truncf %105 : vector<96x8xf32> to vector<96x8xbf16>
    %cst_73 = arith.constant 0.000000e+00 : bf16
    %107 = vector.broadcast %cst_73 : bf16 to vector<6x2x8xbf16>
    %c0_74 = arith.constant 0 : index
    %c0_75 = arith.constant 0 : index
    %c0_76 = arith.constant 0 : index
    %108 = vector.load %arg16[%c0_74, %c0_75, %c0_76] : memref<6x20x8xbf16, #tpu.memory_space<vmem>>, vector<6x2x8xbf16>
    tpu.vector_store %arg16[%c0_74, %c0_75, %c0_76], %107 {strides = array<i32>} : memref<6x20x8xbf16, #tpu.memory_space<vmem>>, vector<6x2x8xbf16>,
    %cst_77 = arith.constant 0.000000e+00 : bf16
    %109 = vector.broadcast %cst_77 : bf16 to vector<6x2x8xbf16>
    %c0_78 = arith.constant 0 : index
    %c18_79 = arith.constant 18 : index
    %c0_80 = arith.constant 0 : index
    %110 = vector.load %arg16[%c0_78, %c18_79, %c0_80] : memref<6x20x8xbf16, #tpu.memory_space<vmem>>, vector<6x2x8xbf16>
    tpu.vector_store %arg16[%c0_78, %c18_79, %c0_80], %109 {strides = array<i32>} : memref<6x20x8xbf16, #tpu.memory_space<vmem>>, vector<6x2x8xbf16>,
    %111 = vector.shape_cast %106 : vector<96x8xbf16> to vector<6x16x8xbf16>
    %c0_81 = arith.constant 0 : index
    %c2_82 = arith.constant 2 : index
    %c0_83 = arith.constant 0 : index
    %112 = vector.load %arg16[%c0_81, %c2_82, %c0_83] : memref<6x20x8xbf16, #tpu.memory_space<vmem>>, vector<6x16x8xbf16>
    tpu.vector_store %arg16[%c0_81, %c2_82, %c0_83], %111 {strides = array<i32>} : memref<6x20x8xbf16, #tpu.memory_space<vmem>>, vector<6x16x8xbf16>,
    %c0_i32_84 = arith.constant 0 : i32
    %113 = arith.cmpi eq, %arg1, %c0_i32_84 : i32
    %114 = arith.extui %113 : i1 to i32
    %c0_i32_85 = arith.constant 0 : i32
    %115 = arith.cmpi ne, %114, %c0_i32_85 : i32
    scf.if %115 {
      %cst_116 = arith.constant 0.000000e+00 : bf16
      %190 = vector.broadcast %cst_116 : bf16 to vector<1x20x8xbf16>
      %c0_117 = arith.constant 0 : index
      %c0_118 = arith.constant 0 : index
      %c0_119 = arith.constant 0 : index
      %191 = vector.load %arg13[%c0_117, %c0_118, %c0_119] : memref<6x20x8xbf16, #tpu.memory_space<vmem>>, vector<1x20x8xbf16>
      tpu.vector_store %arg13[%c0_117, %c0_118, %c0_119], %190 {strides = array<i32>} : memref<6x20x8xbf16, #tpu.memory_space<vmem>>, vector<1x20x8xbf16>,
      %cst_120 = arith.constant 0.000000e+00 : bf16
      %192 = vector.broadcast %cst_120 : bf16 to vector<1x20x8xbf16>
      %c0_121 = arith.constant 0 : index
      %c0_122 = arith.constant 0 : index
      %c0_123 = arith.constant 0 : index
      %193 = vector.load %arg14[%c0_121, %c0_122, %c0_123] : memref<6x20x8xbf16, #tpu.memory_space<vmem>>, vector<1x20x8xbf16>
      tpu.vector_store %arg14[%c0_121, %c0_122, %c0_123], %192 {strides = array<i32>} : memref<6x20x8xbf16, #tpu.memory_space<vmem>>, vector<1x20x8xbf16>,
      %cst_124 = arith.constant 0.000000e+00 : bf16
      %194 = vector.broadcast %cst_124 : bf16 to vector<1x20x8xbf16>
      %c0_125 = arith.constant 0 : index
      %c0_126 = arith.constant 0 : index
      %c0_127 = arith.constant 0 : index
      %195 = vector.load %arg15[%c0_125, %c0_126, %c0_127] : memref<6x20x8xbf16, #tpu.memory_space<vmem>>, vector<1x20x8xbf16>
      tpu.vector_store %arg15[%c0_125, %c0_126, %c0_127], %194 {strides = array<i32>} : memref<6x20x8xbf16, #tpu.memory_space<vmem>>, vector<1x20x8xbf16>,
      %cst_128 = arith.constant 0.000000e+00 : bf16
      %196 = vector.broadcast %cst_128 : bf16 to vector<1x20x8xbf16>
      %c0_129 = arith.constant 0 : index
      %c0_130 = arith.constant 0 : index
      %c0_131 = arith.constant 0 : index
      %197 = vector.load %arg16[%c0_129, %c0_130, %c0_131] : memref<6x20x8xbf16, #tpu.memory_space<vmem>>, vector<1x20x8xbf16>
      tpu.vector_store %arg16[%c0_129, %c0_130, %c0_131], %196 {strides = array<i32>} : memref<6x20x8xbf16, #tpu.memory_space<vmem>>, vector<1x20x8xbf16>,
    } else {
    }
    %c3_i32_86 = arith.constant 3 : i32
    %116 = arith.cmpi eq, %arg1, %c3_i32_86 : i32
    %117 = arith.extui %116 : i1 to i32
    %c0_i32_87 = arith.constant 0 : i32
    %118 = arith.cmpi ne, %117, %c0_i32_87 : i32
    scf.if %118 {
      %cst_116 = arith.constant 0.000000e+00 : bf16
      %190 = vector.broadcast %cst_116 : bf16 to vector<1x20x8xbf16>
      %c5 = arith.constant 5 : index
      %c0_117 = arith.constant 0 : index
      %c0_118 = arith.constant 0 : index
      %191 = vector.load %arg13[%c5, %c0_117, %c0_118] : memref<6x20x8xbf16, #tpu.memory_space<vmem>>, vector<1x20x8xbf16>
      tpu.vector_store %arg13[%c5, %c0_117, %c0_118], %190 {strides = array<i32>} : memref<6x20x8xbf16, #tpu.memory_space<vmem>>, vector<1x20x8xbf16>,
      %cst_119 = arith.constant 0.000000e+00 : bf16
      %192 = vector.broadcast %cst_119 : bf16 to vector<1x20x8xbf16>
      %c5_120 = arith.constant 5 : index
      %c0_121 = arith.constant 0 : index
      %c0_122 = arith.constant 0 : index
      %193 = vector.load %arg14[%c5_120, %c0_121, %c0_122] : memref<6x20x8xbf16, #tpu.memory_space<vmem>>, vector<1x20x8xbf16>
      tpu.vector_store %arg14[%c5_120, %c0_121, %c0_122], %192 {strides = array<i32>} : memref<6x20x8xbf16, #tpu.memory_space<vmem>>, vector<1x20x8xbf16>,
      %cst_123 = arith.constant 0.000000e+00 : bf16
      %194 = vector.broadcast %cst_123 : bf16 to vector<1x20x8xbf16>
      %c5_124 = arith.constant 5 : index
      %c0_125 = arith.constant 0 : index
      %c0_126 = arith.constant 0 : index
      %195 = vector.load %arg15[%c5_124, %c0_125, %c0_126] : memref<6x20x8xbf16, #tpu.memory_space<vmem>>, vector<1x20x8xbf16>
      tpu.vector_store %arg15[%c5_124, %c0_125, %c0_126], %194 {strides = array<i32>} : memref<6x20x8xbf16, #tpu.memory_space<vmem>>, vector<1x20x8xbf16>,
      %cst_127 = arith.constant 0.000000e+00 : bf16
      %196 = vector.broadcast %cst_127 : bf16 to vector<1x20x8xbf16>
      %c5_128 = arith.constant 5 : index
      %c0_129 = arith.constant 0 : index
      %c0_130 = arith.constant 0 : index
      %197 = vector.load %arg16[%c5_128, %c0_129, %c0_130] : memref<6x20x8xbf16, #tpu.memory_space<vmem>>, vector<1x20x8xbf16>
      tpu.vector_store %arg16[%c5_128, %c0_129, %c0_130], %196 {strides = array<i32>} : memref<6x20x8xbf16, #tpu.memory_space<vmem>>, vector<1x20x8xbf16>,
    } else {
    }
    %c0_88 = arith.constant 0 : index
    %c0_89 = arith.constant 0 : index
    %c0_90 = arith.constant 0 : index
    %119 = vector.load %arg13[%c0_88, %c0_89, %c0_90] : memref<6x20x8xbf16, #tpu.memory_space<vmem>>, vector<6x20x8xbf16>
    %c0_91 = arith.constant 0 : index
    %c0_92 = arith.constant 0 : index
    %c0_93 = arith.constant 0 : index
    %120 = vector.load %arg14[%c0_91, %c0_92, %c0_93] : memref<6x20x8xbf16, #tpu.memory_space<vmem>>, vector<6x20x8xbf16>
    %c0_94 = arith.constant 0 : index
    %c0_95 = arith.constant 0 : index
    %c0_96 = arith.constant 0 : index
    %121 = vector.load %arg15[%c0_94, %c0_95, %c0_96] : memref<6x20x8xbf16, #tpu.memory_space<vmem>>, vector<6x20x8xbf16>
    %c0_97 = arith.constant 0 : index
    %c0_98 = arith.constant 0 : index
    %c0_99 = arith.constant 0 : index
    %122 = vector.load %arg16[%c0_97, %c0_98, %c0_99] : memref<6x20x8xbf16, #tpu.memory_space<vmem>>, vector<6x20x8xbf16>
    %123 = vector.extract_strided_slice %121 {offsets = [0, 0, 0], sizes = [4, 20, 8], strides = [1, 1, 1]} : vector<6x20x8xbf16> to vector<4x20x8xbf16>
    %124 = vector.extract_strided_slice %119 {offsets = [1, 0, 0], sizes = [4, 20, 8], strides = [1, 1, 1]} : vector<6x20x8xbf16> to vector<4x20x8xbf16>
    %125 = vector.extract_strided_slice %121 {offsets = [1, 0, 0], sizes = [4, 20, 8], strides = [1, 1, 1]} : vector<6x20x8xbf16> to vector<4x20x8xbf16>
    %126 = tpu.concatenate %123, %124, %125 in 2 : vector<4x20x8xbf16>, vector<4x20x8xbf16>, vector<4x20x8xbf16> -> vector<4x20x24xbf16>
    %127 = vector.extract_strided_slice %122 {offsets = [0, 0, 0], sizes = [4, 20, 8], strides = [1, 1, 1]} : vector<6x20x8xbf16> to vector<4x20x8xbf16>
    %128 = vector.extract_strided_slice %120 {offsets = [1, 0, 0], sizes = [4, 20, 8], strides = [1, 1, 1]} : vector<6x20x8xbf16> to vector<4x20x8xbf16>
    %129 = vector.extract_strided_slice %122 {offsets = [1, 0, 0], sizes = [4, 20, 8], strides = [1, 1, 1]} : vector<6x20x8xbf16> to vector<4x20x8xbf16>
    %130 = tpu.concatenate %127, %128, %129 in 2 : vector<4x20x8xbf16>, vector<4x20x8xbf16>, vector<4x20x8xbf16> -> vector<4x20x24xbf16>
    %131 = vector.extract_strided_slice %119 {offsets = [1, 0, 0], sizes = [4, 20, 8], strides = [1, 1, 1]} : vector<6x20x8xbf16> to vector<4x20x8xbf16>
    %132 = vector.extract_strided_slice %121 {offsets = [1, 0, 0], sizes = [4, 20, 8], strides = [1, 1, 1]} : vector<6x20x8xbf16> to vector<4x20x8xbf16>
    %133 = vector.extract_strided_slice %119 {offsets = [2, 0, 0], sizes = [4, 20, 8], strides = [1, 1, 1]} : vector<6x20x8xbf16> to vector<4x20x8xbf16>
    %134 = tpu.concatenate %131, %132, %133 in 2 : vector<4x20x8xbf16>, vector<4x20x8xbf16>, vector<4x20x8xbf16> -> vector<4x20x24xbf16>
    %135 = vector.extract_strided_slice %120 {offsets = [1, 0, 0], sizes = [4, 20, 8], strides = [1, 1, 1]} : vector<6x20x8xbf16> to vector<4x20x8xbf16>
    %136 = vector.extract_strided_slice %122 {offsets = [1, 0, 0], sizes = [4, 20, 8], strides = [1, 1, 1]} : vector<6x20x8xbf16> to vector<4x20x8xbf16>
    %137 = vector.extract_strided_slice %120 {offsets = [2, 0, 0], sizes = [4, 20, 8], strides = [1, 1, 1]} : vector<6x20x8xbf16> to vector<4x20x8xbf16>
    %138 = tpu.concatenate %135, %136, %137 in 2 : vector<4x20x8xbf16>, vector<4x20x8xbf16>, vector<4x20x8xbf16> -> vector<4x20x24xbf16>
    %139 = vector.extract_strided_slice %3 {offsets = [2, 0, 0], sizes = [4, 16, 4], strides = [1, 1, 1]} : vector<8x16x4xf32> to vector<4x16x4xf32>
    %140 = arith.truncf %139 : vector<4x16x4xf32> to vector<4x16x4xbf16>
    %141 = vector.shape_cast %140 : vector<4x16x4xbf16> to vector<64x4xbf16>
    %142 = vector.extract_strided_slice %130 {offsets = [0, 1, 0], sizes = [4, 16, 24], strides = [1, 1, 1]} : vector<4x20x24xbf16> to vector<4x16x24xbf16>
    %143 = vector.shape_cast %142 : vector<4x16x24xbf16> to vector<64x24xbf16>
    %144 = vector.extract_strided_slice %126 {offsets = [0, 2, 0], sizes = [4, 16, 24], strides = [1, 1, 1]} : vector<4x20x24xbf16> to vector<4x16x24xbf16>
    %145 = vector.shape_cast %144 : vector<4x16x24xbf16> to vector<64x24xbf16>
    %146 = vector.extract_strided_slice %138 {offsets = [0, 1, 0], sizes = [4, 16, 24], strides = [1, 1, 1]} : vector<4x20x24xbf16> to vector<4x16x24xbf16>
    %147 = vector.shape_cast %146 : vector<4x16x24xbf16> to vector<64x24xbf16>
    %148 = vector.extract_strided_slice %134 {offsets = [0, 2, 0], sizes = [4, 16, 24], strides = [1, 1, 1]} : vector<4x20x24xbf16> to vector<4x16x24xbf16>
    %149 = vector.shape_cast %148 : vector<4x16x24xbf16> to vector<64x24xbf16>
    %150 = tpu.concatenate %143, %145, %147, %149 in 0 : vector<64x24xbf16>, vector<64x24xbf16>, vector<64x24xbf16>, vector<64x24xbf16> -> vector<256x24xbf16>
    %151 = vector.extract_strided_slice %126 {offsets = [0, 2, 0], sizes = [4, 16, 24], strides = [1, 1, 1]} : vector<4x20x24xbf16> to vector<4x16x24xbf16>
    %152 = vector.shape_cast %151 : vector<4x16x24xbf16> to vector<64x24xbf16>
    %153 = tpu.concatenate %152, %141 in 1 : vector<64x24xbf16>, vector<64x4xbf16> -> vector<64x28xbf16>
    %154 = vector.extract_strided_slice %130 {offsets = [0, 2, 0], sizes = [4, 16, 24], strides = [1, 1, 1]} : vector<4x20x24xbf16> to vector<4x16x24xbf16>
    %155 = vector.shape_cast %154 : vector<4x16x24xbf16> to vector<64x24xbf16>
    %156 = tpu.concatenate %155, %141 in 1 : vector<64x24xbf16>, vector<64x4xbf16> -> vector<64x28xbf16>
    %157 = vector.extract_strided_slice %134 {offsets = [0, 2, 0], sizes = [4, 16, 24], strides = [1, 1, 1]} : vector<4x20x24xbf16> to vector<4x16x24xbf16>
    %158 = vector.shape_cast %157 : vector<4x16x24xbf16> to vector<64x24xbf16>
    %159 = tpu.concatenate %158, %141 in 1 : vector<64x24xbf16>, vector<64x4xbf16> -> vector<64x28xbf16>
    %160 = vector.extract_strided_slice %138 {offsets = [0, 2, 0], sizes = [4, 16, 24], strides = [1, 1, 1]} : vector<4x20x24xbf16> to vector<4x16x24xbf16>
    %161 = vector.shape_cast %160 : vector<4x16x24xbf16> to vector<64x24xbf16>
    %162 = tpu.concatenate %161, %141 in 1 : vector<64x24xbf16>, vector<64x4xbf16> -> vector<64x28xbf16>
    %163 = tpu.concatenate %153, %156, %159, %162 in 0 : vector<64x28xbf16>, vector<64x28xbf16>, vector<64x28xbf16>, vector<64x28xbf16> -> vector<256x28xbf16>
    %164 = vector.extract_strided_slice %130 {offsets = [0, 2, 0], sizes = [4, 16, 24], strides = [1, 1, 1]} : vector<4x20x24xbf16> to vector<4x16x24xbf16>
    %165 = vector.shape_cast %164 : vector<4x16x24xbf16> to vector<64x24xbf16>
    %166 = vector.extract_strided_slice %126 {offsets = [0, 3, 0], sizes = [4, 16, 24], strides = [1, 1, 1]} : vector<4x20x24xbf16> to vector<4x16x24xbf16>
    %167 = vector.shape_cast %166 : vector<4x16x24xbf16> to vector<64x24xbf16>
    %168 = vector.extract_strided_slice %138 {offsets = [0, 2, 0], sizes = [4, 16, 24], strides = [1, 1, 1]} : vector<4x20x24xbf16> to vector<4x16x24xbf16>
    %169 = vector.shape_cast %168 : vector<4x16x24xbf16> to vector<64x24xbf16>
    %170 = vector.extract_strided_slice %134 {offsets = [0, 3, 0], sizes = [4, 16, 24], strides = [1, 1, 1]} : vector<4x20x24xbf16> to vector<4x16x24xbf16>
    %171 = vector.shape_cast %170 : vector<4x16x24xbf16> to vector<64x24xbf16>
    %172 = tpu.concatenate %165, %167, %169, %171 in 0 : vector<64x24xbf16>, vector<64x24xbf16>, vector<64x24xbf16>, vector<64x24xbf16> -> vector<256x24xbf16>
    %c0_100 = arith.constant 0 : index
    %c0_101 = arith.constant 0 : index
    %173 = vector.load %arg7[%c0_100, %c0_101] : memref<24x8xbf16, #tpu.memory_space<vmem>>, vector<24x8xbf16>
    %cst_102 = arith.constant dense<0.000000e+00> : vector<256x8xf32>
    %174 = tpu.matmul %150, %173, %cst_102 {dimension_numbers = #tpu.dot_dimension_numbers<[1], [0], [0], [1], [0, 0, 1, 1], [], []>} : vector<256x24xbf16>, vector<24x8xbf16>, vector<256x8xf32> -> vector<256x8xf32>
    %c0_103 = arith.constant 0 : index
    %c0_104 = arith.constant 0 : index
    %175 = vector.load %arg8[%c0_103, %c0_104] : memref<28x8xbf16, #tpu.memory_space<vmem>>, vector<28x8xbf16>
    %cst_105 = arith.constant dense<0.000000e+00> : vector<256x8xf32>
    %176 = tpu.matmul %163, %175, %cst_105 {dimension_numbers = #tpu.dot_dimension_numbers<[1], [0], [0], [1], [0, 0, 1, 1], [], []>} : vector<256x28xbf16>, vector<28x8xbf16>, vector<256x8xf32> -> vector<256x8xf32>
    %177 = arith.addf %174, %176 : vector<256x8xf32>
    %c0_106 = arith.constant 0 : index
    %c0_107 = arith.constant 0 : index
    %178 = vector.load %arg9[%c0_106, %c0_107] : memref<24x8xbf16, #tpu.memory_space<vmem>>, vector<24x8xbf16>
    %cst_108 = arith.constant dense<0.000000e+00> : vector<256x8xf32>
    %179 = tpu.matmul %172, %178, %cst_108 {dimension_numbers = #tpu.dot_dimension_numbers<[1], [0], [0], [1], [0, 0, 1, 1], [], []>} : vector<256x24xbf16>, vector<24x8xbf16>, vector<256x8xf32> -> vector<256x8xf32>
    %180 = arith.addf %177, %179 : vector<256x8xf32>
    %c0_109 = arith.constant 0 : index
    %c0_110 = arith.constant 0 : index
    %181 = vector.load %arg10[%c0_109, %c0_110] : memref<1x8xf32, #tpu.memory_space<vmem>>, vector<1x8xf32>
    %182 = vector.shape_cast %181 : vector<1x8xf32> to vector<8xf32>
    %183 = vector.shape_cast %182 : vector<8xf32> to vector<1x8xf32>
    %184 = vector.broadcast %183 : vector<1x8xf32> to vector<256x8xf32>
    %185 = arith.addf %180, %184 : vector<256x8xf32>
    %186 = vector.shape_cast %185 : vector<256x8xf32> to vector<4x4x16x8xf32>
    %c0_111 = arith.constant 0 : index
    %c0_112 = arith.constant 0 : index
    %c0_113 = arith.constant 0 : index
    %c0_114 = arith.constant 0 : index
    %c0_115 = arith.constant 0 : index
    %187 = vector.load %arg11[%c0_111, %c0_112, %c0_113, %c0_114, %c0_115] : memref<1x4x4x16x8xf32, #tpu.memory_space<vmem>>, vector<1x4x4x16x8xf32>
    %188 = vector.shape_cast %187 : vector<1x4x4x16x8xf32> to vector<4x4x16x8xf32>
    %189 = vector.shape_cast %186 : vector<4x4x16x8xf32> to vector<1x4x4x16x8xf32>
    tpu.vector_store %arg11[%c0_111, %c0_112, %c0_113, %c0_114, %c0_115], %189 {strides = array<i32>} : memref<1x4x4x16x8xf32, #tpu.memory_space<vmem>>, vector<1x4x4x16x8xf32>,
    return
  }
  func.func @transform_0(%arg0: i32, %arg1: i32) -> (i32, i32, i32, i32) {
    %c0_i32 = arith.constant 0 : i32
    %c0_i32_0 = arith.constant 0 : i32
    %c0_i32_1 = arith.constant 0 : i32
    %c0_i32_2 = arith.constant 0 : i32
    return %arg0, %c0_i32, %c0_i32_0, %c0_i32_1 : i32, i32, i32, i32
  }
  func.func @transform_1(%arg0: i32, %arg1: i32) -> (i32, i32) {
    %c0_i32 = arith.constant 0 : i32
    %c0_i32_0 = arith.constant 0 : i32
    %c0_i32_1 = arith.constant 0 : i32
    return %c0_i32, %c0_i32_0 : i32, i32
  }
  func.func @transform_2(%arg0: i32, %arg1: i32) -> (i32, i32) {
    %c0_i32 = arith.constant 0 : i32
    %c0_i32_0 = arith.constant 0 : i32
    %c0_i32_1 = arith.constant 0 : i32
    return %c0_i32, %c0_i32_0 : i32, i32
  }
  func.func @transform_3(%arg0: i32, %arg1: i32) -> (i32, i32, i32) {
    %c0_i32 = arith.constant 0 : i32
    %c0_i32_0 = arith.constant 0 : i32
    %c0_i32_1 = arith.constant 0 : i32
    %c0_i32_2 = arith.constant 0 : i32
    return %c0_i32, %c0_i32_0, %c0_i32_1 : i32, i32, i32
  }
  func.func @transform_4(%arg0: i32, %arg1: i32) -> (i32, i32) {
    %c0_i32 = arith.constant 0 : i32
    %c0_i32_0 = arith.constant 0 : i32
    %c0_i32_1 = arith.constant 0 : i32
    return %c0_i32, %c0_i32_0 : i32, i32
  }
  func.func @transform_5(%arg0: i32, %arg1: i32) -> (i32, i32) {
    %c0_i32 = arith.constant 0 : i32
    %c0_i32_0 = arith.constant 0 : i32
    %c0_i32_1 = arith.constant 0 : i32
    return %c0_i32, %c0_i32_0 : i32, i32
  }
  func.func @transform_6(%arg0: i32, %arg1: i32) -> (i32, i32) {
    %c0_i32 = arith.constant 0 : i32
    %c0_i32_0 = arith.constant 0 : i32
    %c0_i32_1 = arith.constant 0 : i32
    return %c0_i32, %c0_i32_0 : i32, i32
  }
  func.func @transform_7(%arg0: i32, %arg1: i32) -> (i32, i32) {
    %c0_i32 = arith.constant 0 : i32
    %c0_i32_0 = arith.constant 0 : i32
    %c0_i32_1 = arith.constant 0 : i32
    return %c0_i32, %c0_i32_0 : i32, i32
  }
  func.func @transform_8(%arg0: i32, %arg1: i32) -> (i32, i32) {
    %c0_i32 = arith.constant 0 : i32
    %c0_i32_0 = arith.constant 0 : i32
    %c0_i32_1 = arith.constant 0 : i32
    return %c0_i32, %c0_i32_0 : i32, i32
  }
  func.func @transform_9(%arg0: i32, %arg1: i32) -> (i32, i32, i32, i32, i32) {
    %c0_i32 = arith.constant 0 : i32
    %c0_i32_0 = arith.constant 0 : i32
    %c0_i32_1 = arith.constant 0 : i32
    %c0_i32_2 = arith.constant 0 : i32
    return %arg0, %c0_i32, %arg1, %c0_i32_0, %c0_i32_1 : i32, i32, i32, i32, i32
  }
}

</mosaic_0001>

<llo_original>
// kernel: res_block_generator.1
$region0: #{res_block_generator.1}
  #allocation0 [shape = 'u32[]', space=smem, size = 0x4, offset = 0x4, fixed_abs, tag = 'smem constant byte address 0x4 - core index']
  #allocation1 [shape = 'u32[144,128]{1,0:T(1,128)}', space=vmem, size = 0x12000, scoped, tag = 'internal scratch']
  #allocation2 [shape = 'bf16[8,20,4]{2,1,0:T(8,128)(2,1)}', space=vmem, size = 0xc000, scoped, tag = 'scratch operand']
  #allocation3 [shape = 'bf16[6,20,8]{2,1,0:T(8,128)(2,1)}', space=vmem, size = 0x9000, scoped, tag = 'scratch operand']
  #allocation4 [shape = 'bf16[6,20,8]{2,1,0:T(8,128)(2,1)}', space=vmem, size = 0x9000, scoped, tag = 'scratch operand']
  #allocation5 [shape = 'bf16[6,20,8]{2,1,0:T(8,128)(2,1)}', space=vmem, size = 0x9000, scoped, tag = 'scratch operand']
  #allocation6 [shape = 'bf16[6,20,8]{2,1,0:T(8,128)(2,1)}', space=vmem, size = 0x9000, scoped, tag = 'scratch operand']
  %s0 = inlined_call_operand.vmem [shape: f32[2,20,16,4], index: 0, kind: input, shape index: {}]
  %s1 = inlined_call_operand.vmem [shape: f32[1,4], index: 1, kind: input, shape index: {}]
  %s2 = inlined_call_operand.vmem [shape: f32[1,4], index: 2, kind: input, shape index: {}]
  %s3 = inlined_call_operand.vmem [shape: bf16[4,16,8], index: 3, kind: input, shape index: {}]
  %s4 = inlined_call_operand.vmem [shape: f32[1,8], index: 4, kind: input, shape index: {}]
  %s5 = inlined_call_operand.vmem [shape: bf16[24,8], index: 5, kind: input, shape index: {}]
  %s6 = inlined_call_operand.vmem [shape: bf16[28,8], index: 6, kind: input, shape index: {}]
  %s7 = inlined_call_operand.vmem [shape: bf16[24,8], index: 7, kind: input, shape index: {}]
  %s8 = inlined_call_operand.vmem [shape: f32[1,8], index: 8, kind: input, shape index: {}]
  %s9 = inlined_call_operand.vmem [shape: f32[2,4,16,16,8], index: 9, kind: output, shape index: {}]
  %s10 = sld [smem:[#allocation0]]
  $region119: #{res_block_generator.1} parent=0
    _
  %s12 = ssub.s32 1, %s10
  %s13 = scalar_select 0, %s12, %s10
  $region1: #{res_block_generator.1} parent=0
    #allocation7 [shape = 'u8[262144]{0}', space=vmem, size = 0x40000, scoped, tag = 'output window, operand 0']
    loop: start=0, step=1, limit=10
    $region2: #{res_block_generator.1} parent=1 // loop_pre_header
      _
    $region3: #{res_block_generator.1} parent=1 // loop_header
      %s15 = sphi 0, %s19
      %p16 = scmp.ge.s32.totalorder %s15, 10
      %s22 = sphi 0, %s34
      %s23 = sphi 0, %s30
      %s24 = sphi 0, %s22
      %s25 = sphi 0, %s23
      %s26 = sphi 0, %s24
      %s27 = sphi 0, %s25
      %s37 = sphi 0, %s39
      %s40 = sphi 0, %s37
      %s41 = sphi 0, %s40
      %s57 = sphi 0, %s41
      %s61 = sphi 0, %s61
      %s63 = sphi 0, %s61
      %s64 = sphi 0, %s63
      %s78 = sphi 0, %s64
      %s82 = sphi 0, %s82
      %s84 = sphi 0, %s82
      %s85 = sphi 0, %s84
      %s99 = sphi 0, %s85
      %s103 = sphi 0, %s103
      %s105 = sphi 0, %s103
      %s106 = sphi 0, %s105
      %s120 = sphi 0, %s106
      %s124 = sphi 0, %s124
      %s126 = sphi 0, %s124
      %s127 = sphi 0, %s126
      %s141 = sphi 0, %s127
      %s145 = sphi 0, %s145
      %s147 = sphi 0, %s145
      %s148 = sphi 0, %s147
      %s162 = sphi 0, %s148
      %s166 = sphi 0, %s166
      %s168 = sphi 0, %s166
      %s169 = sphi 0, %s168
      %s183 = sphi 0, %s169
      %s187 = sphi 0, %s187
      %s189 = sphi 0, %s187
      %s190 = sphi 0, %s189
      %s204 = sphi 0, %s190
      %s208 = sphi 0, %s208
      %s210 = sphi 0, %s208
      %s211 = sphi 0, %s210
      %s225 = sphi 0, %s211
      %s233 = sphi 0, %s235
      %s236 = sphi 0, %s233
      %s237 = sphi 0, %s236
      %s253 = sphi 0, %s237
    $region4: #{res_block_generator.1} parent=1 // loop_header_branch
      %18 = sbr.rel (%p16) target = $region8
    $region5: #{res_block_generator.1} parent=1 // loop_body
      %s20 = ssub.s32 %s15, 1
      %s21 = ssub.s32 %s15, 2
      %s28 = sadd.s32 1, %s23
      %p29 = scmp.ge.s32.totalorder %s28, 4
      %s30 = scalar_select %p29, 0, %s28
      %s31 = sadd.s32 1, %s22
      %s32 = scalar_select %p29, %s31, %s22
      %p33 = scmp.ge.s32.totalorder %s32, 2
      %s34 = scalar_select %p33, 0, %s32
      %s35 = ssub.s32 %s22, %s34
      %p36 = scmp.eq.s32.totalorder %s35, 0
      %s38 = sadd.s32 %s37, 1
      %s39 = scalar_select %p36, %s37, %s38
      %p42 = pneg %p36
      %p43 = scmp.eq.s32.totalorder %s15, 7
      %p44 = por %p42, %p43
      %p45 = scmp.ne.s32.totalorder %s37, %s40
      %p46 = scmp.eq.s32.totalorder %s15, 0
      %p47 = por %p45, %p46
      %p48 = scmp.ne.s32.totalorder %s37, %s40
      %p49 = scmp.eq.s32.totalorder %s20, 7
      %p50 = por %p48, %p49
      %p51 = scmp.ne.s32.totalorder %s40, %s41
      %p52 = scmp.eq.s32.totalorder %s20, 0
      %p53 = por %p51, %p52
      %p54 = scmp.ne.s32.totalorder %s40, %s41
      %p55 = scmp.eq.s32.totalorder %s21, 7
      %p56 = por %p54, %p55
      %p58 = scmp.ne.s32.totalorder %s41, %s57
      %p59 = scmp.eq.s32.totalorder %s21, 0
      %p60 = por %p58, %p59
      %s62 = sadd.s32 %s61, 1
      %p65 = scmp.eq.s32.totalorder %s15, 7
      %p66 = scmp.ne.s32.totalorder %s61, %s63
      %p67 = scmp.eq.s32.totalorder %s15, 0
      %p68 = por %p66, %p67
      %p69 = scmp.ne.s32.totalorder %s61, %s63
      %p70 = scmp.eq.s32.totalorder %s20, 7
      %p71 = por %p69, %p70
      %p72 = scmp.ne.s32.totalorder %s63, %s64
      %p73 = scmp.eq.s32.totalorder %s20, 0
      %p74 = por %p72, %p73
      %p75 = scmp.ne.s32.totalorder %s63, %s64
      %p76 = scmp.eq.s32.totalorder %s21, 7
      %p77 = por %p75, %p76
      %p79 = scmp.ne.s32.totalorder %s64, %s78
      %p80 = scmp.eq.s32.totalorder %s21, 0
      %p81 = por %p79, %p80
      %s83 = sadd.s32 %s82, 1
      %p86 = scmp.eq.s32.totalorder %s15, 7
      %p87 = scmp.ne.s32.totalorder %s82, %s84
      %p88 = scmp.eq.s32.totalorder %s15, 0
      %p89 = por %p87, %p88
      %p90 = scmp.ne.s32.totalorder %s82, %s84
      %p91 = scmp.eq.s32.totalorder %s20, 7
      %p92 = por %p90, %p91
      %p93 = scmp.ne.s32.totalorder %s84, %s85
      %p94 = scmp.eq.s32.totalorder %s20, 0
      %p95 = por %p93, %p94
      %p96 = scmp.ne.s32.totalorder %s84, %s85
      %p97 = scmp.eq.s32.totalorder %s21, 7
      %p98 = por %p96, %p97
      %p100 = scmp.ne.s32.totalorder %s85, %s99
      %p101 = scmp.eq.s32.totalorder %s21, 0
      %p102 = por %p100, %p101
      %s104 = sadd.s32 %s103, 1
      %p107 = scmp.eq.s32.totalorder %s15, 7
      %p108 = scmp.ne.s32.totalorder %s103, %s105
      %p109 = scmp.eq.s32.totalorder %s15, 0
      %p110 = por %p108, %p109
      %p111 = scmp.ne.s32.totalorder %s103, %s105
      %p112 = scmp.eq.s32.totalorder %s20, 7
      %p113 = por %p111, %p112
      %p114 = scmp.ne.s32.totalorder %s105, %s106
      %p115 = scmp.eq.s32.totalorder %s20, 0
      %p116 = por %p114, %p115
      %p117 = scmp.ne.s32.totalorder %s105, %s106
      %p118 = scmp.eq.s32.totalorder %s21, 7
      %p119 = por %p117, %p118
      %p121 = scmp.ne.s32.totalorder %s106, %s120
      %p122 = scmp.eq.s32.totalorder %s21, 0
      %p123 = por %p121, %p122
      %s125 = sadd.s32 %s124, 1
      %p128 = scmp.eq.s32.totalorder %s15, 7
      %p129 = scmp.ne.s32.totalorder %s124, %s126
      %p130 = scmp.eq.s32.totalorder %s15, 0
      %p131 = por %p129, %p130
      %p132 = scmp.ne.s32.totalorder %s124, %s126
      %p133 = scmp.eq.s32.totalorder %s20, 7
      %p134 = por %p132, %p133
      %p135 = scmp.ne.s32.totalorder %s126, %s127
      %p136 = scmp.eq.s32.totalorder %s20, 0
      %p137 = por %p135, %p136
      %p138 = scmp.ne.s32.totalorder %s126, %s127
      %p139 = scmp.eq.s32.totalorder %s21, 7
      %p140 = por %p138, %p139
      %p142 = scmp.ne.s32.totalorder %s127, %s141
      %p143 = scmp.eq.s32.totalorder %s21, 0
      %p144 = por %p142, %p143
      %s146 = sadd.s32 %s145, 1
      %p149 = scmp.eq.s32.totalorder %s15, 7
      %p150 = scmp.ne.s32.totalorder %s145, %s147
      %p151 = scmp.eq.s32.totalorder %s15, 0
      %p152 = por %p150, %p151
      %p153 = scmp.ne.s32.totalorder %s145, %s147
      %p154 = scmp.eq.s32.totalorder %s20, 7
      %p155 = por %p153, %p154
      %p156 = scmp.ne.s32.totalorder %s147, %s148
      %p157 = scmp.eq.s32.totalorder %s20, 0
      %p158 = por %p156, %p157
      %p159 = scmp.ne.s32.totalorder %s147, %s148
      %p160 = scmp.eq.s32.totalorder %s21, 7
      %p161 = por %p159, %p160
      %p163 = scmp.ne.s32.totalorder %s148, %s162
      %p164 = scmp.eq.s32.totalorder %s21, 0
      %p165 = por %p163, %p164
      %s167 = sadd.s32 %s166, 1
      %p170 = scmp.eq.s32.totalorder %s15, 7
      %p171 = scmp.ne.s32.totalorder %s166, %s168
      %p172 = scmp.eq.s32.totalorder %s15, 0
      %p173 = por %p171, %p172
      %p174 = scmp.ne.s32.totalorder %s166, %s168
      %p175 = scmp.eq.s32.totalorder %s20, 7
      %p176 = por %p174, %p175
      %p177 = scmp.ne.s32.totalorder %s168, %s169
      %p178 = scmp.eq.s32.totalorder %s20, 0
      %p179 = por %p177, %p178
      %p180 = scmp.ne.s32.totalorder %s168, %s169
      %p181 = scmp.eq.s32.totalorder %s21, 7
      %p182 = por %p180, %p181
      %p184 = scmp.ne.s32.totalorder %s169, %s183
      %p185 = scmp.eq.s32.totalorder %s21, 0
      %p186 = por %p184, %p185
      %s188 = sadd.s32 %s187, 1
      %p191 = scmp.eq.s32.totalorder %s15, 7
      %p192 = scmp.ne.s32.totalorder %s187, %s189
      %p193 = scmp.eq.s32.totalorder %s15, 0
      %p194 = por %p192, %p193
      %p195 = scmp.ne.s32.totalorder %s187, %s189
      %p196 = scmp.eq.s32.totalorder %s20, 7
      %p197 = por %p195, %p196
      %p198 = scmp.ne.s32.totalorder %s189, %s190
      %p199 = scmp.eq.s32.totalorder %s20, 0
      %p200 = por %p198, %p199
      %p201 = scmp.ne.s32.totalorder %s189, %s190
      %p202 = scmp.eq.s32.totalorder %s21, 7
      %p203 = por %p201, %p202
      %p205 = scmp.ne.s32.totalorder %s190, %s204
      %p206 = scmp.eq.s32.totalorder %s21, 0
      %p207 = por %p205, %p206
      %s209 = sadd.s32 %s208, 1
      %p212 = scmp.eq.s32.totalorder %s15, 7
      %p213 = scmp.ne.s32.totalorder %s208, %s210
      %p214 = scmp.eq.s32.totalorder %s15, 0
      %p215 = por %p213, %p214
      %p216 = scmp.ne.s32.totalorder %s208, %s210
      %p217 = scmp.eq.s32.totalorder %s20, 7
      %p218 = por %p216, %p217
      %p219 = scmp.ne.s32.totalorder %s210, %s211
      %p220 = scmp.eq.s32.totalorder %s20, 0
      %p221 = por %p219, %p220
      %p222 = scmp.ne.s32.totalorder %s210, %s211
      %p223 = scmp.eq.s32.totalorder %s21, 7
      %p224 = por %p222, %p223
      %p226 = scmp.ne.s32.totalorder %s211, %s225
      %p227 = scmp.eq.s32.totalorder %s21, 0
      %p228 = por %p226, %p227
      %s229 = ssub.s32 %s22, %s34
      %s230 = ssub.s32 %s23, %s30
      %s231 = sor.u32 %s229, %s230
      %p232 = scmp.eq.s32.totalorder %s231, 0
      %s234 = sadd.s32 %s233, 1
      %s235 = scalar_select %p232, %s233, %s234
      %p238 = pneg %p232
      %p239 = scmp.eq.s32.totalorder %s15, 7
      %p240 = por %p238, %p239
      %p241 = scmp.ne.s32.totalorder %s233, %s236
      %p242 = scmp.eq.s32.totalorder %s15, 0
      %p243 = por %p241, %p242
      %p244 = scmp.ne.s32.totalorder %s233, %s236
      %p245 = scmp.eq.s32.totalorder %s20, 7
      %p246 = por %p244, %p245
      %p247 = scmp.ne.s32.totalorder %s236, %s237
      %p248 = scmp.eq.s32.totalorder %s20, 0
      %p249 = por %p247, %p248
      %p250 = scmp.ne.s32.totalorder %s236, %s237
      %p251 = scmp.eq.s32.totalorder %s21, 7
      %p252 = por %p250, %p251
      %p254 = scmp.ne.s32.totalorder %s237, %s253
      %p255 = scmp.eq.s32.totalorder %s21, 0
      %p256 = por %p254, %p255
      %p257 = scmp.le.s32.totalorder 1, %s15
      %p258 = scmp.lt.s32.totalorder %s15, 9
      %p259 = pnand %p257, %p258
      %p260 = pneg %p259
      // Predicated region
      $region9: #{res_block_generator.1} parent=5 // pred_check
        _
      $region10: #{res_block_generator.1} parent=5 // pred_check_branch
        %262 = sbr.rel (%p259) target = $region12
      $region11: #{res_block_generator.1} parent=5 // pred_region
        %s263 = ssub.s32 %s15, 1
        // Predicated region
        $region13: #{res_block_generator.1} parent=11 // pred_check
          %p264 = pneg %p74
        $region14: #{res_block_generator.1} parent=11 // pred_check_branch
          %266 = sbr.rel (%p264) target = $region16
        $region15: #{res_block_generator.1} parent=11 // pred_region
          _
        $region16: #{res_block_generator.1} parent=11 // pred_fallthru
          _
        // Predicated region
        $region17: #{res_block_generator.1} parent=11 // pred_check
          %p267 = pneg %p95
        $region18: #{res_block_generator.1} parent=11 // pred_check_branch
          %269 = sbr.rel (%p267) target = $region20
        $region19: #{res_block_generator.1} parent=11 // pred_region
          _
        $region20: #{res_block_generator.1} parent=11 // pred_fallthru
          _
        // Predicated region
        $region21: #{res_block_generator.1} parent=11 // pred_check
          %p270 = pneg %p116
        $region22: #{res_block_generator.1} parent=11 // pred_check_branch
          %272 = sbr.rel (%p270) target = $region24
        $region23: #{res_block_generator.1} parent=11 // pred_region
          _
        $region24: #{res_block_generator.1} parent=11 // pred_fallthru
          _
        // Predicated region
        $region25: #{res_block_generator.1} parent=11 // pred_check
          %p273 = pneg %p137
        $region26: #{res_block_generator.1} parent=11 // pred_check_branch
          %275 = sbr.rel (%p273) target = $region28
        $region27: #{res_block_generator.1} parent=11 // pred_region
          _
        $region28: #{res_block_generator.1} parent=11 // pred_fallthru
          _
        // Predicated region
        $region29: #{res_block_generator.1} parent=11 // pred_check
          %p276 = pneg %p158
        $region30: #{res_block_generator.1} parent=11 // pred_check_branch
          %278 = sbr.rel (%p276) target = $region32
        $region31: #{res_block_generator.1} parent=11 // pred_region
          _
        $region32: #{res_block_generator.1} parent=11 // pred_fallthru
          _
        // Predicated region
        $region33: #{res_block_generator.1} parent=11 // pred_check
          %p279 = pneg %p179
        $region34: #{res_block_generator.1} parent=11 // pred_check_branch
          %281 = sbr.rel (%p279) target = $region36
        $region35: #{res_block_generator.1} parent=11 // pred_region
          _
        $region36: #{res_block_generator.1} parent=11 // pred_fallthru
          _
        // Predicated region
        $region37: #{res_block_generator.1} parent=11 // pred_check
          %p282 = pneg %p200
        $region38: #{res_block_generator.1} parent=11 // pred_check_branch
          %284 = sbr.rel (%p282) target = $region40
        $region39: #{res_block_generator.1} parent=11 // pred_region
          _
        $region40: #{res_block_generator.1} parent=11 // pred_fallthru
          _
        // Predicated region
        $region41: #{res_block_generator.1} parent=11 // pred_check
          %p285 = pneg %p221
        $region42: #{res_block_generator.1} parent=11 // pred_check_branch
          %287 = sbr.rel (%p285) target = $region44
        $region43: #{res_block_generator.1} parent=11 // pred_region
          _
        $region44: #{res_block_generator.1} parent=11 // pred_fallthru
          _
      $region12: #{res_block_generator.1} parent=5 // pred_fallthru
        _
      %p288 = scmp.lt.s32.totalorder %s15, 8
      // Predicated region
      $region45: #{res_block_generator.1} parent=5 // pred_check
        %p289 = pneg %p288
      $region46: #{res_block_generator.1} parent=5 // pred_check_branch
        %291 = sbr.rel (%p289) target = $region48
      $region47: #{res_block_generator.1} parent=5 // pred_region
        // Predicated region
        $region49: #{res_block_generator.1} parent=47 // pred_check
          %p292 = pneg %p47
        $region50: #{res_block_generator.1} parent=47 // pred_check_branch
          %294 = sbr.rel (%p292) target = $region52
        $region51: #{res_block_generator.1} parent=47 // pred_region
          %p295 = scmp.lt.s32.totalorder %s22, 1
          %s296 = scalar_select %p295, %s22, 1
          %s297 = smul.addr %s296, 40
          %s298 = smul.addr %s297, 8
          %s299 = scalar_lea.vmem %s0, %s298
        $region52: #{res_block_generator.1} parent=47 // pred_fallthru
          _
      $region48: #{res_block_generator.1} parent=5 // pred_fallthru
        _
      %p300 = scmp.le.s32.totalorder 1, %s15
      %p301 = scmp.lt.s32.totalorder %s15, 9
      %p302 = pnand %p300, %p301
      %p303 = pneg %p302
      // Predicated region
      $region53: #{res_block_generator.1} parent=5 // pred_check
        _
      $region54: #{res_block_generator.1} parent=5 // pred_check_branch
        %305 = sbr.rel (%p302) target = $region56
      $region55: #{res_block_generator.1} parent=5 // pred_region
        %s306 = ssub.s32 %s15, 1
        %p307 = scmp.lt.s32.totalorder %s24, 1
        %s308 = scalar_select %p307, %s24, 1
        %s309 = smul.addr %s308, 40
        %s310 = smul.addr %s309, 8
        %s311 = scalar_lea.vmem %s0, %s310
        %p312 = pneg %p53
        %p313 = pneg %p50
        %p314 = pneg %p74
        %p315 = pneg %p71
        %p316 = pneg %p95
        %p317 = pneg %p92
        %p318 = pneg %p116
        %p319 = pneg %p113
        %p320 = pneg %p137
        %p321 = pneg %p134
        %p322 = pneg %p158
        %p323 = pneg %p155
        %p324 = pneg %p179
        %p325 = pneg %p176
        %p326 = pneg %p200
        %p327 = pneg %p197
        %p328 = pneg %p221
        %p329 = pneg %p218
        %p330 = pneg %p249
        %p331 = pneg %p246
        %s332 = sand.u32 %s236, 1
        %s333 = sand.u32 %s236, 1
        %s334 = smul.addr %s333, 256
        %s335 = scalar_lea.vmem [#allocation7], %s334
        %p336 = scmp.lt.s32.totalorder %s24, 1
        %s337 = scalar_select %p336, %s24, 1
        %s338 = smul.addr %s337, 40
        %s339 = smul.addr %s338, 8
        %s340 = scalar_lea.vmem %s0, %s339
        %s341 = smul.u32 4, %s25
        %s343 = smul.u32 %s25, 4
        %s344 = smul.u32 %s343, 16
        %s345 = scalar_lea.vmem %s340, %s344
        %v346 = vld [vmem:[%s345] sm:$0xff]
        %v347 = vld [vmem:[%s345 + $0x8] sm:$0xff]
        %v348 = vld [vmem:[%s345 + $0x10] sm:$0xff]
        %v349 = vld [vmem:[%s345 + $0x18] sm:$0xff]
        %v350 = vld [vmem:[%s345 + $0x20] sm:$0xff]
        %v351 = vld [vmem:[%s345 + $0x28] sm:$0xff]
        %v352 = vld [vmem:[%s345 + $0x30] sm:$0xff]
        %v353 = vld [vmem:[%s345 + $0x38] sm:$0xff]
        %v354 = vld [vmem:[%s345 + $0x40] sm:$0xff]
        %v355 = vld [vmem:[%s345 + $0x48] sm:$0xff]
        %v356 = vld [vmem:[%s345 + $0x50] sm:$0xff]
        %v357 = vld [vmem:[%s345 + $0x58] sm:$0xff]
        %v358 = vld [vmem:[%s345 + $0x60] sm:$0xff]
        %v359 = vld [vmem:[%s345 + $0x68] sm:$0xff]
        %v360 = vld [vmem:[%s345 + $0x70] sm:$0xff]
        %v361 = vld [vmem:[%s345 + $0x78] sm:$0xff]
        %v362 = vld [vmem:[%s1] sm:$0x1]
        %v364 = vlaneseq
        %v365 = vshrl.u32 %v364, 7
        %v366 = vsub.s32 0, %v365
        %v367 = vrot.slane %v362, %v366
        %v369 = vmul.f32 %v346, %v367
        %v370 = vmul.f32 %v347, %v367
        %v371 = vmul.f32 %v348, %v367
        %v372 = vmul.f32 %v349, %v367
        %v373 = vmul.f32 %v350, %v367
        %v374 = vmul.f32 %v351, %v367
        %v375 = vmul.f32 %v352, %v367
        %v376 = vmul.f32 %v353, %v367
        %v377 = vmul.f32 %v354, %v367
        %v378 = vmul.f32 %v355, %v367
        %v379 = vmul.f32 %v356, %v367
        %v380 = vmul.f32 %v357, %v367
        %v381 = vmul.f32 %v358, %v367
        %v382 = vmul.f32 %v359, %v367
        %v383 = vmul.f32 %v360, %v367
        %v384 = vmul.f32 %v361, %v367
        %v385 = vld [vmem:[%s2] sm:$0x1]
        %v387 = vlaneseq
        %v388 = vshrl.u32 %v387, 7
        %v389 = vsub.s32 0, %v388
        %v390 = vrot.slane %v385, %v389
        %v392 = vadd.f32 %v369, %v390
        %v393 = vadd.f32 %v370, %v390
        %v394 = vadd.f32 %v371, %v390
        %v395 = vadd.f32 %v372, %v390
        %v396 = vadd.f32 %v373, %v390
        %v397 = vadd.f32 %v374, %v390
        %v398 = vadd.f32 %v375, %v390
        %v399 = vadd.f32 %v376, %v390
        %v400 = vadd.f32 %v377, %v390
        %v401 = vadd.f32 %v378, %v390
        %v402 = vadd.f32 %v379, %v390
        %v403 = vadd.f32 %v380, %v390
        %v404 = vadd.f32 %v381, %v390
        %v405 = vadd.f32 %v382, %v390
        %v406 = vadd.f32 %v383, %v390
        %v407 = vadd.f32 %v384, %v390
        %v408 = vmax.f32 %v392, 0.0
        %v409 = vmax.f32 %v393, 0.0
        %v410 = vmax.f32 %v394, 0.0
        %v411 = vmax.f32 %v395, 0.0
        %v412 = vmax.f32 %v396, 0.0
        %v413 = vmax.f32 %v397, 0.0
        %v414 = vmax.f32 %v398, 0.0
        %v415 = vmax.f32 %v399, 0.0
        %v416 = vmax.f32 %v400, 0.0
        %v417 = vmax.f32 %v401, 0.0
        %v418 = vmax.f32 %v402, 0.0
        %v419 = vmax.f32 %v403, 0.0
        %v420 = vmax.f32 %v404, 0.0
        %v421 = vmax.f32 %v405, 0.0
        %v422 = vmax.f32 %v406, 0.0
        %v423 = vmax.f32 %v407, 0.0
        %v424 = vpack.c.bf16 %v409, %v408
        %v425 = vpack.c.bf16 %v411, %v410
        %v426 = vpack.c.bf16 %v413, %v412
        %v427 = vpack.c.bf16 %v415, %v414
        %v428 = vpack.c.bf16 %v417, %v416
        %v429 = vpack.c.bf16 %v419, %v418
        %v430 = vpack.c.bf16 %v421, %v420
        %v431 = vpack.c.bf16 %v423, %v422
        %vm432 = vcmask 24576
        %433 = vst.msk [vmem:[#allocation2] sm:$0x1] %vm432, 0
        %434 = vst.msk [vmem:[#allocation2 + $0xc] sm:$0x1] %vm432, 0
        %435 = vst.msk [vmem:[#allocation2 + $0x18] sm:$0x1] %vm432, 0
        %436 = vst.msk [vmem:[#allocation2 + $0x24] sm:$0x1] %vm432, 0
        %437 = vst.msk [vmem:[#allocation2 + $0x30] sm:$0x1] %vm432, 0
        %438 = vst.msk [vmem:[#allocation2 + $0x3c] sm:$0x1] %vm432, 0
        %439 = vst.msk [vmem:[#allocation2 + $0x48] sm:$0x1] %vm432, 0
        %440 = vst.msk [vmem:[#allocation2 + $0x54] sm:$0x1] %vm432, 0
        %vm441 = vcmask 25601
        %442 = vst.msk [vmem:[#allocation2 + $0x8] sm:$0x2] %vm441, 0
        %443 = vst.msk [vmem:[#allocation2 + $0x14] sm:$0x2] %vm441, 0
        %444 = vst.msk [vmem:[#allocation2 + $0x20] sm:$0x2] %vm441, 0
        %445 = vst.msk [vmem:[#allocation2 + $0x2c] sm:$0x2] %vm441, 0
        %446 = vst.msk [vmem:[#allocation2 + $0x38] sm:$0x2] %vm441, 0
        %447 = vst.msk [vmem:[#allocation2 + $0x44] sm:$0x2] %vm441, 0
        %448 = vst.msk [vmem:[#allocation2 + $0x50] sm:$0x2] %vm441, 0
        %449 = vst.msk [vmem:[#allocation2 + $0x5c] sm:$0x2] %vm441, 0
        %v458 = vunpack.c.l.b16 %v424
        %v459 = vunpack.c.h.b16 %v424
        %v460 = vunpack.c.l.b16 %v425
        %v461 = vunpack.c.h.b16 %v425
        %v462 = vunpack.c.l.b16 %v426
        %v463 = vunpack.c.h.b16 %v426
        %v464 = vunpack.c.l.b16 %v427
        %v465 = vunpack.c.h.b16 %v427
        %v466 = vunpack.c.l.b16 %v428
        %v467 = vunpack.c.h.b16 %v428
        %v468 = vunpack.c.l.b16 %v429
        %v469 = vunpack.c.h.b16 %v429
        %v470 = vunpack.c.l.b16 %v430
        %v471 = vunpack.c.h.b16 %v430
        %v472 = vunpack.c.l.b16 %v431
        %v473 = vunpack.c.h.b16 %v431
        %v474 = vpack.c.b16 %v458, %v458
        %v475 = vpack.c.b16 %v459, %v459
        %v476 = vpack.c.b16 %v460, %v460
        %v477 = vpack.c.b16 %v461, %v461
        %v478 = vpack.c.b16 %v462, %v462
        %v479 = vpack.c.b16 %v463, %v463
        %v480 = vpack.c.b16 %v464, %v464
        %v481 = vpack.c.b16 %v465, %v465
        %v482 = vpack.c.b16 %v466, %v466
        %v483 = vpack.c.b16 %v467, %v467
        %v484 = vpack.c.b16 %v468, %v468
        %v485 = vpack.c.b16 %v469, %v469
        %v486 = vpack.c.b16 %v470, %v470
        %v487 = vpack.c.b16 %v471, %v471
        %v488 = vpack.c.b16 %v472, %v472
        %v489 = vpack.c.b16 %v473, %v473
        %vm490 = vcmask 1040384
        %vm491 = vcmask 1044484
        %vm492 = vmor %vm490, %vm491
        %v493 = vrot.slane %v474, 7
        %v494 = vrot.slane %v493, 4
        %v495 = vrot.slane %v475, 7
        %v496 = vsel %vm492, %v494, %v495
        %v497 = vrot.slane %v495, 4
        %v498 = vrot.slane %v476, 7
        %v499 = vrot.slane %v498, 4
        %v500 = vrot.slane %v477, 7
        %v501 = vsel %vm492, %v499, %v500
        %v502 = vrot.slane %v500, 4
        %v503 = vrot.slane %v478, 7
        %v504 = vrot.slane %v503, 4
        %v505 = vrot.slane %v479, 7
        %v506 = vsel %vm492, %v504, %v505
        %v507 = vrot.slane %v505, 4
        %v508 = vrot.slane %v480, 7
        %v509 = vrot.slane %v508, 4
        %v510 = vrot.slane %v481, 7
        %v511 = vsel %vm492, %v509, %v510
        %v512 = vrot.slane %v510, 4
        %v513 = vrot.slane %v482, 7
        %v514 = vrot.slane %v513, 4
        %v515 = vrot.slane %v483, 7
        %v516 = vsel %vm492, %v514, %v515
        %v517 = vrot.slane %v515, 4
        %v518 = vrot.slane %v484, 7
        %v519 = vrot.slane %v518, 4
        %v520 = vrot.slane %v485, 7
        %v521 = vsel %vm492, %v519, %v520
        %v522 = vrot.slane %v520, 4
        %v523 = vrot.slane %v486, 7
        %v524 = vrot.slane %v523, 4
        %v525 = vrot.slane %v487, 7
        %v526 = vsel %vm492, %v524, %v525
        %v527 = vrot.slane %v525, 4
        %v528 = vrot.slane %v488, 7
        %v529 = vrot.slane %v528, 4
        %v530 = vrot.slane %v489, 7
        %v531 = vsel %vm492, %v529, %v530
        %v532 = vrot.slane %v530, 4
        %vm557 = vcmask 27649
        %558 = vst.msk [vmem:[#allocation2] sm:$0xe] %vm557, %v493
        %vm559 = vcmask 27648
        %560 = vst.msk [vmem:[#allocation2 + $0x4] sm:$0xf] %vm559, %v496
        %561 = vst.msk [vmem:[#allocation2 + $0x8] sm:$0x1] %vm432, %v497
        %562 = vst.msk [vmem:[#allocation2 + $0xc] sm:$0xe] %vm557, %v498
        %563 = vst.msk [vmem:[#allocation2 + $0x10] sm:$0xf] %vm559, %v501
        %564 = vst.msk [vmem:[#allocation2 + $0x14] sm:$0x1] %vm432, %v502
        %565 = vst.msk [vmem:[#allocation2 + $0x18] sm:$0xe] %vm557, %v503
        %566 = vst.msk [vmem:[#allocation2 + $0x1c] sm:$0xf] %vm559, %v506
        %567 = vst.msk [vmem:[#allocation2 + $0x20] sm:$0x1] %vm432, %v507
        %568 = vst.msk [vmem:[#allocation2 + $0x24] sm:$0xe] %vm557, %v508
        %569 = vst.msk [vmem:[#allocation2 + $0x28] sm:$0xf] %vm559, %v511
        %570 = vst.msk [vmem:[#allocation2 + $0x2c] sm:$0x1] %vm432, %v512
        %571 = vst.msk [vmem:[#allocation2 + $0x30] sm:$0xe] %vm557, %v513
        %572 = vst.msk [vmem:[#allocation2 + $0x34] sm:$0xf] %vm559, %v516
        %573 = vst.msk [vmem:[#allocation2 + $0x38] sm:$0x1] %vm432, %v517
        %574 = vst.msk [vmem:[#allocation2 + $0x3c] sm:$0xe] %vm557, %v518
        %575 = vst.msk [vmem:[#allocation2 + $0x40] sm:$0xf] %vm559, %v521
        %576 = vst.msk [vmem:[#allocation2 + $0x44] sm:$0x1] %vm432, %v522
        %577 = vst.msk [vmem:[#allocation2 + $0x48] sm:$0xe] %vm557, %v523
        %578 = vst.msk [vmem:[#allocation2 + $0x4c] sm:$0xf] %vm559, %v526
        %579 = vst.msk [vmem:[#allocation2 + $0x50] sm:$0x1] %vm432, %v527
        %580 = vst.msk [vmem:[#allocation2 + $0x54] sm:$0xe] %vm557, %v528
        %581 = vst.msk [vmem:[#allocation2 + $0x58] sm:$0xf] %vm559, %v531
        %582 = vst.msk [vmem:[#allocation2 + $0x5c] sm:$0x1] %vm432, %v532
        %p583 = scmp.eq.s32.totalorder %s25, 0
        // Predicated region
        $region57: #{res_block_generator.1} parent=55 // pred_check
          %p584 = pneg %p583
        $region58: #{res_block_generator.1} parent=55 // pred_check_branch
          %586 = sbr.rel (%p584) target = $region60
        $region59: #{res_block_generator.1} parent=55 // pred_region
          %587 = vst.msk [vmem:[#allocation2] sm:$0xf] %vm559, 0
          %588 = vst.msk [vmem:[#allocation2 + $0x4] sm:$0xf] %vm559, 0
          %vm589 = vcmask 25600
          %590 = vst.msk [vmem:[#allocation2 + $0x8] sm:$0x3] %vm589, 0
          %591 = vst.msk [vmem:[#allocation2 + $0xc] sm:$0xf] %vm559, 0
          %592 = vst.msk [vmem:[#allocation2 + $0x10] sm:$0xf] %vm559, 0
          %593 = vst.msk [vmem:[#allocation2 + $0x14] sm:$0x3] %vm589, 0
        $region60: #{res_block_generator.1} parent=55 // pred_fallthru
          _
        %p594 = scmp.eq.s32.totalorder %s25, 3
        // Predicated region
        $region61: #{res_block_generator.1} parent=55 // pred_check
          %p595 = pneg %p594
        $region62: #{res_block_generator.1} parent=55 // pred_check_branch
          %597 = sbr.rel (%p595) target = $region64
        $region63: #{res_block_generator.1} parent=55 // pred_region
          %s598 = scalar_lea.vmem [#allocation2], 72
          %599 = vst.msk [vmem:[%s598] sm:$0xf] %vm559, 0
          %600 = vst.msk [vmem:[%s598 + $0x4] sm:$0xf] %vm559, 0
          %vm601 = vcmask 25600
          %602 = vst.msk [vmem:[%s598 + $0x8] sm:$0x3] %vm601, 0
          %603 = vst.msk [vmem:[%s598 + $0xc] sm:$0xf] %vm559, 0
          %604 = vst.msk [vmem:[%s598 + $0x10] sm:$0xf] %vm559, 0
          %605 = vst.msk [vmem:[%s598 + $0x14] sm:$0x3] %vm601, 0
        $region64: #{res_block_generator.1} parent=55 // pred_fallthru
          _
        %v606 = vld [vmem:[#allocation2] sm:$0xf]
        %v607 = vld [vmem:[#allocation2 + $0x4] sm:$0xf]
        %v608 = vld [vmem:[#allocation2 + $0x8] sm:$0x3]
        %v609 = vld [vmem:[#allocation2 + $0xc] sm:$0xf]
        %v610 = vld [vmem:[#allocation2 + $0x10] sm:$0xf]
        %v611 = vld [vmem:[#allocation2 + $0x14] sm:$0x3]
        %v612 = vld [vmem:[#allocation2 + $0x18] sm:$0xf]
        %v613 = vld [vmem:[#allocation2 + $0x1c] sm:$0xf]
        %v614 = vld [vmem:[#allocation2 + $0x20] sm:$0x3]
        %v615 = vld [vmem:[#allocation2 + $0x24] sm:$0xf]
        %v616 = vld [vmem:[#allocation2 + $0x28] sm:$0xf]
        %v617 = vld [vmem:[#allocation2 + $0x2c] sm:$0x3]
        %v618 = vld [vmem:[#allocation2 + $0x30] sm:$0xf]
        %v619 = vld [vmem:[#allocation2 + $0x34] sm:$0xf]
        %v620 = vld [vmem:[#allocation2 + $0x38] sm:$0x3]
        %v621 = vld [vmem:[#allocation2 + $0x3c] sm:$0xf]
        %v622 = vld [vmem:[#allocation2 + $0x40] sm:$0xf]
        %v623 = vld [vmem:[#allocation2 + $0x44] sm:$0x3]
        %v624 = vld [vmem:[#allocation2 + $0x48] sm:$0xf]
        %v625 = vld [vmem:[#allocation2 + $0x4c] sm:$0xf]
        %v626 = vld [vmem:[#allocation2 + $0x50] sm:$0x3]
        %v627 = vld [vmem:[#allocation2 + $0x54] sm:$0xf]
        %v628 = vld [vmem:[#allocation2 + $0x58] sm:$0xf]
        %v629 = vld [vmem:[#allocation2 + $0x5c] sm:$0x3]
        %v648 = vunpack.c.l.b16 %v606
        %v649 = vunpack.c.l.b16 %v607
        %v650 = vunpack.c.l.b16 %v608
        %v651 = vunpack.c.l.b16 %v609
        %v652 = vunpack.c.l.b16 %v610
        %v653 = vunpack.c.l.b16 %v611
        %v654 = vunpack.c.l.b16 %v612
        %v655 = vunpack.c.l.b16 %v613
        %v656 = vunpack.c.l.b16 %v614
        %v657 = vunpack.c.l.b16 %v615
        %v658 = vunpack.c.l.b16 %v616
        %v659 = vunpack.c.l.b16 %v617
        %v660 = vunpack.c.l.b16 %v618
        %v661 = vunpack.c.l.b16 %v619
        %v662 = vunpack.c.l.b16 %v620
        %v663 = vunpack.c.l.b16 %v621
        %v664 = vunpack.c.l.b16 %v622
        %v665 = vunpack.c.l.b16 %v623
        %v666 = vpack.c.b16 %v649, %v648
        %v667 = vpack.c.b16 %v650, %v650
        %v668 = vpack.c.b16 %v652, %v651
        %v669 = vpack.c.b16 %v653, %v653
        %v670 = vpack.c.b16 %v655, %v654
        %v671 = vpack.c.b16 %v656, %v656
        %v672 = vpack.c.b16 %v658, %v657
        %v673 = vpack.c.b16 %v659, %v659
        %v674 = vpack.c.b16 %v661, %v660
        %v675 = vpack.c.b16 %v662, %v662
        %v676 = vpack.c.b16 %v664, %v663
        %v677 = vpack.c.b16 %v665, %v665
        %v681 = vunpack.c.l.b16 %v624
        %v682 = vunpack.c.l.b16 %v625
        %v683 = vunpack.c.l.b16 %v626
        %v684 = vpack.c.b16 %v682, %v681
        %v685 = vpack.c.b16 %v683, %v683
        %686 = vrot.lane.b32.xlu0 %v668, 4
        %v687 = vpop.permute.xlu0 %686
        %688 = vrot.lane.b32.xlu0 %v669, 4
        %v689 = vpop.permute.xlu0 %688
        %690 = vrot.lane.b32.xlu0 %v670, 4
        %v691 = vpop.permute.xlu0 %690
        %692 = vrot.lane.b32.xlu0 %v671, 4
        %v693 = vpop.permute.xlu0 %692
        %694 = vrot.lane.b32.xlu0 %v672, 4
        %v695 = vpop.permute.xlu0 %694
        %696 = vrot.lane.b32.xlu0 %v673, 4
        %v697 = vpop.permute.xlu0 %696
        %698 = vrot.lane.b32.xlu0 %v674, 4
        %v699 = vpop.permute.xlu0 %698
        %700 = vrot.lane.b32.xlu0 %v675, 4
        %v701 = vpop.permute.xlu0 %700
        %702 = vrot.lane.b32.xlu0 %v676, 4
        %v703 = vpop.permute.xlu0 %702
        %704 = vrot.lane.b32.xlu0 %v677, 4
        %v705 = vpop.permute.xlu0 %704
        %706 = vrot.lane.b32.xlu0 %v684, 4
        %v707 = vpop.permute.xlu0 %706
        %708 = vrot.lane.b32.xlu0 %v685, 4
        %v709 = vpop.permute.xlu0 %708
        %vm710 = vcmask 31744
        %v713 = vsel %vm710, %v666, %v687
        %v716 = vsel %vm710, %v667, %v689
        %v719 = vsel %vm710, %v668, %v691
        %v722 = vsel %vm710, %v669, %v693
        %v725 = vsel %vm710, %v670, %v695
        %v728 = vsel %vm710, %v671, %v697
        %v731 = vsel %vm710, %v672, %v699
        %v734 = vsel %vm710, %v673, %v701
        %v737 = vsel %vm710, %v674, %v703
        %v740 = vsel %vm710, %v675, %v705
        %v743 = vsel %vm710, %v676, %v707
        %v746 = vsel %vm710, %v677, %v709
        %v750 = vunpack.c.l.b16 %v627
        %v751 = vunpack.c.l.b16 %v628
        %v752 = vunpack.c.l.b16 %v629
        %v753 = vpack.c.b16 %v751, %v750
        %v754 = vpack.c.b16 %v752, %v752
        %755 = vrot.lane.b32.xlu0 %v753, 4
        %v756 = vpop.permute.xlu0 %755
        %757 = vrot.lane.b32.xlu0 %v754, 4
        %v758 = vpop.permute.xlu0 %757
        %v761 = vsel %vm710, %v684, %v756
        %v764 = vsel %vm710, %v685, %v758
        %v765 = vld [vmem:[%s4] sm:$0x1]
        %vm766 = vsmask.f32 7424
        %v767 = vshrl.u32 %v713, 16
        %v769 = vshll.u32 %v713, 16
        %v771 = vrot.slane %v769, 1
        %v772 = vor.u32 %v767, %v771
        %v773 = vshll.u32 %v716, 16
        %v775 = vrot.slane %v773, 1
        %v776 = vsel %vm766, %v772, %v775
        %v777 = vshrl.u32 %v716, 16
        %v779 = vshrl.u32 %v719, 16
        %v781 = vshll.u32 %v719, 16
        %v783 = vrot.slane %v781, 1
        %v784 = vor.u32 %v779, %v783
        %v785 = vshll.u32 %v722, 16
        %v787 = vrot.slane %v785, 1
        %v788 = vsel %vm766, %v784, %v787
        %v789 = vshrl.u32 %v722, 16
        %v791 = vshrl.u32 %v725, 16
        %v793 = vshll.u32 %v725, 16
        %v795 = vrot.slane %v793, 1
        %v796 = vor.u32 %v791, %v795
        %v797 = vshll.u32 %v728, 16
        %v799 = vrot.slane %v797, 1
        %v800 = vsel %vm766, %v796, %v799
        %v801 = vshrl.u32 %v728, 16
        %v803 = vshrl.u32 %v731, 16
        %v805 = vshll.u32 %v731, 16
        %v807 = vrot.slane %v805, 1
        %v808 = vor.u32 %v803, %v807
        %v809 = vshll.u32 %v734, 16
        %v811 = vrot.slane %v809, 1
        %v812 = vsel %vm766, %v808, %v811
        %v813 = vshrl.u32 %v734, 16
        %v815 = vshrl.u32 %v737, 16
        %v817 = vshll.u32 %v737, 16
        %v819 = vrot.slane %v817, 1
        %v820 = vor.u32 %v815, %v819
        %v821 = vshll.u32 %v740, 16
        %v823 = vrot.slane %v821, 1
        %v824 = vsel %vm766, %v820, %v823
        %v825 = vshrl.u32 %v740, 16
        %v827 = vshrl.u32 %v743, 16
        %v829 = vshll.u32 %v743, 16
        %v831 = vrot.slane %v829, 1
        %v832 = vor.u32 %v827, %v831
        %v833 = vshll.u32 %v746, 16
        %v835 = vrot.slane %v833, 1
        %v836 = vsel %vm766, %v832, %v835
        %v837 = vshrl.u32 %v746, 16
        %839 = vrot.lane.b32.xlu0 %v776, 8
        %v840 = vpop.permute.xlu0 %839
        %841 = vrot.lane.b32.xlu0 %v777, 8
        %v842 = vpop.permute.xlu0 %841
        %843 = vrot.lane.b32.xlu0 %v788, 8
        %v844 = vpop.permute.xlu0 %843
        %845 = vrot.lane.b32.xlu0 %v789, 8
        %v846 = vpop.permute.xlu0 %845
        %847 = vrot.lane.b32.xlu0 %v800, 8
        %v848 = vpop.permute.xlu0 %847
        %849 = vrot.lane.b32.xlu0 %v801, 8
        %v850 = vpop.permute.xlu0 %849
        %851 = vrot.lane.b32.xlu0 %v812, 8
        %v852 = vpop.permute.xlu0 %851
        %853 = vrot.lane.b32.xlu0 %v813, 8
        %v854 = vpop.permute.xlu0 %853
        %855 = vrot.lane.b32.xlu0 %v824, 8
        %v856 = vpop.permute.xlu0 %855
        %857 = vrot.lane.b32.xlu0 %v825, 8
        %v858 = vpop.permute.xlu0 %857
        %859 = vrot.lane.b32.xlu0 %v836, 8
        %v860 = vpop.permute.xlu0 %859
        %861 = vrot.lane.b32.xlu0 %v837, 8
        %v862 = vpop.permute.xlu0 %861
        %vm863 = vcmask 64512
        %v865 = vsel %vm863, %v713, %v840
        %v867 = vsel %vm863, %v716, %v842
        %v869 = vsel %vm863, %v719, %v844
        %v871 = vsel %vm863, %v722, %v846
        %v873 = vsel %vm863, %v725, %v848
        %v875 = vsel %vm863, %v728, %v850
        %v877 = vsel %vm863, %v731, %v852
        %v879 = vsel %vm863, %v734, %v854
        %v881 = vsel %vm863, %v737, %v856
        %v883 = vsel %vm863, %v740, %v858
        %v885 = vsel %vm863, %v743, %v860
        %v887 = vsel %vm863, %v746, %v862
        %v888 = vshrl.u32 %v865, 16
        %v890 = vshll.u32 %v865, 16
        %v892 = vrot.slane %v890, 1
        %v893 = vor.u32 %v888, %v892
        %v894 = vshll.u32 %v867, 16
        %v896 = vrot.slane %v894, 1
        %v897 = vsel %vm766, %v893, %v896
        %v898 = vshrl.u32 %v869, 16
        %v900 = vshll.u32 %v869, 16
        %v902 = vrot.slane %v900, 1
        %v903 = vor.u32 %v898, %v902
        %v904 = vshll.u32 %v871, 16
        %v906 = vrot.slane %v904, 1
        %v907 = vsel %vm766, %v903, %v906
        %v908 = vshrl.u32 %v873, 16
        %v910 = vshll.u32 %v873, 16
        %v912 = vrot.slane %v910, 1
        %v913 = vor.u32 %v908, %v912
        %v914 = vshll.u32 %v875, 16
        %v916 = vrot.slane %v914, 1
        %v917 = vsel %vm766, %v913, %v916
        %v918 = vshrl.u32 %v877, 16
        %v920 = vshll.u32 %v877, 16
        %v922 = vrot.slane %v920, 1
        %v923 = vor.u32 %v918, %v922
        %v924 = vshll.u32 %v879, 16
        %v926 = vrot.slane %v924, 1
        %v927 = vsel %vm766, %v923, %v926
        %v928 = vshrl.u32 %v881, 16
        %v930 = vshll.u32 %v881, 16
        %v932 = vrot.slane %v930, 1
        %v933 = vor.u32 %v928, %v932
        %v934 = vshll.u32 %v883, 16
        %v936 = vrot.slane %v934, 1
        %v937 = vsel %vm766, %v933, %v936
        %v938 = vshrl.u32 %v885, 16
        %v940 = vshll.u32 %v885, 16
        %v942 = vrot.slane %v940, 1
        %v943 = vor.u32 %v938, %v942
        %v944 = vshll.u32 %v887, 16
        %v946 = vrot.slane %v944, 1
        %v947 = vsel %vm766, %v943, %v946
        %v948 = vld [vmem:[%s3] sm:$0xf]
        %v949 = vld [vmem:[%s3 + $0x4] sm:$0xf]
        %v951 = vlaneseq
        %v952 = vshrl.u32 %v951, 7
        %v953 = vsub.s32 0, %v952
        %v954 = vrot.slane %v765, %v953
        %v958 = vunpack.c.l.b16 %v948
        %v959 = vunpack.c.l.b16 %v949
        %v960 = vpack.c.b16 %v959, %v958
        %vm962 = vcmask 130048
        %v964 = vsel %vm962, %v897, 0
        %v967 = vsel %vm962, %v907, 0
        %v970 = vsel %vm962, %v917, 0
        %v973 = vsel %vm962, %v927, 0
        %v976 = vsel %vm962, %v937, 0
        %v979 = vsel %vm962, %v947, 0
        %981 = vmatprep.subr.bf16.mxu0 0
        %982 = vmatpush1.bf16.msra.mxu0 %v960
        %983 = vmatprep.subr.bf16.mxu0 0
        %984 = vmatpush1.bf16.msra.mxu0 0
        %985 = vmatprep.subr.bf16.mxu0 0
        %986 = vmatpush1.bf16.msra.mxu0 0
        %987 = vmatprep.subr.bf16.mxu0 0
        %988 = vmatpush1.bf16.msra.mxu0 0
        %989 = vmatprep.subr.bf16.mxu0 0
        %990 = vmatpush1.bf16.msra.mxu0 0
        %991 = vmatprep.subr.bf16.mxu0 0
        %992 = vmatpush1.bf16.msra.mxu0 0
        %993 = vmatprep.subr.bf16.mxu0 0
        %994 = vmatpush1.bf16.msra.mxu0 0
        %995 = vmatprep.subr.bf16.mxu0 0
        %996 = vmatpush1.bf16.msra.mxu0 0
        %997 = vmatprep.subr.bf16.mxu0 0
        %998 = vmatpush1.bf16.msra.mxu0 0
        %999 = vmatprep.subr.bf16.mxu0 0
        %1000 = vmatpush1.bf16.msra.mxu0 0
        %1001 = vmatprep.subr.bf16.mxu0 0
        %1002 = vmatpush1.bf16.msra.mxu0 0
        %1003 = vmatprep.subr.bf16.mxu0 0
        %1004 = vmatpush1.bf16.msra.mxu0 0
        %1005 = vmatprep.subr.bf16.mxu0 0
        %1006 = vmatpush1.bf16.msra.mxu0 0
        %1007 = vmatprep.subr.bf16.mxu0 0
        %1008 = vmatpush1.bf16.msra.mxu0 0
        %1009 = vmatprep.subr.bf16.mxu0 0
        %1010 = vmatpush1.bf16.msra.mxu0 0
        %1011 = vmatprep.subr.bf16.mxu0 0
        %1012 = vmatpush1.bf16.msra.mxu0 0
        %1013 = vmatprep.mubr.bf16.mxu0 0
        %1014 = vmatmul.mubr.bf16.gmra.mrb[0].mxu0 %v964
        %v1015 = vpop.f32.mrb[0].mxu0
        %v1016 = vadd.f32 %v954, %v1015
        %v1017 = vpop.f32.mrb[0].mxu0
        %v1018 = vpop.f32.mrb[0].mxu0
        %v1019 = vadd.f32 %v954, %v1018
        %v1020 = vpop.f32.mrb[0].mxu0
        %1021 = vmatprep.mubr.bf16.mxu0 0
        %1022 = vmatmul.mubr.bf16.gmra.mrb[0].mxu0 %v967
        %v1023 = vpop.f32.mrb[0].mxu0
        %v1024 = vadd.f32 %v954, %v1023
        %v1025 = vpop.f32.mrb[0].mxu0
        %v1026 = vpop.f32.mrb[0].mxu0
        %v1027 = vadd.f32 %v954, %v1026
        %v1028 = vpop.f32.mrb[0].mxu0
        %1029 = vmatprep.mubr.bf16.mxu0 0
        %1030 = vmatmul.mubr.bf16.gmra.mrb[0].mxu0 %v970
        %v1031 = vpop.f32.mrb[0].mxu0
        %v1032 = vadd.f32 %v954, %v1031
        %v1033 = vpop.f32.mrb[0].mxu0
        %v1034 = vpop.f32.mrb[0].mxu0
        %v1035 = vadd.f32 %v954, %v1034
        %v1036 = vpop.f32.mrb[0].mxu0
        %1037 = vmatprep.mubr.bf16.mxu0 0
        %1038 = vmatmul.mubr.bf16.gmra.mrb[0].mxu0 %v973
        %v1039 = vpop.f32.mrb[0].mxu0
        %v1040 = vadd.f32 %v954, %v1039
        %v1041 = vpop.f32.mrb[0].mxu0
        %v1042 = vpop.f32.mrb[0].mxu0
        %v1043 = vadd.f32 %v954, %v1042
        %v1044 = vpop.f32.mrb[0].mxu0
        %1045 = vmatprep.mubr.bf16.mxu0 0
        %1046 = vmatmul.mubr.bf16.gmra.mrb[0].mxu0 %v976
        %v1047 = vpop.f32.mrb[0].mxu0
        %v1048 = vadd.f32 %v954, %v1047
        %v1049 = vpop.f32.mrb[0].mxu0
        %v1050 = vpop.f32.mrb[0].mxu0
        %v1051 = vadd.f32 %v954, %v1050
        %v1052 = vpop.f32.mrb[0].mxu0
        %1053 = vmatprep.mubr.bf16.mxu0 0
        %1054 = vmatmul.mubr.bf16.gmra.mrb[0].mxu0 %v979
        %v1055 = vpop.f32.mrb[0].mxu0
        %v1056 = vadd.f32 %v954, %v1055
        %v1057 = vpop.f32.mrb[0].mxu0
        %v1058 = vpop.f32.mrb[0].mxu0
        %v1059 = vadd.f32 %v954, %v1058
        %v1060 = vpop.f32.mrb[0].mxu0
        %1061 = vdwg.mxu0
        %v1062 = vmax.f32 %v1016, 0.0
        %v1063 = vmax.f32 %v1019, 0.0
        %v1064 = vmax.f32 %v1024, 0.0
        %v1065 = vmax.f32 %v1027, 0.0
        %v1066 = vmax.f32 %v1032, 0.0
        %v1067 = vmax.f32 %v1035, 0.0
        %v1068 = vmax.f32 %v1040, 0.0
        %v1069 = vmax.f32 %v1043, 0.0
        %v1070 = vmax.f32 %v1048, 0.0
        %v1071 = vmax.f32 %v1051, 0.0
        %v1072 = vmax.f32 %v1056, 0.0
        %v1073 = vmax.f32 %v1059, 0.0
        %v1074 = vpack.c.bf16 %v1063, %v1062
        %v1075 = vpack.c.bf16 %v1065, %v1064
        %v1076 = vpack.c.bf16 %v1067, %v1066
        %v1077 = vpack.c.bf16 %v1069, %v1068
        %v1078 = vpack.c.bf16 %v1071, %v1070
        %v1079 = vpack.c.bf16 %v1073, %v1072
        %vm1080 = vcmask 57344
        %1081 = vst.msk [vmem:[#allocation3] sm:$0x1] %vm1080, 0
        %1082 = vst.msk [vmem:[#allocation3 + $0xc] sm:$0x1] %vm1080, 0
        %1083 = vst.msk [vmem:[#allocation3 + $0x18] sm:$0x1] %vm1080, 0
        %1084 = vst.msk [vmem:[#allocation3 + $0x24] sm:$0x1] %vm1080, 0
        %1085 = vst.msk [vmem:[#allocation3 + $0x30] sm:$0x1] %vm1080, 0
        %1086 = vst.msk [vmem:[#allocation3 + $0x3c] sm:$0x1] %vm1080, 0
        %vm1087 = vcmask 58369
        %1088 = vst.msk [vmem:[#allocation3 + $0x8] sm:$0x2] %vm1087, 0
        %1089 = vst.msk [vmem:[#allocation3 + $0x14] sm:$0x2] %vm1087, 0
        %1090 = vst.msk [vmem:[#allocation3 + $0x20] sm:$0x2] %vm1087, 0
        %1091 = vst.msk [vmem:[#allocation3 + $0x2c] sm:$0x2] %vm1087, 0
        %1092 = vst.msk [vmem:[#allocation3 + $0x38] sm:$0x2] %vm1087, 0
        %1093 = vst.msk [vmem:[#allocation3 + $0x44] sm:$0x2] %vm1087, 0
        %v1100 = vunpack.c.l.b16 %v1074
        %v1101 = vunpack.c.h.b16 %v1074
        %v1102 = vunpack.c.l.b16 %v1075
        %v1103 = vunpack.c.h.b16 %v1075
        %v1104 = vunpack.c.l.b16 %v1076
        %v1105 = vunpack.c.h.b16 %v1076
        %v1106 = vunpack.c.l.b16 %v1077
        %v1107 = vunpack.c.h.b16 %v1077
        %v1108 = vunpack.c.l.b16 %v1078
        %v1109 = vunpack.c.h.b16 %v1078
        %v1110 = vunpack.c.l.b16 %v1079
        %v1111 = vunpack.c.h.b16 %v1079
        %v1112 = vpack.c.b16 %v1100, %v1100
        %v1113 = vpack.c.b16 %v1101, %v1101
        %v1114 = vpack.c.b16 %v1102, %v1102
        %v1115 = vpack.c.b16 %v1103, %v1103
        %v1116 = vpack.c.b16 %v1104, %v1104
        %v1117 = vpack.c.b16 %v1105, %v1105
        %v1118 = vpack.c.b16 %v1106, %v1106
        %v1119 = vpack.c.b16 %v1107, %v1107
        %v1120 = vpack.c.b16 %v1108, %v1108
        %v1121 = vpack.c.b16 %v1109, %v1109
        %v1122 = vpack.c.b16 %v1110, %v1110
        %v1123 = vpack.c.b16 %v1111, %v1111
        %v1124 = vrot.slane %v1112, 7
        %v1125 = vrot.slane %v1124, 4
        %v1126 = vrot.slane %v1113, 7
        %v1127 = vsel %vm492, %v1125, %v1126
        %v1128 = vrot.slane %v1126, 4
        %v1129 = vrot.slane %v1114, 7
        %v1130 = vrot.slane %v1129, 4
        %v1131 = vrot.slane %v1115, 7
        %v1132 = vsel %vm492, %v1130, %v1131
        %v1133 = vrot.slane %v1131, 4
        %v1134 = vrot.slane %v1116, 7
        %v1135 = vrot.slane %v1134, 4
        %v1136 = vrot.slane %v1117, 7
        %v1137 = vsel %vm492, %v1135, %v1136
        %v1138 = vrot.slane %v1136, 4
        %v1139 = vrot.slane %v1118, 7
        %v1140 = vrot.slane %v1139, 4
        %v1141 = vrot.slane %v1119, 7
        %v1142 = vsel %vm492, %v1140, %v1141
        %v1143 = vrot.slane %v1141, 4
        %v1144 = vrot.slane %v1120, 7
        %v1145 = vrot.slane %v1144, 4
        %v1146 = vrot.slane %v1121, 7
        %v1147 = vsel %vm492, %v1145, %v1146
        %v1148 = vrot.slane %v1146, 4
        %v1149 = vrot.slane %v1122, 7
        %v1150 = vrot.slane %v1149, 4
        %v1151 = vrot.slane %v1123, 7
        %v1152 = vsel %vm492, %v1150, %v1151
        %v1153 = vrot.slane %v1151, 4
        %vm1172 = vcmask 60417
        %1173 = vst.msk [vmem:[#allocation3] sm:$0xe] %vm1172, %v1124
        %vm1174 = vcmask 60416
        %1175 = vst.msk [vmem:[#allocation3 + $0x4] sm:$0xf] %vm1174, %v1127
        %1176 = vst.msk [vmem:[#allocation3 + $0x8] sm:$0x1] %vm1080, %v1128
        %1177 = vst.msk [vmem:[#allocation3 + $0xc] sm:$0xe] %vm1172, %v1129
        %1178 = vst.msk [vmem:[#allocation3 + $0x10] sm:$0xf] %vm1174, %v1132
        %1179 = vst.msk [vmem:[#allocation3 + $0x14] sm:$0x1] %vm1080, %v1133
        %1180 = vst.msk [vmem:[#allocation3 + $0x18] sm:$0xe] %vm1172, %v1134
        %1181 = vst.msk [vmem:[#allocation3 + $0x1c] sm:$0xf] %vm1174, %v1137
        %1182 = vst.msk [vmem:[#allocation3 + $0x20] sm:$0x1] %vm1080, %v1138
        %1183 = vst.msk [vmem:[#allocation3 + $0x24] sm:$0xe] %vm1172, %v1139
        %1184 = vst.msk [vmem:[#allocation3 + $0x28] sm:$0xf] %vm1174, %v1142
        %1185 = vst.msk [vmem:[#allocation3 + $0x2c] sm:$0x1] %vm1080, %v1143
        %1186 = vst.msk [vmem:[#allocation3 + $0x30] sm:$0xe] %vm1172, %v1144
        %1187 = vst.msk [vmem:[#allocation3 + $0x34] sm:$0xf] %vm1174, %v1147
        %1188 = vst.msk [vmem:[#allocation3 + $0x38] sm:$0x1] %vm1080, %v1148
        %1189 = vst.msk [vmem:[#allocation3 + $0x3c] sm:$0xe] %vm1172, %v1149
        %1190 = vst.msk [vmem:[#allocation3 + $0x40] sm:$0xf] %vm1174, %v1152
        %1191 = vst.msk [vmem:[#allocation3 + $0x44] sm:$0x1] %vm1080, %v1153
        %v1192 = vor.u32 %v777, %v775
        %v1193 = vor.u32 %v789, %v787
        %v1194 = vor.u32 %v801, %v799
        %v1195 = vor.u32 %v813, %v811
        %v1196 = vor.u32 %v825, %v823
        %v1197 = vor.u32 %v837, %v835
        %1198 = vrot.lane.b32.xlu0 %v1192, 8
        %v1199 = vpop.permute.xlu0 %1198
        %1200 = vrot.lane.b32.xlu0 %v1193, 8
        %v1201 = vpop.permute.xlu0 %1200
        %1202 = vrot.lane.b32.xlu0 %v1194, 8
        %v1203 = vpop.permute.xlu0 %1202
        %1204 = vrot.lane.b32.xlu0 %v1195, 8
        %v1205 = vpop.permute.xlu0 %1204
        %1206 = vrot.lane.b32.xlu0 %v1196, 8
        %v1207 = vpop.permute.xlu0 %1206
        %1208 = vrot.lane.b32.xlu0 %v1197, 8
        %v1209 = vpop.permute.xlu0 %1208
        %v1211 = vsel %vm863, %v716, %v1199
        %v1213 = vsel %vm863, %v722, %v1201
        %v1215 = vsel %vm863, %v728, %v1203
        %v1217 = vsel %vm863, %v734, %v1205
        %v1219 = vsel %vm863, %v740, %v1207
        %v1221 = vsel %vm863, %v746, %v1209
        %vm1234 = vcmask 1046528
        %v1235 = vrot.slane %v865, 1
        %v1236 = vrot.slane %v1211, 1
        %v1237 = vsel %vm1234, %v1235, %v1236
        %v1238 = vrot.slane %v869, 1
        %v1239 = vrot.slane %v1213, 1
        %v1240 = vsel %vm1234, %v1238, %v1239
        %v1241 = vrot.slane %v873, 1
        %v1242 = vrot.slane %v1215, 1
        %v1243 = vsel %vm1234, %v1241, %v1242
        %v1244 = vrot.slane %v877, 1
        %v1245 = vrot.slane %v1217, 1
        %v1246 = vsel %vm1234, %v1244, %v1245
        %v1247 = vrot.slane %v881, 1
        %v1248 = vrot.slane %v1219, 1
        %v1249 = vsel %vm1234, %v1247, %v1248
        %v1250 = vrot.slane %v885, 1
        %v1251 = vrot.slane %v1221, 1
        %v1252 = vsel %vm1234, %v1250, %v1251
        %s1253 = scalar_lea.vmem %s3, 8
        %v1254 = vld [vmem:[%s1253] sm:$0xf]
        %v1255 = vld [vmem:[%s1253 + $0x4] sm:$0xf]
        %v1258 = vunpack.c.l.b16 %v1254
        %v1259 = vunpack.c.l.b16 %v1255
        %v1260 = vpack.c.b16 %v1259, %v1258
        %v1263 = vsel %vm962, %v1237, 0
        %v1266 = vsel %vm962, %v1240, 0
        %v1269 = vsel %vm962, %v1243, 0
        %v1272 = vsel %vm962, %v1246, 0
        %v1275 = vsel %vm962, %v1249, 0
        %v1278 = vsel %vm962, %v1252, 0
        %1280 = vmatprep.subr.bf16.mxu0 0
        %1281 = vmatpush1.bf16.msra.mxu0 %v1260
        %1282 = vmatprep.subr.bf16.mxu0 0
        %1283 = vmatpush1.bf16.msra.mxu0 0
        %1284 = vmatprep.subr.bf16.mxu0 0
        %1285 = vmatpush1.bf16.msra.mxu0 0
        %1286 = vmatprep.subr.bf16.mxu0 0
        %1287 = vmatpush1.bf16.msra.mxu0 0
        %1288 = vmatprep.subr.bf16.mxu0 0
        %1289 = vmatpush1.bf16.msra.mxu0 0
        %1290 = vmatprep.subr.bf16.mxu0 0
        %1291 = vmatpush1.bf16.msra.mxu0 0
        %1292 = vmatprep.subr.bf16.mxu0 0
        %1293 = vmatpush1.bf16.msra.mxu0 0
        %1294 = vmatprep.subr.bf16.mxu0 0
        %1295 = vmatpush1.bf16.msra.mxu0 0
        %1296 = vmatprep.subr.bf16.mxu0 0
        %1297 = vmatpush1.bf16.msra.mxu0 0
        %1298 = vmatprep.subr.bf16.mxu0 0
        %1299 = vmatpush1.bf16.msra.mxu0 0
        %1300 = vmatprep.subr.bf16.mxu0 0
        %1301 = vmatpush1.bf16.msra.mxu0 0
        %1302 = vmatprep.subr.bf16.mxu0 0
        %1303 = vmatpush1.bf16.msra.mxu0 0
        %1304 = vmatprep.subr.bf16.mxu0 0
        %1305 = vmatpush1.bf16.msra.mxu0 0
        %1306 = vmatprep.subr.bf16.mxu0 0
        %1307 = vmatpush1.bf16.msra.mxu0 0
        %1308 = vmatprep.subr.bf16.mxu0 0
        %1309 = vmatpush1.bf16.msra.mxu0 0
        %1310 = vmatprep.subr.bf16.mxu0 0
        %1311 = vmatpush1.bf16.msra.mxu0 0
        %1312 = vmatprep.mubr.bf16.mxu0 0
        %1313 = vmatmul.mubr.bf16.gmra.mrb[0].mxu0 %v1263
        %v1314 = vpop.f32.mrb[0].mxu0
        %v1315 = vadd.f32 %v954, %v1314
        %v1316 = vpop.f32.mrb[0].mxu0
        %v1317 = vpop.f32.mrb[0].mxu0
        %v1318 = vadd.f32 %v954, %v1317
        %v1319 = vpop.f32.mrb[0].mxu0
        %1320 = vmatprep.mubr.bf16.mxu0 0
        %1321 = vmatmul.mubr.bf16.gmra.mrb[0].mxu0 %v1266
        %v1322 = vpop.f32.mrb[0].mxu0
        %v1323 = vadd.f32 %v954, %v1322
        %v1324 = vpop.f32.mrb[0].mxu0
        %v1325 = vpop.f32.mrb[0].mxu0
        %v1326 = vadd.f32 %v954, %v1325
        %v1327 = vpop.f32.mrb[0].mxu0
        %1328 = vmatprep.mubr.bf16.mxu0 0
        %1329 = vmatmul.mubr.bf16.gmra.mrb[0].mxu0 %v1269
        %v1330 = vpop.f32.mrb[0].mxu0
        %v1331 = vadd.f32 %v954, %v1330
        %v1332 = vpop.f32.mrb[0].mxu0
        %v1333 = vpop.f32.mrb[0].mxu0
        %v1334 = vadd.f32 %v954, %v1333
        %v1335 = vpop.f32.mrb[0].mxu0
        %1336 = vmatprep.mubr.bf16.mxu0 0
        %1337 = vmatmul.mubr.bf16.gmra.mrb[0].mxu0 %v1272
        %v1338 = vpop.f32.mrb[0].mxu0
        %v1339 = vadd.f32 %v954, %v1338
        %v1340 = vpop.f32.mrb[0].mxu0
        %v1341 = vpop.f32.mrb[0].mxu0
        %v1342 = vadd.f32 %v954, %v1341
        %v1343 = vpop.f32.mrb[0].mxu0
        %1344 = vmatprep.mubr.bf16.mxu0 0
        %1345 = vmatmul.mubr.bf16.gmra.mrb[0].mxu0 %v1275
        %v1346 = vpop.f32.mrb[0].mxu0
        %v1347 = vadd.f32 %v954, %v1346
        %v1348 = vpop.f32.mrb[0].mxu0
        %v1349 = vpop.f32.mrb[0].mxu0
        %v1350 = vadd.f32 %v954, %v1349
        %v1351 = vpop.f32.mrb[0].mxu0
        %1352 = vmatprep.mubr.bf16.mxu0 0
        %1353 = vmatmul.mubr.bf16.gmra.mrb[0].mxu0 %v1278
        %v1354 = vpop.f32.mrb[0].mxu0
        %v1355 = vadd.f32 %v954, %v1354
        %v1356 = vpop.f32.mrb[0].mxu0
        %v1357 = vpop.f32.mrb[0].mxu0
        %v1358 = vadd.f32 %v954, %v1357
        %v1359 = vpop.f32.mrb[0].mxu0
        %1360 = vdwg.mxu0
        %v1361 = vmax.f32 %v1315, 0.0
        %v1362 = vmax.f32 %v1318, 0.0
        %v1363 = vmax.f32 %v1323, 0.0
        %v1364 = vmax.f32 %v1326, 0.0
        %v1365 = vmax.f32 %v1331, 0.0
        %v1366 = vmax.f32 %v1334, 0.0
        %v1367 = vmax.f32 %v1339, 0.0
        %v1368 = vmax.f32 %v1342, 0.0
        %v1369 = vmax.f32 %v1347, 0.0
        %v1370 = vmax.f32 %v1350, 0.0
        %v1371 = vmax.f32 %v1355, 0.0
        %v1372 = vmax.f32 %v1358, 0.0
        %v1373 = vpack.c.bf16 %v1362, %v1361
        %v1374 = vpack.c.bf16 %v1364, %v1363
        %v1375 = vpack.c.bf16 %v1366, %v1365
        %v1376 = vpack.c.bf16 %v1368, %v1367
        %v1377 = vpack.c.bf16 %v1370, %v1369
        %v1378 = vpack.c.bf16 %v1372, %v1371
        %1379 = vst.msk [vmem:[#allocation4] sm:$0x1] %vm1080, 0
        %1380 = vst.msk [vmem:[#allocation4 + $0xc] sm:$0x1] %vm1080, 0
        %1381 = vst.msk [vmem:[#allocation4 + $0x18] sm:$0x1] %vm1080, 0
        %1382 = vst.msk [vmem:[#allocation4 + $0x24] sm:$0x1] %vm1080, 0
        %1383 = vst.msk [vmem:[#allocation4 + $0x30] sm:$0x1] %vm1080, 0
        %1384 = vst.msk [vmem:[#allocation4 + $0x3c] sm:$0x1] %vm1080, 0
        %1385 = vst.msk [vmem:[#allocation4 + $0x8] sm:$0x2] %vm1087, 0
        %1386 = vst.msk [vmem:[#allocation4 + $0x14] sm:$0x2] %vm1087, 0
        %1387 = vst.msk [vmem:[#allocation4 + $0x20] sm:$0x2] %vm1087, 0
        %1388 = vst.msk [vmem:[#allocation4 + $0x2c] sm:$0x2] %vm1087, 0
        %1389 = vst.msk [vmem:[#allocation4 + $0x38] sm:$0x2] %vm1087, 0
        %1390 = vst.msk [vmem:[#allocation4 + $0x44] sm:$0x2] %vm1087, 0
        %v1397 = vunpack.c.l.b16 %v1373
        %v1398 = vunpack.c.h.b16 %v1373
        %v1399 = vunpack.c.l.b16 %v1374
        %v1400 = vunpack.c.h.b16 %v1374
        %v1401 = vunpack.c.l.b16 %v1375
        %v1402 = vunpack.c.h.b16 %v1375
        %v1403 = vunpack.c.l.b16 %v1376
        %v1404 = vunpack.c.h.b16 %v1376
        %v1405 = vunpack.c.l.b16 %v1377
        %v1406 = vunpack.c.h.b16 %v1377
        %v1407 = vunpack.c.l.b16 %v1378
        %v1408 = vunpack.c.h.b16 %v1378
        %v1409 = vpack.c.b16 %v1397, %v1397
        %v1410 = vpack.c.b16 %v1398, %v1398
        %v1411 = vpack.c.b16 %v1399, %v1399
        %v1412 = vpack.c.b16 %v1400, %v1400
        %v1413 = vpack.c.b16 %v1401, %v1401
        %v1414 = vpack.c.b16 %v1402, %v1402
        %v1415 = vpack.c.b16 %v1403, %v1403
        %v1416 = vpack.c.b16 %v1404, %v1404
        %v1417 = vpack.c.b16 %v1405, %v1405
        %v1418 = vpack.c.b16 %v1406, %v1406
        %v1419 = vpack.c.b16 %v1407, %v1407
        %v1420 = vpack.c.b16 %v1408, %v1408
        %v1421 = vrot.slane %v1409, 7
        %v1422 = vrot.slane %v1421, 4
        %v1423 = vrot.slane %v1410, 7
        %v1424 = vsel %vm492, %v1422, %v1423
        %v1425 = vrot.slane %v1423, 4
        %v1426 = vrot.slane %v1411, 7
        %v1427 = vrot.slane %v1426, 4
        %v1428 = vrot.slane %v1412, 7
        %v1429 = vsel %vm492, %v1427, %v1428
        %v1430 = vrot.slane %v1428, 4
        %v1431 = vrot.slane %v1413, 7
        %v1432 = vrot.slane %v1431, 4
        %v1433 = vrot.slane %v1414, 7
        %v1434 = vsel %vm492, %v1432, %v1433
        %v1435 = vrot.slane %v1433, 4
        %v1436 = vrot.slane %v1415, 7
        %v1437 = vrot.slane %v1436, 4
        %v1438 = vrot.slane %v1416, 7
        %v1439 = vsel %vm492, %v1437, %v1438
        %v1440 = vrot.slane %v1438, 4
        %v1441 = vrot.slane %v1417, 7
        %v1442 = vrot.slane %v1441, 4
        %v1443 = vrot.slane %v1418, 7
        %v1444 = vsel %vm492, %v1442, %v1443
        %v1445 = vrot.slane %v1443, 4
        %v1446 = vrot.slane %v1419, 7
        %v1447 = vrot.slane %v1446, 4
        %v1448 = vrot.slane %v1420, 7
        %v1449 = vsel %vm492, %v1447, %v1448
        %v1450 = vrot.slane %v1448, 4
        %1469 = vst.msk [vmem:[#allocation4] sm:$0xe] %vm1172, %v1421
        %1470 = vst.msk [vmem:[#allocation4 + $0x4] sm:$0xf] %vm1174, %v1424
        %1471 = vst.msk [vmem:[#allocation4 + $0x8] sm:$0x1] %vm1080, %v1425
        %1472 = vst.msk [vmem:[#allocation4 + $0xc] sm:$0xe] %vm1172, %v1426
        %1473 = vst.msk [vmem:[#allocation4 + $0x10] sm:$0xf] %vm1174, %v1429
        %1474 = vst.msk [vmem:[#allocation4 + $0x14] sm:$0x1] %vm1080, %v1430
        %1475 = vst.msk [vmem:[#allocation4 + $0x18] sm:$0xe] %vm1172, %v1431
        %1476 = vst.msk [vmem:[#allocation4 + $0x1c] sm:$0xf] %vm1174, %v1434
        %1477 = vst.msk [vmem:[#allocation4 + $0x20] sm:$0x1] %vm1080, %v1435
        %1478 = vst.msk [vmem:[#allocation4 + $0x24] sm:$0xe] %vm1172, %v1436
        %1479 = vst.msk [vmem:[#allocation4 + $0x28] sm:$0xf] %vm1174, %v1439
        %1480 = vst.msk [vmem:[#allocation4 + $0x2c] sm:$0x1] %vm1080, %v1440
        %1481 = vst.msk [vmem:[#allocation4 + $0x30] sm:$0xe] %vm1172, %v1441
        %1482 = vst.msk [vmem:[#allocation4 + $0x34] sm:$0xf] %vm1174, %v1444
        %1483 = vst.msk [vmem:[#allocation4 + $0x38] sm:$0x1] %vm1080, %v1445
        %1484 = vst.msk [vmem:[#allocation4 + $0x3c] sm:$0xe] %vm1172, %v1446
        %1485 = vst.msk [vmem:[#allocation4 + $0x40] sm:$0xf] %vm1174, %v1449
        %1486 = vst.msk [vmem:[#allocation4 + $0x44] sm:$0x1] %vm1080, %v1450
        %v1487 = vshrl.u32 %v761, 16
        %v1489 = vshll.u32 %v761, 16
        %v1491 = vrot.slane %v1489, 1
        %v1492 = vor.u32 %v1487, %v1491
        %v1493 = vshll.u32 %v764, 16
        %v1495 = vrot.slane %v1493, 1
        %v1496 = vsel %vm766, %v1492, %v1495
        %v1497 = vshrl.u32 %v764, 16
        %1499 = vrot.lane.b32.xlu0 %v1496, 8
        %v1500 = vpop.permute.xlu0 %1499
        %1501 = vrot.lane.b32.xlu0 %v1497, 8
        %v1502 = vpop.permute.xlu0 %1501
        %v1504 = vsel %vm863, %v761, %v1500
        %v1506 = vsel %vm863, %v764, %v1502
        %v1507 = vshrl.u32 %v1504, 16
        %v1509 = vshll.u32 %v1504, 16
        %v1511 = vrot.slane %v1509, 1
        %v1512 = vor.u32 %v1507, %v1511
        %v1513 = vshll.u32 %v1506, 16
        %v1515 = vrot.slane %v1513, 1
        %v1516 = vsel %vm766, %v1512, %v1515
        %s1517 = scalar_lea.vmem %s3, 16
        %v1518 = vld [vmem:[%s1517] sm:$0xf]
        %v1519 = vld [vmem:[%s1517 + $0x4] sm:$0xf]
        %v1522 = vunpack.c.l.b16 %v1518
        %v1523 = vunpack.c.l.b16 %v1519
        %v1524 = vpack.c.b16 %v1523, %v1522
        %v1527 = vsel %vm962, %v1516, 0
        %1529 = vmatprep.subr.bf16.mxu0 0
        %1530 = vmatpush1.bf16.msra.mxu0 %v1524
        %1531 = vmatprep.subr.bf16.mxu0 0
        %1532 = vmatpush1.bf16.msra.mxu0 0
        %1533 = vmatprep.subr.bf16.mxu0 0
        %1534 = vmatpush1.bf16.msra.mxu0 0
        %1535 = vmatprep.subr.bf16.mxu0 0
        %1536 = vmatpush1.bf16.msra.mxu0 0
        %1537 = vmatprep.subr.bf16.mxu0 0
        %1538 = vmatpush1.bf16.msra.mxu0 0
        %1539 = vmatprep.subr.bf16.mxu0 0
        %1540 = vmatpush1.bf16.msra.mxu0 0
        %1541 = vmatprep.subr.bf16.mxu0 0
        %1542 = vmatpush1.bf16.msra.mxu0 0
        %1543 = vmatprep.subr.bf16.mxu0 0
        %1544 = vmatpush1.bf16.msra.mxu0 0
        %1545 = vmatprep.subr.bf16.mxu0 0
        %1546 = vmatpush1.bf16.msra.mxu0 0
        %1547 = vmatprep.subr.bf16.mxu0 0
        %1548 = vmatpush1.bf16.msra.mxu0 0
        %1549 = vmatprep.subr.bf16.mxu0 0
        %1550 = vmatpush1.bf16.msra.mxu0 0
        %1551 = vmatprep.subr.bf16.mxu0 0
        %1552 = vmatpush1.bf16.msra.mxu0 0
        %1553 = vmatprep.subr.bf16.mxu0 0
        %1554 = vmatpush1.bf16.msra.mxu0 0
        %1555 = vmatprep.subr.bf16.mxu0 0
        %1556 = vmatpush1.bf16.msra.mxu0 0
        %1557 = vmatprep.subr.bf16.mxu0 0
        %1558 = vmatpush1.bf16.msra.mxu0 0
        %1559 = vmatprep.subr.bf16.mxu0 0
        %1560 = vmatpush1.bf16.msra.mxu0 0
        %1561 = vmatprep.mubr.bf16.mxu0 0
        %1562 = vmatmul.mubr.bf16.gmra.mrb[0].mxu0 %v967
        %v1563 = vpop.f32.mrb[0].mxu0
        %v1564 = vadd.f32 %v954, %v1563
        %v1565 = vpop.f32.mrb[0].mxu0
        %v1566 = vpop.f32.mrb[0].mxu0
        %v1567 = vadd.f32 %v954, %v1566
        %v1568 = vpop.f32.mrb[0].mxu0
        %1569 = vmatprep.mubr.bf16.mxu0 0
        %1570 = vmatmul.mubr.bf16.gmra.mrb[0].mxu0 %v970
        %v1571 = vpop.f32.mrb[0].mxu0
        %v1572 = vadd.f32 %v954, %v1571
        %v1573 = vpop.f32.mrb[0].mxu0
        %v1574 = vpop.f32.mrb[0].mxu0
        %v1575 = vadd.f32 %v954, %v1574
        %v1576 = vpop.f32.mrb[0].mxu0
        %1577 = vmatprep.mubr.bf16.mxu0 0
        %1578 = vmatmul.mubr.bf16.gmra.mrb[0].mxu0 %v973
        %v1579 = vpop.f32.mrb[0].mxu0
        %v1580 = vadd.f32 %v954, %v1579
        %v1581 = vpop.f32.mrb[0].mxu0
        %v1582 = vpop.f32.mrb[0].mxu0
        %v1583 = vadd.f32 %v954, %v1582
        %v1584 = vpop.f32.mrb[0].mxu0
        %1585 = vmatprep.mubr.bf16.mxu0 0
        %1586 = vmatmul.mubr.bf16.gmra.mrb[0].mxu0 %v976
        %v1587 = vpop.f32.mrb[0].mxu0
        %v1588 = vadd.f32 %v954, %v1587
        %v1589 = vpop.f32.mrb[0].mxu0
        %v1590 = vpop.f32.mrb[0].mxu0
        %v1591 = vadd.f32 %v954, %v1590
        %v1592 = vpop.f32.mrb[0].mxu0
        %1593 = vmatprep.mubr.bf16.mxu0 0
        %1594 = vmatmul.mubr.bf16.gmra.mrb[0].mxu0 %v979
        %v1595 = vpop.f32.mrb[0].mxu0
        %v1596 = vadd.f32 %v954, %v1595
        %v1597 = vpop.f32.mrb[0].mxu0
        %v1598 = vpop.f32.mrb[0].mxu0
        %v1599 = vadd.f32 %v954, %v1598
        %v1600 = vpop.f32.mrb[0].mxu0
        %1601 = vmatprep.mubr.bf16.mxu0 0
        %1602 = vmatmul.mubr.bf16.gmra.mrb[0].mxu0 %v1527
        %v1603 = vpop.f32.mrb[0].mxu0
        %v1604 = vadd.f32 %v954, %v1603
        %v1605 = vpop.f32.mrb[0].mxu0
        %v1606 = vpop.f32.mrb[0].mxu0
        %v1607 = vadd.f32 %v954, %v1606
        %v1608 = vpop.f32.mrb[0].mxu0
        %1609 = vdwg.mxu0
        %v1610 = vmax.f32 %v1564, 0.0
        %v1611 = vmax.f32 %v1567, 0.0
        %v1612 = vmax.f32 %v1572, 0.0
        %v1613 = vmax.f32 %v1575, 0.0
        %v1614 = vmax.f32 %v1580, 0.0
        %v1615 = vmax.f32 %v1583, 0.0
        %v1616 = vmax.f32 %v1588, 0.0
        %v1617 = vmax.f32 %v1591, 0.0
        %v1618 = vmax.f32 %v1596, 0.0
        %v1619 = vmax.f32 %v1599, 0.0
        %v1620 = vmax.f32 %v1604, 0.0
        %v1621 = vmax.f32 %v1607, 0.0
        %v1622 = vpack.c.bf16 %v1611, %v1610
        %v1623 = vpack.c.bf16 %v1613, %v1612
        %v1624 = vpack.c.bf16 %v1615, %v1614
        %v1625 = vpack.c.bf16 %v1617, %v1616
        %v1626 = vpack.c.bf16 %v1619, %v1618
        %v1627 = vpack.c.bf16 %v1621, %v1620
        %1628 = vst.msk [vmem:[#allocation5] sm:$0x1] %vm1080, 0
        %1629 = vst.msk [vmem:[#allocation5 + $0xc] sm:$0x1] %vm1080, 0
        %1630 = vst.msk [vmem:[#allocation5 + $0x18] sm:$0x1] %vm1080, 0
        %1631 = vst.msk [vmem:[#allocation5 + $0x24] sm:$0x1] %vm1080, 0
        %1632 = vst.msk [vmem:[#allocation5 + $0x30] sm:$0x1] %vm1080, 0
        %1633 = vst.msk [vmem:[#allocation5 + $0x3c] sm:$0x1] %vm1080, 0
        %1634 = vst.msk [vmem:[#allocation5 + $0x8] sm:$0x2] %vm1087, 0
        %1635 = vst.msk [vmem:[#allocation5 + $0x14] sm:$0x2] %vm1087, 0
        %1636 = vst.msk [vmem:[#allocation5 + $0x20] sm:$0x2] %vm1087, 0
        %1637 = vst.msk [vmem:[#allocation5 + $0x2c] sm:$0x2] %vm1087, 0
        %1638 = vst.msk [vmem:[#allocation5 + $0x38] sm:$0x2] %vm1087, 0
        %1639 = vst.msk [vmem:[#allocation5 + $0x44] sm:$0x2] %vm1087, 0
        %v1646 = vunpack.c.l.b16 %v1622
        %v1647 = vunpack.c.h.b16 %v1622
        %v1648 = vunpack.c.l.b16 %v1623
        %v1649 = vunpack.c.h.b16 %v1623
        %v1650 = vunpack.c.l.b16 %v1624
        %v1651 = vunpack.c.h.b16 %v1624
        %v1652 = vunpack.c.l.b16 %v1625
        %v1653 = vunpack.c.h.b16 %v1625
        %v1654 = vunpack.c.l.b16 %v1626
        %v1655 = vunpack.c.h.b16 %v1626
        %v1656 = vunpack.c.l.b16 %v1627
        %v1657 = vunpack.c.h.b16 %v1627
        %v1658 = vpack.c.b16 %v1646, %v1646
        %v1659 = vpack.c.b16 %v1647, %v1647
        %v1660 = vpack.c.b16 %v1648, %v1648
        %v1661 = vpack.c.b16 %v1649, %v1649
        %v1662 = vpack.c.b16 %v1650, %v1650
        %v1663 = vpack.c.b16 %v1651, %v1651
        %v1664 = vpack.c.b16 %v1652, %v1652
        %v1665 = vpack.c.b16 %v1653, %v1653
        %v1666 = vpack.c.b16 %v1654, %v1654
        %v1667 = vpack.c.b16 %v1655, %v1655
        %v1668 = vpack.c.b16 %v1656, %v1656
        %v1669 = vpack.c.b16 %v1657, %v1657
        %v1670 = vrot.slane %v1658, 7
        %v1671 = vrot.slane %v1670, 4
        %v1672 = vrot.slane %v1659, 7
        %v1673 = vsel %vm492, %v1671, %v1672
        %v1674 = vrot.slane %v1672, 4
        %v1675 = vrot.slane %v1660, 7
        %v1676 = vrot.slane %v1675, 4
        %v1677 = vrot.slane %v1661, 7
        %v1678 = vsel %vm492, %v1676, %v1677
        %v1679 = vrot.slane %v1677, 4
        %v1680 = vrot.slane %v1662, 7
        %v1681 = vrot.slane %v1680, 4
        %v1682 = vrot.slane %v1663, 7
        %v1683 = vsel %vm492, %v1681, %v1682
        %v1684 = vrot.slane %v1682, 4
        %v1685 = vrot.slane %v1664, 7
        %v1686 = vrot.slane %v1685, 4
        %v1687 = vrot.slane %v1665, 7
        %v1688 = vsel %vm492, %v1686, %v1687
        %v1689 = vrot.slane %v1687, 4
        %v1690 = vrot.slane %v1666, 7
        %v1691 = vrot.slane %v1690, 4
        %v1692 = vrot.slane %v1667, 7
        %v1693 = vsel %vm492, %v1691, %v1692
        %v1694 = vrot.slane %v1692, 4
        %v1695 = vrot.slane %v1668, 7
        %v1696 = vrot.slane %v1695, 4
        %v1697 = vrot.slane %v1669, 7
        %v1698 = vsel %vm492, %v1696, %v1697
        %v1699 = vrot.slane %v1697, 4
        %1718 = vst.msk [vmem:[#allocation5] sm:$0xe] %vm1172, %v1670
        %1719 = vst.msk [vmem:[#allocation5 + $0x4] sm:$0xf] %vm1174, %v1673
        %1720 = vst.msk [vmem:[#allocation5 + $0x8] sm:$0x1] %vm1080, %v1674
        %1721 = vst.msk [vmem:[#allocation5 + $0xc] sm:$0xe] %vm1172, %v1675
        %1722 = vst.msk [vmem:[#allocation5 + $0x10] sm:$0xf] %vm1174, %v1678
        %1723 = vst.msk [vmem:[#allocation5 + $0x14] sm:$0x1] %vm1080, %v1679
        %1724 = vst.msk [vmem:[#allocation5 + $0x18] sm:$0xe] %vm1172, %v1680
        %1725 = vst.msk [vmem:[#allocation5 + $0x1c] sm:$0xf] %vm1174, %v1683
        %1726 = vst.msk [vmem:[#allocation5 + $0x20] sm:$0x1] %vm1080, %v1684
        %1727 = vst.msk [vmem:[#allocation5 + $0x24] sm:$0xe] %vm1172, %v1685
        %1728 = vst.msk [vmem:[#allocation5 + $0x28] sm:$0xf] %vm1174, %v1688
        %1729 = vst.msk [vmem:[#allocation5 + $0x2c] sm:$0x1] %vm1080, %v1689
        %1730 = vst.msk [vmem:[#allocation5 + $0x30] sm:$0xe] %vm1172, %v1690
        %1731 = vst.msk [vmem:[#allocation5 + $0x34] sm:$0xf] %vm1174, %v1693
        %1732 = vst.msk [vmem:[#allocation5 + $0x38] sm:$0x1] %vm1080, %v1694
        %1733 = vst.msk [vmem:[#allocation5 + $0x3c] sm:$0xe] %vm1172, %v1695
        %1734 = vst.msk [vmem:[#allocation5 + $0x40] sm:$0xf] %vm1174, %v1698
        %1735 = vst.msk [vmem:[#allocation5 + $0x44] sm:$0x1] %vm1080, %v1699
        %v1736 = vor.u32 %v1497, %v1495
        %1737 = vrot.lane.b32.xlu0 %v1736, 8
        %v1738 = vpop.permute.xlu0 %1737
        %v1740 = vsel %vm863, %v764, %v1738
        %v1743 = vrot.slane %v1504, 1
        %v1744 = vrot.slane %v1740, 1
        %v1745 = vsel %vm1234, %v1743, %v1744
        %s1746 = scalar_lea.vmem %s3, 24
        %v1747 = vld [vmem:[%s1746] sm:$0xf]
        %v1748 = vld [vmem:[%s1746 + $0x4] sm:$0xf]
        %v1751 = vunpack.c.l.b16 %v1747
        %v1752 = vunpack.c.l.b16 %v1748
        %v1753 = vpack.c.b16 %v1752, %v1751
        %v1756 = vsel %vm962, %v1745, 0
        %1758 = vmatprep.subr.bf16.mxu0 0
        %1759 = vmatpush1.bf16.msra.mxu0 %v1753
        %1760 = vmatprep.subr.bf16.mxu0 0
        %1761 = vmatpush1.bf16.msra.mxu0 0
        %1762 = vmatprep.subr.bf16.mxu0 0
        %1763 = vmatpush1.bf16.msra.mxu0 0
        %1764 = vmatprep.subr.bf16.mxu0 0
        %1765 = vmatpush1.bf16.msra.mxu0 0
        %1766 = vmatprep.subr.bf16.mxu0 0
        %1767 = vmatpush1.bf16.msra.mxu0 0
        %1768 = vmatprep.subr.bf16.mxu0 0
        %1769 = vmatpush1.bf16.msra.mxu0 0
        %1770 = vmatprep.subr.bf16.mxu0 0
        %1771 = vmatpush1.bf16.msra.mxu0 0
        %1772 = vmatprep.subr.bf16.mxu0 0
        %1773 = vmatpush1.bf16.msra.mxu0 0
        %1774 = vmatprep.subr.bf16.mxu0 0
        %1775 = vmatpush1.bf16.msra.mxu0 0
        %1776 = vmatprep.subr.bf16.mxu0 0
        %1777 = vmatpush1.bf16.msra.mxu0 0
        %1778 = vmatprep.subr.bf16.mxu0 0
        %1779 = vmatpush1.bf16.msra.mxu0 0
        %1780 = vmatprep.subr.bf16.mxu0 0
        %1781 = vmatpush1.bf16.msra.mxu0 0
        %1782 = vmatprep.subr.bf16.mxu0 0
        %1783 = vmatpush1.bf16.msra.mxu0 0
        %1784 = vmatprep.subr.bf16.mxu0 0
        %1785 = vmatpush1.bf16.msra.mxu0 0
        %1786 = vmatprep.subr.bf16.mxu0 0
        %1787 = vmatpush1.bf16.msra.mxu0 0
        %1788 = vmatprep.subr.bf16.mxu0 0
        %1789 = vmatpush1.bf16.msra.mxu0 0
        %1790 = vmatprep.mubr.bf16.mxu0 0
        %1791 = vmatmul.mubr.bf16.gmra.mrb[0].mxu0 %v1266
        %v1792 = vpop.f32.mrb[0].mxu0
        %v1793 = vadd.f32 %v954, %v1792
        %v1794 = vpop.f32.mrb[0].mxu0
        %v1795 = vpop.f32.mrb[0].mxu0
        %v1796 = vadd.f32 %v954, %v1795
        %v1797 = vpop.f32.mrb[0].mxu0
        %1798 = vmatprep.mubr.bf16.mxu0 0
        %1799 = vmatmul.mubr.bf16.gmra.mrb[0].mxu0 %v1269
        %v1800 = vpop.f32.mrb[0].mxu0
        %v1801 = vadd.f32 %v954, %v1800
        %v1802 = vpop.f32.mrb[0].mxu0
        %v1803 = vpop.f32.mrb[0].mxu0
        %v1804 = vadd.f32 %v954, %v1803
        %v1805 = vpop.f32.mrb[0].mxu0
        %1806 = vmatprep.mubr.bf16.mxu0 0
        %1807 = vmatmul.mubr.bf16.gmra.mrb[0].mxu0 %v1272
        %v1808 = vpop.f32.mrb[0].mxu0
        %v1809 = vadd.f32 %v954, %v1808
        %v1810 = vpop.f32.mrb[0].mxu0
        %v1811 = vpop.f32.mrb[0].mxu0
        %v1812 = vadd.f32 %v954, %v1811
        %v1813 = vpop.f32.mrb[0].mxu0
        %1814 = vmatprep.mubr.bf16.mxu0 0
        %1815 = vmatmul.mubr.bf16.gmra.mrb[0].mxu0 %v1275
        %v1816 = vpop.f32.mrb[0].mxu0
        %v1817 = vadd.f32 %v954, %v1816
        %v1818 = vpop.f32.mrb[0].mxu0
        %v1819 = vpop.f32.mrb[0].mxu0
        %v1820 = vadd.f32 %v954, %v1819
        %v1821 = vpop.f32.mrb[0].mxu0
        %1822 = vmatprep.mubr.bf16.mxu0 0
        %1823 = vmatmul.mubr.bf16.gmra.mrb[0].mxu0 %v1278
        %v1824 = vpop.f32.mrb[0].mxu0
        %v1825 = vadd.f32 %v954, %v1824
        %v1826 = vpop.f32.mrb[0].mxu0
        %v1827 = vpop.f32.mrb[0].mxu0
        %v1828 = vadd.f32 %v954, %v1827
        %v1829 = vpop.f32.mrb[0].mxu0
        %1830 = vmatprep.mubr.bf16.mxu0 0
        %1831 = vmatmul.mubr.bf16.gmra.mrb[0].mxu0 %v1756
        %v1832 = vpop.f32.mrb[0].mxu0
        %v1833 = vadd.f32 %v954, %v1832
        %v1834 = vpop.f32.mrb[0].mxu0
        %v1835 = vpop.f32.mrb[0].mxu0
        %v1836 = vadd.f32 %v954, %v1835
        %v1837 = vpop.f32.mrb[0].mxu0
        %1838 = vdwg.mxu0
        %v1839 = vmax.f32 %v1793, 0.0
        %v1840 = vmax.f32 %v1796, 0.0
        %v1841 = vmax.f32 %v1801, 0.0
        %v1842 = vmax.f32 %v1804, 0.0
        %v1843 = vmax.f32 %v1809, 0.0
        %v1844 = vmax.f32 %v1812, 0.0
        %v1845 = vmax.f32 %v1817, 0.0
        %v1846 = vmax.f32 %v1820, 0.0
        %v1847 = vmax.f32 %v1825, 0.0
        %v1848 = vmax.f32 %v1828, 0.0
        %v1849 = vmax.f32 %v1833, 0.0
        %v1850 = vmax.f32 %v1836, 0.0
        %v1851 = vpack.c.bf16 %v1840, %v1839
        %v1852 = vpack.c.bf16 %v1842, %v1841
        %v1853 = vpack.c.bf16 %v1844, %v1843
        %v1854 = vpack.c.bf16 %v1846, %v1845
        %v1855 = vpack.c.bf16 %v1848, %v1847
        %v1856 = vpack.c.bf16 %v1850, %v1849
        %1857 = vst.msk [vmem:[#allocation6] sm:$0x1] %vm1080, 0
        %1858 = vst.msk [vmem:[#allocation6 + $0xc] sm:$0x1] %vm1080, 0
        %1859 = vst.msk [vmem:[#allocation6 + $0x18] sm:$0x1] %vm1080, 0
        %1860 = vst.msk [vmem:[#allocation6 + $0x24] sm:$0x1] %vm1080, 0
        %1861 = vst.msk [vmem:[#allocation6 + $0x30] sm:$0x1] %vm1080, 0
        %1862 = vst.msk [vmem:[#allocation6 + $0x3c] sm:$0x1] %vm1080, 0
        %1863 = vst.msk [vmem:[#allocation6 + $0x8] sm:$0x2] %vm1087, 0
        %1864 = vst.msk [vmem:[#allocation6 + $0x14] sm:$0x2] %vm1087, 0
        %1865 = vst.msk [vmem:[#allocation6 + $0x20] sm:$0x2] %vm1087, 0
        %1866 = vst.msk [vmem:[#allocation6 + $0x2c] sm:$0x2] %vm1087, 0
        %1867 = vst.msk [vmem:[#allocation6 + $0x38] sm:$0x2] %vm1087, 0
        %1868 = vst.msk [vmem:[#allocation6 + $0x44] sm:$0x2] %vm1087, 0
        %v1875 = vunpack.c.l.b16 %v1851
        %v1876 = vunpack.c.h.b16 %v1851
        %v1877 = vunpack.c.l.b16 %v1852
        %v1878 = vunpack.c.h.b16 %v1852
        %v1879 = vunpack.c.l.b16 %v1853
        %v1880 = vunpack.c.h.b16 %v1853
        %v1881 = vunpack.c.l.b16 %v1854
        %v1882 = vunpack.c.h.b16 %v1854
        %v1883 = vunpack.c.l.b16 %v1855
        %v1884 = vunpack.c.h.b16 %v1855
        %v1885 = vunpack.c.l.b16 %v1856
        %v1886 = vunpack.c.h.b16 %v1856
        %v1887 = vpack.c.b16 %v1875, %v1875
        %v1888 = vpack.c.b16 %v1876, %v1876
        %v1889 = vpack.c.b16 %v1877, %v1877
        %v1890 = vpack.c.b16 %v1878, %v1878
        %v1891 = vpack.c.b16 %v1879, %v1879
        %v1892 = vpack.c.b16 %v1880, %v1880
        %v1893 = vpack.c.b16 %v1881, %v1881
        %v1894 = vpack.c.b16 %v1882, %v1882
        %v1895 = vpack.c.b16 %v1883, %v1883
        %v1896 = vpack.c.b16 %v1884, %v1884
        %v1897 = vpack.c.b16 %v1885, %v1885
        %v1898 = vpack.c.b16 %v1886, %v1886
        %v1899 = vrot.slane %v1887, 7
        %v1900 = vrot.slane %v1899, 4
        %v1901 = vrot.slane %v1888, 7
        %v1902 = vsel %vm492, %v1900, %v1901
        %v1903 = vrot.slane %v1901, 4
        %v1904 = vrot.slane %v1889, 7
        %v1905 = vrot.slane %v1904, 4
        %v1906 = vrot.slane %v1890, 7
        %v1907 = vsel %vm492, %v1905, %v1906
        %v1908 = vrot.slane %v1906, 4
        %v1909 = vrot.slane %v1891, 7
        %v1910 = vrot.slane %v1909, 4
        %v1911 = vrot.slane %v1892, 7
        %v1912 = vsel %vm492, %v1910, %v1911
        %v1913 = vrot.slane %v1911, 4
        %v1914 = vrot.slane %v1893, 7
        %v1915 = vrot.slane %v1914, 4
        %v1916 = vrot.slane %v1894, 7
        %v1917 = vsel %vm492, %v1915, %v1916
        %v1918 = vrot.slane %v1916, 4
        %v1919 = vrot.slane %v1895, 7
        %v1920 = vrot.slane %v1919, 4
        %v1921 = vrot.slane %v1896, 7
        %v1922 = vsel %vm492, %v1920, %v1921
        %v1923 = vrot.slane %v1921, 4
        %v1924 = vrot.slane %v1897, 7
        %v1925 = vrot.slane %v1924, 4
        %v1926 = vrot.slane %v1898, 7
        %v1927 = vsel %vm492, %v1925, %v1926
        %v1928 = vrot.slane %v1926, 4
        %1947 = vst.msk [vmem:[#allocation6] sm:$0xe] %vm1172, %v1899
        %1948 = vst.msk [vmem:[#allocation6 + $0x4] sm:$0xf] %vm1174, %v1902
        %1949 = vst.msk [vmem:[#allocation6 + $0x8] sm:$0x1] %vm1080, %v1903
        %1950 = vst.msk [vmem:[#allocation6 + $0xc] sm:$0xe] %vm1172, %v1904
        %1951 = vst.msk [vmem:[#allocation6 + $0x10] sm:$0xf] %vm1174, %v1907
        %1952 = vst.msk [vmem:[#allocation6 + $0x14] sm:$0x1] %vm1080, %v1908
        %1953 = vst.msk [vmem:[#allocation6 + $0x18] sm:$0xe] %vm1172, %v1909
        %1954 = vst.msk [vmem:[#allocation6 + $0x1c] sm:$0xf] %vm1174, %v1912
        %1955 = vst.msk [vmem:[#allocation6 + $0x20] sm:$0x1] %vm1080, %v1913
        %1956 = vst.msk [vmem:[#allocation6 + $0x24] sm:$0xe] %vm1172, %v1914
        %1957 = vst.msk [vmem:[#allocation6 + $0x28] sm:$0xf] %vm1174, %v1917
        %1958 = vst.msk [vmem:[#allocation6 + $0x2c] sm:$0x1] %vm1080, %v1918
        %1959 = vst.msk [vmem:[#allocation6 + $0x30] sm:$0xe] %vm1172, %v1919
        %1960 = vst.msk [vmem:[#allocation6 + $0x34] sm:$0xf] %vm1174, %v1922
        %1961 = vst.msk [vmem:[#allocation6 + $0x38] sm:$0x1] %vm1080, %v1923
        %1962 = vst.msk [vmem:[#allocation6 + $0x3c] sm:$0xe] %vm1172, %v1924
        %1963 = vst.msk [vmem:[#allocation6 + $0x40] sm:$0xf] %vm1174, %v1927
        %1964 = vst.msk [vmem:[#allocation6 + $0x44] sm:$0x1] %vm1080, %v1928
        // Predicated region
        $region65: #{res_block_generator.1} parent=55 // pred_check
          %p1965 = pneg %p583
        $region66: #{res_block_generator.1} parent=55 // pred_check_branch
          %1967 = sbr.rel (%p1965) target = $region68
        $region67: #{res_block_generator.1} parent=55 // pred_region
          %1968 = vst.msk [vmem:[#allocation3] sm:$0xf] %vm1174, 0
          %1969 = vst.msk [vmem:[#allocation3 + $0x4] sm:$0xf] %vm1174, 0
          %vm1970 = vcmask 58368
          %1971 = vst.msk [vmem:[#allocation3 + $0x8] sm:$0x3] %vm1970, 0
          %1972 = vst.msk [vmem:[#allocation4] sm:$0xf] %vm1174, 0
          %1973 = vst.msk [vmem:[#allocation4 + $0x4] sm:$0xf] %vm1174, 0
          %1974 = vst.msk [vmem:[#allocation4 + $0x8] sm:$0x3] %vm1970, 0
          %1975 = vst.msk [vmem:[#allocation5] sm:$0xf] %vm1174, 0
          %1976 = vst.msk [vmem:[#allocation5 + $0x4] sm:$0xf] %vm1174, 0
          %1977 = vst.msk [vmem:[#allocation5 + $0x8] sm:$0x3] %vm1970, 0
          %1978 = vst.msk [vmem:[#allocation6] sm:$0xf] %vm1174, 0
          %1979 = vst.msk [vmem:[#allocation6 + $0x4] sm:$0xf] %vm1174, 0
          %1980 = vst.msk [vmem:[#allocation6 + $0x8] sm:$0x3] %vm1970, 0
        $region68: #{res_block_generator.1} parent=55 // pred_fallthru
          _
        // Predicated region
        $region69: #{res_block_generator.1} parent=55 // pred_check
          %p1981 = pneg %p594
        $region70: #{res_block_generator.1} parent=55 // pred_check_branch
          %1983 = sbr.rel (%p1981) target = $region72
        $region71: #{res_block_generator.1} parent=55 // pred_region
          %s1984 = scalar_lea.vmem [#allocation3], 60
          %1985 = vst.msk [vmem:[%s1984] sm:$0xf] %vm1174, 0
          %1986 = vst.msk [vmem:[%s1984 + $0x4] sm:$0xf] %vm1174, 0
          %vm1987 = vcmask 58368
          %1988 = vst.msk [vmem:[%s1984 + $0x8] sm:$0x3] %vm1987, 0
          %s1989 = scalar_lea.vmem [#allocation4], 60
          %1990 = vst.msk [vmem:[%s1989] sm:$0xf] %vm1174, 0
          %1991 = vst.msk [vmem:[%s1989 + $0x4] sm:$0xf] %vm1174, 0
          %1992 = vst.msk [vmem:[%s1989 + $0x8] sm:$0x3] %vm1987, 0
          %s1993 = scalar_lea.vmem [#allocation5], 60
          %1994 = vst.msk [vmem:[%s1993] sm:$0xf] %vm1174, 0
          %1995 = vst.msk [vmem:[%s1993 + $0x4] sm:$0xf] %vm1174, 0
          %1996 = vst.msk [vmem:[%s1993 + $0x8] sm:$0x3] %vm1987, 0
          %s1997 = scalar_lea.vmem [#allocation6], 60
          %1998 = vst.msk [vmem:[%s1997] sm:$0xf] %vm1174, 0
          %1999 = vst.msk [vmem:[%s1997 + $0x4] sm:$0xf] %vm1174, 0
          %2000 = vst.msk [vmem:[%s1997 + $0x8] sm:$0x3] %vm1987, 0
        $region72: #{res_block_generator.1} parent=55 // pred_fallthru
          _
        %v2001 = vld [vmem:[#allocation3 + $0xc] sm:$0xf]
        %v2002 = vld [vmem:[#allocation3 + $0x10] sm:$0xf]
        %v2003 = vld [vmem:[#allocation3 + $0x14] sm:$0x3]
        %v2004 = vld [vmem:[#allocation3 + $0x18] sm:$0xf]
        %v2005 = vld [vmem:[#allocation3 + $0x1c] sm:$0xf]
        %v2006 = vld [vmem:[#allocation3 + $0x20] sm:$0x3]
        %v2007 = vld [vmem:[#allocation3 + $0x24] sm:$0xf]
        %v2008 = vld [vmem:[#allocation3 + $0x28] sm:$0xf]
        %v2009 = vld [vmem:[#allocation3 + $0x2c] sm:$0x3]
        %v2010 = vld [vmem:[#allocation3 + $0x30] sm:$0xf]
        %v2011 = vld [vmem:[#allocation3 + $0x34] sm:$0xf]
        %v2012 = vld [vmem:[#allocation3 + $0x38] sm:$0x3]
        %v2013 = vld [vmem:[#allocation3 + $0x3c] sm:$0xf]
        %v2014 = vld [vmem:[#allocation3 + $0x40] sm:$0xf]
        %v2015 = vld [vmem:[#allocation3 + $0x44] sm:$0x3]
        %v2016 = vld [vmem:[#allocation4 + $0xc] sm:$0xf]
        %v2017 = vld [vmem:[#allocation4 + $0x10] sm:$0xf]
        %v2018 = vld [vmem:[#allocation4 + $0x14] sm:$0x3]
        %v2019 = vld [vmem:[#allocation4 + $0x18] sm:$0xf]
        %v2020 = vld [vmem:[#allocation4 + $0x1c] sm:$0xf]
        %v2021 = vld [vmem:[#allocation4 + $0x20] sm:$0x3]
        %v2022 = vld [vmem:[#allocation4 + $0x24] sm:$0xf]
        %v2023 = vld [vmem:[#allocation4 + $0x28] sm:$0xf]
        %v2024 = vld [vmem:[#allocation4 + $0x2c] sm:$0x3]
        %v2025 = vld [vmem:[#allocation4 + $0x30] sm:$0xf]
        %v2026 = vld [vmem:[#allocation4 + $0x34] sm:$0xf]
        %v2027 = vld [vmem:[#allocation4 + $0x38] sm:$0x3]
        %v2028 = vld [vmem:[#allocation4 + $0x3c] sm:$0xf]
        %v2029 = vld [vmem:[#allocation4 + $0x40] sm:$0xf]
        %v2030 = vld [vmem:[#allocation4 + $0x44] sm:$0x3]
        %v2031 = vld [vmem:[#allocation5] sm:$0xf]
        %v2032 = vld [vmem:[#allocation5 + $0x4] sm:$0xf]
        %v2033 = vld [vmem:[#allocation5 + $0x8] sm:$0x3]
        %v2034 = vld [vmem:[#allocation5 + $0xc] sm:$0xf]
        %v2035 = vld [vmem:[#allocation5 + $0x10] sm:$0xf]
        %v2036 = vld [vmem:[#allocation5 + $0x14] sm:$0x3]
        %v2037 = vld [vmem:[#allocation5 + $0x18] sm:$0xf]
        %v2038 = vld [vmem:[#allocation5 + $0x1c] sm:$0xf]
        %v2039 = vld [vmem:[#allocation5 + $0x20] sm:$0x3]
        %v2040 = vld [vmem:[#allocation5 + $0x24] sm:$0xf]
        %v2041 = vld [vmem:[#allocation5 + $0x28] sm:$0xf]
        %v2042 = vld [vmem:[#allocation5 + $0x2c] sm:$0x3]
        %v2043 = vld [vmem:[#allocation5 + $0x30] sm:$0xf]
        %v2044 = vld [vmem:[#allocation5 + $0x34] sm:$0xf]
        %v2045 = vld [vmem:[#allocation5 + $0x38] sm:$0x3]
        %v2046 = vld [vmem:[#allocation6] sm:$0xf]
        %v2047 = vld [vmem:[#allocation6 + $0x4] sm:$0xf]
        %v2048 = vld [vmem:[#allocation6 + $0x8] sm:$0x3]
        %v2049 = vld [vmem:[#allocation6 + $0xc] sm:$0xf]
        %v2050 = vld [vmem:[#allocation6 + $0x10] sm:$0xf]
        %v2051 = vld [vmem:[#allocation6 + $0x14] sm:$0x3]
        %v2052 = vld [vmem:[#allocation6 + $0x18] sm:$0xf]
        %v2053 = vld [vmem:[#allocation6 + $0x1c] sm:$0xf]
        %v2054 = vld [vmem:[#allocation6 + $0x20] sm:$0x3]
        %v2055 = vld [vmem:[#allocation6 + $0x24] sm:$0xf]
        %v2056 = vld [vmem:[#allocation6 + $0x28] sm:$0xf]
        %v2057 = vld [vmem:[#allocation6 + $0x2c] sm:$0x3]
        %v2058 = vld [vmem:[#allocation6 + $0x30] sm:$0xf]
        %v2059 = vld [vmem:[#allocation6 + $0x34] sm:$0xf]
        %v2060 = vld [vmem:[#allocation6 + $0x38] sm:$0x3]
        %v2073 = vunpack.c.l.b16 %v2031
        %v2074 = vunpack.c.l.b16 %v2032
        %v2075 = vunpack.c.l.b16 %v2033
        %v2076 = vunpack.c.l.b16 %v2034
        %v2077 = vunpack.c.l.b16 %v2035
        %v2078 = vunpack.c.l.b16 %v2036
        %v2079 = vunpack.c.l.b16 %v2037
        %v2080 = vunpack.c.l.b16 %v2038
        %v2081 = vunpack.c.l.b16 %v2039
        %v2082 = vunpack.c.l.b16 %v2040
        %v2083 = vunpack.c.l.b16 %v2041
        %v2084 = vunpack.c.l.b16 %v2042
        %v2085 = vpack.c.b16 %v2074, %v2073
        %v2086 = vpack.c.b16 %v2075, %v2075
        %v2087 = vpack.c.b16 %v2077, %v2076
        %v2088 = vpack.c.b16 %v2078, %v2078
        %v2089 = vpack.c.b16 %v2080, %v2079
        %v2090 = vpack.c.b16 %v2081, %v2081
        %v2091 = vpack.c.b16 %v2083, %v2082
        %v2092 = vpack.c.b16 %v2084, %v2084
        %v2105 = vunpack.c.l.b16 %v2001
        %v2106 = vunpack.c.l.b16 %v2002
        %v2107 = vunpack.c.l.b16 %v2003
        %v2108 = vunpack.c.l.b16 %v2004
        %v2109 = vunpack.c.l.b16 %v2005
        %v2110 = vunpack.c.l.b16 %v2006
        %v2111 = vunpack.c.l.b16 %v2007
        %v2112 = vunpack.c.l.b16 %v2008
        %v2113 = vunpack.c.l.b16 %v2009
        %v2114 = vunpack.c.l.b16 %v2010
        %v2115 = vunpack.c.l.b16 %v2011
        %v2116 = vunpack.c.l.b16 %v2012
        %v2117 = vpack.c.b16 %v2106, %v2105
        %v2118 = vpack.c.b16 %v2107, %v2107
        %v2119 = vpack.c.b16 %v2109, %v2108
        %v2120 = vpack.c.b16 %v2110, %v2110
        %v2121 = vpack.c.b16 %v2112, %v2111
        %v2122 = vpack.c.b16 %v2113, %v2113
        %v2123 = vpack.c.b16 %v2115, %v2114
        %v2124 = vpack.c.b16 %v2116, %v2116
        %2125 = vrot.lane.b32.xlu0 %v2117, 8
        %v2126 = vpop.permute.xlu0 %2125
        %2127 = vrot.lane.b32.xlu0 %v2118, 8
        %v2128 = vpop.permute.xlu0 %2127
        %2129 = vrot.lane.b32.xlu0 %v2119, 8
        %v2130 = vpop.permute.xlu0 %2129
        %2131 = vrot.lane.b32.xlu0 %v2120, 8
        %v2132 = vpop.permute.xlu0 %2131
        %2133 = vrot.lane.b32.xlu0 %v2121, 8
        %v2134 = vpop.permute.xlu0 %2133
        %2135 = vrot.lane.b32.xlu0 %v2122, 8
        %v2136 = vpop.permute.xlu0 %2135
        %2137 = vrot.lane.b32.xlu0 %v2123, 8
        %v2138 = vpop.permute.xlu0 %2137
        %2139 = vrot.lane.b32.xlu0 %v2124, 8
        %v2140 = vpop.permute.xlu0 %2139
        %v2144 = vunpack.c.l.b16 %v2043
        %v2145 = vunpack.c.l.b16 %v2044
        %v2146 = vunpack.c.l.b16 %v2045
        %v2147 = vpack.c.b16 %v2145, %v2144
        %v2148 = vpack.c.b16 %v2146, %v2146
        %2149 = vrot.lane.b32.xlu0 %v2087, 16
        %v2150 = vpop.permute.xlu0 %2149
        %2151 = vrot.lane.b32.xlu0 %v2088, 16
        %v2152 = vpop.permute.xlu0 %2151
        %2153 = vrot.lane.b32.xlu0 %v2089, 16
        %v2154 = vpop.permute.xlu0 %2153
        %2155 = vrot.lane.b32.xlu0 %v2090, 16
        %v2156 = vpop.permute.xlu0 %2155
        %2157 = vrot.lane.b32.xlu0 %v2091, 16
        %v2158 = vpop.permute.xlu0 %2157
        %2159 = vrot.lane.b32.xlu0 %v2092, 16
        %v2160 = vpop.permute.xlu0 %2159
        %2161 = vrot.lane.b32.xlu0 %v2147, 16
        %v2162 = vpop.permute.xlu0 %2161
        %2163 = vrot.lane.b32.xlu0 %v2148, 16
        %v2164 = vpop.permute.xlu0 %2163
        %v2167 = vsel %vm863, %v2085, %v2126
        %v2170 = vsel %vm863, %v2086, %v2128
        %v2173 = vsel %vm863, %v2087, %v2130
        %v2176 = vsel %vm863, %v2088, %v2132
        %v2179 = vsel %vm863, %v2089, %v2134
        %v2182 = vsel %vm863, %v2090, %v2136
        %v2185 = vsel %vm863, %v2091, %v2138
        %v2188 = vsel %vm863, %v2092, %v2140
        %v2190 = vsel %vm962, %v2167, %v2150
        %v2192 = vsel %vm962, %v2170, %v2152
        %v2194 = vsel %vm962, %v2173, %v2154
        %v2196 = vsel %vm962, %v2176, %v2156
        %v2198 = vsel %vm962, %v2179, %v2158
        %v2200 = vsel %vm962, %v2182, %v2160
        %v2202 = vsel %vm962, %v2185, %v2162
        %v2204 = vsel %vm962, %v2188, %v2164
        %v2217 = vunpack.c.l.b16 %v2046
        %v2218 = vunpack.c.l.b16 %v2047
        %v2219 = vunpack.c.l.b16 %v2048
        %v2220 = vunpack.c.l.b16 %v2049
        %v2221 = vunpack.c.l.b16 %v2050
        %v2222 = vunpack.c.l.b16 %v2051
        %v2223 = vunpack.c.l.b16 %v2052
        %v2224 = vunpack.c.l.b16 %v2053
        %v2225 = vunpack.c.l.b16 %v2054
        %v2226 = vunpack.c.l.b16 %v2055
        %v2227 = vunpack.c.l.b16 %v2056
        %v2228 = vunpack.c.l.b16 %v2057
        %v2229 = vpack.c.b16 %v2218, %v2217
        %v2230 = vpack.c.b16 %v2219, %v2219
        %v2231 = vpack.c.b16 %v2221, %v2220
        %v2232 = vpack.c.b16 %v2222, %v2222
        %v2233 = vpack.c.b16 %v2224, %v2223
        %v2234 = vpack.c.b16 %v2225, %v2225
        %v2235 = vpack.c.b16 %v2227, %v2226
        %v2236 = vpack.c.b16 %v2228, %v2228
        %v2249 = vunpack.c.l.b16 %v2016
        %v2250 = vunpack.c.l.b16 %v2017
        %v2251 = vunpack.c.l.b16 %v2018
        %v2252 = vunpack.c.l.b16 %v2019
        %v2253 = vunpack.c.l.b16 %v2020
        %v2254 = vunpack.c.l.b16 %v2021
        %v2255 = vunpack.c.l.b16 %v2022
        %v2256 = vunpack.c.l.b16 %v2023
        %v2257 = vunpack.c.l.b16 %v2024
        %v2258 = vunpack.c.l.b16 %v2025
        %v2259 = vunpack.c.l.b16 %v2026
        %v2260 = vunpack.c.l.b16 %v2027
        %v2261 = vpack.c.b16 %v2250, %v2249
        %v2262 = vpack.c.b16 %v2251, %v2251
        %v2263 = vpack.c.b16 %v2253, %v2252
        %v2264 = vpack.c.b16 %v2254, %v2254
        %v2265 = vpack.c.b16 %v2256, %v2255
        %v2266 = vpack.c.b16 %v2257, %v2257
        %v2267 = vpack.c.b16 %v2259, %v2258
        %v2268 = vpack.c.b16 %v2260, %v2260
        %2269 = vrot.lane.b32.xlu0 %v2261, 8
        %v2270 = vpop.permute.xlu0 %2269
        %2271 = vrot.lane.b32.xlu0 %v2262, 8
        %v2272 = vpop.permute.xlu0 %2271
        %2273 = vrot.lane.b32.xlu0 %v2263, 8
        %v2274 = vpop.permute.xlu0 %2273
        %2275 = vrot.lane.b32.xlu0 %v2264, 8
        %v2276 = vpop.permute.xlu0 %2275
        %2277 = vrot.lane.b32.xlu0 %v2265, 8
        %v2278 = vpop.permute.xlu0 %2277
        %2279 = vrot.lane.b32.xlu0 %v2266, 8
        %v2280 = vpop.permute.xlu0 %2279
        %2281 = vrot.lane.b32.xlu0 %v2267, 8
        %v2282 = vpop.permute.xlu0 %2281
        %2283 = vrot.lane.b32.xlu0 %v2268, 8
        %v2284 = vpop.permute.xlu0 %2283
        %v2288 = vunpack.c.l.b16 %v2058
        %v2289 = vunpack.c.l.b16 %v2059
        %v2290 = vunpack.c.l.b16 %v2060
        %v2291 = vpack.c.b16 %v2289, %v2288
        %v2292 = vpack.c.b16 %v2290, %v2290
        %2293 = vrot.lane.b32.xlu0 %v2231, 16
        %v2294 = vpop.permute.xlu0 %2293
        %2295 = vrot.lane.b32.xlu0 %v2232, 16
        %v2296 = vpop.permute.xlu0 %2295
        %2297 = vrot.lane.b32.xlu0 %v2233, 16
        %v2298 = vpop.permute.xlu0 %2297
        %2299 = vrot.lane.b32.xlu0 %v2234, 16
        %v2300 = vpop.permute.xlu0 %2299
        %2301 = vrot.lane.b32.xlu0 %v2235, 16
        %v2302 = vpop.permute.xlu0 %2301
        %2303 = vrot.lane.b32.xlu0 %v2236, 16
        %v2304 = vpop.permute.xlu0 %2303
        %2305 = vrot.lane.b32.xlu0 %v2291, 16
        %v2306 = vpop.permute.xlu0 %2305
        %2307 = vrot.lane.b32.xlu0 %v2292, 16
        %v2308 = vpop.permute.xlu0 %2307
        %v2311 = vsel %vm863, %v2229, %v2270
        %v2314 = vsel %vm863, %v2230, %v2272
        %v2317 = vsel %vm863, %v2231, %v2274
        %v2320 = vsel %vm863, %v2232, %v2276
        %v2323 = vsel %vm863, %v2233, %v2278
        %v2326 = vsel %vm863, %v2234, %v2280
        %v2329 = vsel %vm863, %v2235, %v2282
        %v2332 = vsel %vm863, %v2236, %v2284
        %v2334 = vsel %vm962, %v2311, %v2294
        %v2336 = vsel %vm962, %v2314, %v2296
        %v2338 = vsel %vm962, %v2317, %v2298
        %v2340 = vsel %vm962, %v2320, %v2300
        %v2342 = vsel %vm962, %v2323, %v2302
        %v2344 = vsel %vm962, %v2326, %v2304
        %v2346 = vsel %vm962, %v2329, %v2306
        %v2348 = vsel %vm962, %v2332, %v2308
        %2349 = vrot.lane.b32.xlu0 %v2087, 8
        %v2350 = vpop.permute.xlu0 %2349
        %2351 = vrot.lane.b32.xlu0 %v2088, 8
        %v2352 = vpop.permute.xlu0 %2351
        %2353 = vrot.lane.b32.xlu0 %v2089, 8
        %v2354 = vpop.permute.xlu0 %2353
        %2355 = vrot.lane.b32.xlu0 %v2090, 8
        %v2356 = vpop.permute.xlu0 %2355
        %2357 = vrot.lane.b32.xlu0 %v2091, 8
        %v2358 = vpop.permute.xlu0 %2357
        %2359 = vrot.lane.b32.xlu0 %v2092, 8
        %v2360 = vpop.permute.xlu0 %2359
        %2361 = vrot.lane.b32.xlu0 %v2147, 8
        %v2362 = vpop.permute.xlu0 %2361
        %2363 = vrot.lane.b32.xlu0 %v2148, 8
        %v2364 = vpop.permute.xlu0 %2363
        %v2368 = vunpack.c.l.b16 %v2013
        %v2369 = vunpack.c.l.b16 %v2014
        %v2370 = vunpack.c.l.b16 %v2015
        %v2371 = vpack.c.b16 %v2369, %v2368
        %v2372 = vpack.c.b16 %v2370, %v2370
        %2373 = vrot.lane.b32.xlu0 %v2119, 16
        %v2374 = vpop.permute.xlu0 %2373
        %2375 = vrot.lane.b32.xlu0 %v2120, 16
        %v2376 = vpop.permute.xlu0 %2375
        %2377 = vrot.lane.b32.xlu0 %v2121, 16
        %v2378 = vpop.permute.xlu0 %2377
        %2379 = vrot.lane.b32.xlu0 %v2122, 16
        %v2380 = vpop.permute.xlu0 %2379
        %2381 = vrot.lane.b32.xlu0 %v2123, 16
        %v2382 = vpop.permute.xlu0 %2381
        %2383 = vrot.lane.b32.xlu0 %v2124, 16
        %v2384 = vpop.permute.xlu0 %2383
        %2385 = vrot.lane.b32.xlu0 %v2371, 16
        %v2386 = vpop.permute.xlu0 %2385
        %2387 = vrot.lane.b32.xlu0 %v2372, 16
        %v2388 = vpop.permute.xlu0 %2387
        %v2391 = vsel %vm863, %v2117, %v2350
        %v2394 = vsel %vm863, %v2118, %v2352
        %v2397 = vsel %vm863, %v2119, %v2354
        %v2400 = vsel %vm863, %v2120, %v2356
        %v2403 = vsel %vm863, %v2121, %v2358
        %v2406 = vsel %vm863, %v2122, %v2360
        %v2409 = vsel %vm863, %v2123, %v2362
        %v2412 = vsel %vm863, %v2124, %v2364
        %v2414 = vsel %vm962, %v2391, %v2374
        %v2416 = vsel %vm962, %v2394, %v2376
        %v2418 = vsel %vm962, %v2397, %v2378
        %v2420 = vsel %vm962, %v2400, %v2380
        %v2422 = vsel %vm962, %v2403, %v2382
        %v2424 = vsel %vm962, %v2406, %v2384
        %v2426 = vsel %vm962, %v2409, %v2386
        %v2428 = vsel %vm962, %v2412, %v2388
        %2429 = vrot.lane.b32.xlu0 %v2231, 8
        %v2430 = vpop.permute.xlu0 %2429
        %2431 = vrot.lane.b32.xlu0 %v2232, 8
        %v2432 = vpop.permute.xlu0 %2431
        %2433 = vrot.lane.b32.xlu0 %v2233, 8
        %v2434 = vpop.permute.xlu0 %2433
        %2435 = vrot.lane.b32.xlu0 %v2234, 8
        %v2436 = vpop.permute.xlu0 %2435
        %2437 = vrot.lane.b32.xlu0 %v2235, 8
        %v2438 = vpop.permute.xlu0 %2437
        %2439 = vrot.lane.b32.xlu0 %v2236, 8
        %v2440 = vpop.permute.xlu0 %2439
        %2441 = vrot.lane.b32.xlu0 %v2291, 8
        %v2442 = vpop.permute.xlu0 %2441
        %2443 = vrot.lane.b32.xlu0 %v2292, 8
        %v2444 = vpop.permute.xlu0 %2443
        %v2448 = vunpack.c.l.b16 %v2028
        %v2449 = vunpack.c.l.b16 %v2029
        %v2450 = vunpack.c.l.b16 %v2030
        %v2451 = vpack.c.b16 %v2449, %v2448
        %v2452 = vpack.c.b16 %v2450, %v2450
        %2453 = vrot.lane.b32.xlu0 %v2263, 16
        %v2454 = vpop.permute.xlu0 %2453
        %2455 = vrot.lane.b32.xlu0 %v2264, 16
        %v2456 = vpop.permute.xlu0 %2455
        %2457 = vrot.lane.b32.xlu0 %v2265, 16
        %v2458 = vpop.permute.xlu0 %2457
        %2459 = vrot.lane.b32.xlu0 %v2266, 16
        %v2460 = vpop.permute.xlu0 %2459
        %2461 = vrot.lane.b32.xlu0 %v2267, 16
        %v2462 = vpop.permute.xlu0 %2461
        %2463 = vrot.lane.b32.xlu0 %v2268, 16
        %v2464 = vpop.permute.xlu0 %2463
        %2465 = vrot.lane.b32.xlu0 %v2451, 16
        %v2466 = vpop.permute.xlu0 %2465
        %2467 = vrot.lane.b32.xlu0 %v2452, 16
        %v2468 = vpop.permute.xlu0 %2467
        %v2471 = vsel %vm863, %v2261, %v2430
        %v2474 = vsel %vm863, %v2262, %v2432
        %v2477 = vsel %vm863, %v2263, %v2434
        %v2480 = vsel %vm863, %v2264, %v2436
        %v2483 = vsel %vm863, %v2265, %v2438
        %v2486 = vsel %vm863, %v2266, %v2440
        %v2489 = vsel %vm863, %v2267, %v2442
        %v2492 = vsel %vm863, %v2268, %v2444
        %v2494 = vsel %vm962, %v2471, %v2454
        %v2496 = vsel %vm962, %v2474, %v2456
        %v2498 = vsel %vm962, %v2477, %v2458
        %v2500 = vsel %vm962, %v2480, %v2460
        %v2502 = vsel %vm962, %v2483, %v2462
        %v2504 = vsel %vm962, %v2486, %v2464
        %v2506 = vsel %vm962, %v2489, %v2466
        %v2508 = vsel %vm962, %v2492, %v2468
        %v2509 = vpack.c.bf16 %v351, %v350
        %v2510 = vpack.c.bf16 %v353, %v352
        %v2511 = vpack.c.bf16 %v355, %v354
        %v2512 = vpack.c.bf16 %v357, %v356
        %v2513 = vshrl.u32 %v2334, 16
        %v2515 = vshll.u32 %v2334, 16
        %v2517 = vrot.slane %v2515, 1
        %v2518 = vor.u32 %v2513, %v2517
        %v2519 = vshll.u32 %v2336, 16
        %v2521 = vrot.slane %v2519, 1
        %v2522 = vsel %vm766, %v2518, %v2521
        %v2523 = vshrl.u32 %v2338, 16
        %v2525 = vshll.u32 %v2338, 16
        %v2527 = vrot.slane %v2525, 1
        %v2528 = vor.u32 %v2523, %v2527
        %v2529 = vshll.u32 %v2340, 16
        %v2531 = vrot.slane %v2529, 1
        %v2532 = vsel %vm766, %v2528, %v2531
        %v2533 = vshrl.u32 %v2342, 16
        %v2535 = vshll.u32 %v2342, 16
        %v2537 = vrot.slane %v2535, 1
        %v2538 = vor.u32 %v2533, %v2537
        %v2539 = vshll.u32 %v2344, 16
        %v2541 = vrot.slane %v2539, 1
        %v2542 = vsel %vm766, %v2538, %v2541
        %v2543 = vshrl.u32 %v2346, 16
        %v2545 = vshll.u32 %v2346, 16
        %v2547 = vrot.slane %v2545, 1
        %v2548 = vor.u32 %v2543, %v2547
        %v2549 = vshll.u32 %v2348, 16
        %v2551 = vrot.slane %v2549, 1
        %v2552 = vsel %vm766, %v2548, %v2551
        %v2561 = vrot.slane %v2190, 1
        %v2562 = vrot.slane %v2192, 1
        %v2563 = vsel %vm1234, %v2561, %v2562
        %v2564 = vrot.slane %v2194, 1
        %v2565 = vrot.slane %v2196, 1
        %v2566 = vsel %vm1234, %v2564, %v2565
        %v2567 = vrot.slane %v2198, 1
        %v2568 = vrot.slane %v2200, 1
        %v2569 = vsel %vm1234, %v2567, %v2568
        %v2570 = vrot.slane %v2202, 1
        %v2571 = vrot.slane %v2204, 1
        %v2572 = vsel %vm1234, %v2570, %v2571
        %v2573 = vshrl.u32 %v2494, 16
        %v2575 = vshll.u32 %v2494, 16
        %v2577 = vrot.slane %v2575, 1
        %v2578 = vor.u32 %v2573, %v2577
        %v2579 = vshll.u32 %v2496, 16
        %v2581 = vrot.slane %v2579, 1
        %v2582 = vsel %vm766, %v2578, %v2581
        %v2583 = vshrl.u32 %v2498, 16
        %v2585 = vshll.u32 %v2498, 16
        %v2587 = vrot.slane %v2585, 1
        %v2588 = vor.u32 %v2583, %v2587
        %v2589 = vshll.u32 %v2500, 16
        %v2591 = vrot.slane %v2589, 1
        %v2592 = vsel %vm766, %v2588, %v2591
        %v2593 = vshrl.u32 %v2502, 16
        %v2595 = vshll.u32 %v2502, 16
        %v2597 = vrot.slane %v2595, 1
        %v2598 = vor.u32 %v2593, %v2597
        %v2599 = vshll.u32 %v2504, 16
        %v2601 = vrot.slane %v2599, 1
        %v2602 = vsel %vm766, %v2598, %v2601
        %v2603 = vshrl.u32 %v2506, 16
        %v2605 = vshll.u32 %v2506, 16
        %v2607 = vrot.slane %v2605, 1
        %v2608 = vor.u32 %v2603, %v2607
        %v2609 = vshll.u32 %v2508, 16
        %v2611 = vrot.slane %v2609, 1
        %v2612 = vsel %vm766, %v2608, %v2611
        %v2621 = vrot.slane %v2414, 1
        %v2622 = vrot.slane %v2416, 1
        %v2623 = vsel %vm1234, %v2621, %v2622
        %v2624 = vrot.slane %v2418, 1
        %v2625 = vrot.slane %v2420, 1
        %v2626 = vsel %vm1234, %v2624, %v2625
        %v2627 = vrot.slane %v2422, 1
        %v2628 = vrot.slane %v2424, 1
        %v2629 = vsel %vm1234, %v2627, %v2628
        %v2630 = vrot.slane %v2426, 1
        %v2631 = vrot.slane %v2428, 1
        %v2632 = vsel %vm1234, %v2630, %v2631
        %2637 = vrot.lane.b32.xlu0 %v2509, 24
        %v2638 = vpop.permute.xlu0 %2637
        %2639 = vrot.lane.b32.xlu0 %v2510, 24
        %v2640 = vpop.permute.xlu0 %2639
        %2641 = vrot.lane.b32.xlu0 %v2511, 24
        %v2642 = vpop.permute.xlu0 %2641
        %2643 = vrot.lane.b32.xlu0 %v2512, 24
        %v2644 = vpop.permute.xlu0 %2643
        %vm2645 = vcmask 195584
        %v2648 = vsel %vm2645, %v2563, %v2638
        %v2651 = vsel %vm2645, %v2566, %v2640
        %v2654 = vsel %vm2645, %v2569, %v2642
        %v2657 = vsel %vm2645, %v2572, %v2644
        %v2666 = vrot.slane %v2334, 1
        %v2667 = vrot.slane %v2336, 1
        %v2668 = vsel %vm1234, %v2666, %v2667
        %v2669 = vrot.slane %v2338, 1
        %v2670 = vrot.slane %v2340, 1
        %v2671 = vsel %vm1234, %v2669, %v2670
        %v2672 = vrot.slane %v2342, 1
        %v2673 = vrot.slane %v2344, 1
        %v2674 = vsel %vm1234, %v2672, %v2673
        %v2675 = vrot.slane %v2346, 1
        %v2676 = vrot.slane %v2348, 1
        %v2677 = vsel %vm1234, %v2675, %v2676
        %v2679 = vsel %vm2645, %v2668, %v2638
        %v2681 = vsel %vm2645, %v2671, %v2640
        %v2683 = vsel %vm2645, %v2674, %v2642
        %v2685 = vsel %vm2645, %v2677, %v2644
        %v2687 = vsel %vm2645, %v2623, %v2638
        %v2689 = vsel %vm2645, %v2626, %v2640
        %v2691 = vsel %vm2645, %v2629, %v2642
        %v2693 = vsel %vm2645, %v2632, %v2644
        %v2702 = vrot.slane %v2494, 1
        %v2703 = vrot.slane %v2496, 1
        %v2704 = vsel %vm1234, %v2702, %v2703
        %v2705 = vrot.slane %v2498, 1
        %v2706 = vrot.slane %v2500, 1
        %v2707 = vsel %vm1234, %v2705, %v2706
        %v2708 = vrot.slane %v2502, 1
        %v2709 = vrot.slane %v2504, 1
        %v2710 = vsel %vm1234, %v2708, %v2709
        %v2711 = vrot.slane %v2506, 1
        %v2712 = vrot.slane %v2508, 1
        %v2713 = vsel %vm1234, %v2711, %v2712
        %v2715 = vsel %vm2645, %v2704, %v2638
        %v2717 = vsel %vm2645, %v2707, %v2640
        %v2719 = vsel %vm2645, %v2710, %v2642
        %v2721 = vsel %vm2645, %v2713, %v2644
        %vm2722 = vsmask.f32 6400
        %v2723 = vshrl.u32 %v2190, 16
        %v2725 = vrot.slane %v2723, 1
        %v2726 = vshll.u32 %v2190, 16
        %v2728 = vrot.slane %v2726, 2
        %v2729 = vor.u32 %v2725, %v2728
        %v2730 = vshrl.u32 %v2192, 16
        %v2732 = vrot.slane %v2730, 1
        %v2733 = vshll.u32 %v2192, 16
        %v2735 = vrot.slane %v2733, 2
        %v2736 = vor.u32 %v2732, %v2735
        %v2737 = vsel %vm2722, %v2729, %v2736
        %v2738 = vshrl.u32 %v2194, 16
        %v2740 = vrot.slane %v2738, 1
        %v2741 = vshll.u32 %v2194, 16
        %v2743 = vrot.slane %v2741, 2
        %v2744 = vor.u32 %v2740, %v2743
        %v2745 = vshrl.u32 %v2196, 16
        %v2747 = vrot.slane %v2745, 1
        %v2748 = vshll.u32 %v2196, 16
        %v2750 = vrot.slane %v2748, 2
        %v2751 = vor.u32 %v2747, %v2750
        %v2752 = vsel %vm2722, %v2744, %v2751
        %v2753 = vshrl.u32 %v2198, 16
        %v2755 = vrot.slane %v2753, 1
        %v2756 = vshll.u32 %v2198, 16
        %v2758 = vrot.slane %v2756, 2
        %v2759 = vor.u32 %v2755, %v2758
        %v2760 = vshrl.u32 %v2200, 16
        %v2762 = vrot.slane %v2760, 1
        %v2763 = vshll.u32 %v2200, 16
        %v2765 = vrot.slane %v2763, 2
        %v2766 = vor.u32 %v2762, %v2765
        %v2767 = vsel %vm2722, %v2759, %v2766
        %v2768 = vshrl.u32 %v2202, 16
        %v2770 = vrot.slane %v2768, 1
        %v2771 = vshll.u32 %v2202, 16
        %v2773 = vrot.slane %v2771, 2
        %v2774 = vor.u32 %v2770, %v2773
        %v2775 = vshrl.u32 %v2204, 16
        %v2777 = vrot.slane %v2775, 1
        %v2778 = vshll.u32 %v2204, 16
        %v2780 = vrot.slane %v2778, 2
        %v2781 = vor.u32 %v2777, %v2780
        %v2782 = vsel %vm2722, %v2774, %v2781
        %v2783 = vshrl.u32 %v2414, 16
        %v2785 = vrot.slane %v2783, 1
        %v2786 = vshll.u32 %v2414, 16
        %v2788 = vrot.slane %v2786, 2
        %v2789 = vor.u32 %v2785, %v2788
        %v2790 = vshrl.u32 %v2416, 16
        %v2792 = vrot.slane %v2790, 1
        %v2793 = vshll.u32 %v2416, 16
        %v2795 = vrot.slane %v2793, 2
        %v2796 = vor.u32 %v2792, %v2795
        %v2797 = vsel %vm2722, %v2789, %v2796
        %v2798 = vshrl.u32 %v2418, 16
        %v2800 = vrot.slane %v2798, 1
        %v2801 = vshll.u32 %v2418, 16
        %v2803 = vrot.slane %v2801, 2
        %v2804 = vor.u32 %v2800, %v2803
        %v2805 = vshrl.u32 %v2420, 16
        %v2807 = vrot.slane %v2805, 1
        %v2808 = vshll.u32 %v2420, 16
        %v2810 = vrot.slane %v2808, 2
        %v2811 = vor.u32 %v2807, %v2810
        %v2812 = vsel %vm2722, %v2804, %v2811
        %v2813 = vshrl.u32 %v2422, 16
        %v2815 = vrot.slane %v2813, 1
        %v2816 = vshll.u32 %v2422, 16
        %v2818 = vrot.slane %v2816, 2
        %v2819 = vor.u32 %v2815, %v2818
        %v2820 = vshrl.u32 %v2424, 16
        %v2822 = vrot.slane %v2820, 1
        %v2823 = vshll.u32 %v2424, 16
        %v2825 = vrot.slane %v2823, 2
        %v2826 = vor.u32 %v2822, %v2825
        %v2827 = vsel %vm2722, %v2819, %v2826
        %v2828 = vshrl.u32 %v2426, 16
        %v2830 = vrot.slane %v2828, 1
        %v2831 = vshll.u32 %v2426, 16
        %v2833 = vrot.slane %v2831, 2
        %v2834 = vor.u32 %v2830, %v2833
        %v2835 = vshrl.u32 %v2428, 16
        %v2837 = vrot.slane %v2835, 1
        %v2838 = vshll.u32 %v2428, 16
        %v2840 = vrot.slane %v2838, 2
        %v2841 = vor.u32 %v2837, %v2840
        %v2842 = vsel %vm2722, %v2834, %v2841
        %v2843 = vld [vmem:[%s5] sm:$0xf]
        %v2844 = vld [vmem:[%s5 + $0x4] sm:$0xf]
        %v2845 = vld [vmem:[%s5 + $0x8] sm:$0xf]
        %v2846 = vld [vmem:[%s6] sm:$0xf]
        %v2847 = vld [vmem:[%s6 + $0x4] sm:$0xf]
        %v2848 = vld [vmem:[%s6 + $0x8] sm:$0xf]
        %v2849 = vld [vmem:[%s6 + $0xc] sm:$0x3]
        %v2854 = vunpack.c.l.b16 %v2846
        %v2855 = vunpack.c.l.b16 %v2847
        %v2856 = vunpack.c.l.b16 %v2848
        %v2857 = vunpack.c.l.b16 %v2849
        %v2858 = vpack.c.b16 %v2855, %v2854
        %v2859 = vpack.c.b16 %v2857, %v2856
        %vm2861 = vcmask 228352
        %v2862 = vsel %vm2861, %v2648, 0
        %v2864 = vsel %vm2861, %v2651, 0
        %v2866 = vsel %vm2861, %v2654, 0
        %v2868 = vsel %vm2861, %v2657, 0
        %v2870 = vsel %vm2861, %v2679, 0
        %v2872 = vsel %vm2861, %v2681, 0
        %v2874 = vsel %vm2861, %v2683, 0
        %v2876 = vsel %vm2861, %v2685, 0
        %v2878 = vsel %vm2861, %v2687, 0
        %v2880 = vsel %vm2861, %v2689, 0
        %v2882 = vsel %vm2861, %v2691, 0
        %v2884 = vsel %vm2861, %v2693, 0
        %v2886 = vsel %vm2861, %v2715, 0
        %v2888 = vsel %vm2861, %v2717, 0
        %v2890 = vsel %vm2861, %v2719, 0
        %v2892 = vsel %vm2861, %v2721, 0
        %vm2894 = vcmask 1045504
        %v2896 = vsel %vm2894, %v2859, 0
        %2898 = vmatprep.subr.bf16.mxu0 0
        %2899 = vmatpush1.bf16.msra.mxu0 %v2858
        %2900 = vmatprep.subr.bf16.mxu0 0
        %2901 = vmatpush1.bf16.msra.mxu0 %v2896
        %2902 = vmatprep.subr.bf16.mxu0 0
        %2903 = vmatpush1.bf16.msra.mxu0 0
        %2904 = vmatprep.subr.bf16.mxu0 0
        %2905 = vmatpush1.bf16.msra.mxu0 0
        %2906 = vmatprep.subr.bf16.mxu0 0
        %2907 = vmatpush1.bf16.msra.mxu0 0
        %2908 = vmatprep.subr.bf16.mxu0 0
        %2909 = vmatpush1.bf16.msra.mxu0 0
        %2910 = vmatprep.subr.bf16.mxu0 0
        %2911 = vmatpush1.bf16.msra.mxu0 0
        %2912 = vmatprep.subr.bf16.mxu0 0
        %2913 = vmatpush1.bf16.msra.mxu0 0
        %2914 = vmatprep.subr.bf16.mxu0 0
        %2915 = vmatpush1.bf16.msra.mxu0 0
        %2916 = vmatprep.subr.bf16.mxu0 0
        %2917 = vmatpush1.bf16.msra.mxu0 0
        %2918 = vmatprep.subr.bf16.mxu0 0
        %2919 = vmatpush1.bf16.msra.mxu0 0
        %2920 = vmatprep.subr.bf16.mxu0 0
        %2921 = vmatpush1.bf16.msra.mxu0 0
        %2922 = vmatprep.subr.bf16.mxu0 0
        %2923 = vmatpush1.bf16.msra.mxu0 0
        %2924 = vmatprep.subr.bf16.mxu0 0
        %2925 = vmatpush1.bf16.msra.mxu0 0
        %2926 = vmatprep.subr.bf16.mxu0 0
        %2927 = vmatpush1.bf16.msra.mxu0 0
        %2928 = vmatprep.subr.bf16.mxu0 0
        %2929 = vmatpush1.bf16.msra.mxu0 0
        %2930 = vmatprep.mubr.bf16.mxu0 0
        %2931 = vmatmul.mubr.bf16.gmra.mrb[0].mxu0 %v2862
        %v2932 = vpop.f32.mrb[0].mxu0
        %v2933 = vadd.f32 0.0, %v2932
        %v2934 = vpop.f32.mrb[0].mxu0
        %v2935 = vpop.f32.mrb[0].mxu0
        %v2936 = vadd.f32 0.0, %v2935
        %v2937 = vpop.f32.mrb[0].mxu0
        %2938 = vmatprep.mubr.bf16.mxu0 0
        %2939 = vmatmul.mubr.bf16.gmra.mrb[0].mxu0 %v2864
        %v2940 = vpop.f32.mrb[0].mxu0
        %v2941 = vadd.f32 0.0, %v2940
        %v2942 = vpop.f32.mrb[0].mxu0
        %v2943 = vpop.f32.mrb[0].mxu0
        %v2944 = vadd.f32 0.0, %v2943
        %v2945 = vpop.f32.mrb[0].mxu0
        %2946 = vmatprep.mubr.bf16.mxu0 0
        %2947 = vmatmul.mubr.bf16.gmra.mrb[0].mxu0 %v2866
        %v2948 = vpop.f32.mrb[0].mxu0
        %v2949 = vadd.f32 0.0, %v2948
        %v2950 = vpop.f32.mrb[0].mxu0
        %v2951 = vpop.f32.mrb[0].mxu0
        %v2952 = vadd.f32 0.0, %v2951
        %v2953 = vpop.f32.mrb[0].mxu0
        %2954 = vmatprep.mubr.bf16.mxu0 0
        %2955 = vmatmul.mubr.bf16.gmra.mrb[0].mxu0 %v2868
        %v2956 = vpop.f32.mrb[0].mxu0
        %v2957 = vadd.f32 0.0, %v2956
        %v2958 = vpop.f32.mrb[0].mxu0
        %v2959 = vpop.f32.mrb[0].mxu0
        %v2960 = vadd.f32 0.0, %v2959
        %v2961 = vpop.f32.mrb[0].mxu0
        %2962 = vmatprep.mubr.bf16.mxu0 0
        %2963 = vmatmul.mubr.bf16.gmra.mrb[0].mxu0 %v2870
        %v2964 = vpop.f32.mrb[0].mxu0
        %v2965 = vadd.f32 0.0, %v2964
        %v2966 = vpop.f32.mrb[0].mxu0
        %v2967 = vpop.f32.mrb[0].mxu0
        %v2968 = vadd.f32 0.0, %v2967
        %v2969 = vpop.f32.mrb[0].mxu0
        %2970 = vmatprep.mubr.bf16.mxu0 0
        %2971 = vmatmul.mubr.bf16.gmra.mrb[0].mxu0 %v2872
        %v2972 = vpop.f32.mrb[0].mxu0
        %v2973 = vadd.f32 0.0, %v2972
        %v2974 = vpop.f32.mrb[0].mxu0
        %v2975 = vpop.f32.mrb[0].mxu0
        %v2976 = vadd.f32 0.0, %v2975
        %v2977 = vpop.f32.mrb[0].mxu0
        %2978 = vmatprep.mubr.bf16.mxu0 0
        %2979 = vmatmul.mubr.bf16.gmra.mrb[0].mxu0 %v2874
        %v2980 = vpop.f32.mrb[0].mxu0
        %v2981 = vadd.f32 0.0, %v2980
        %v2982 = vpop.f32.mrb[0].mxu0
        %v2983 = vpop.f32.mrb[0].mxu0
        %v2984 = vadd.f32 0.0, %v2983
        %v2985 = vpop.f32.mrb[0].mxu0
        %2986 = vmatprep.mubr.bf16.mxu0 0
        %2987 = vmatmul.mubr.bf16.gmra.mrb[0].mxu0 %v2876
        %v2988 = vpop.f32.mrb[0].mxu0
        %v2989 = vadd.f32 0.0, %v2988
        %v2990 = vpop.f32.mrb[0].mxu0
        %v2991 = vpop.f32.mrb[0].mxu0
        %v2992 = vadd.f32 0.0, %v2991
        %v2993 = vpop.f32.mrb[0].mxu0
        %2994 = vmatprep.mubr.bf16.mxu0 0
        %2995 = vmatmul.mubr.bf16.gmra.mrb[0].mxu0 %v2878
        %v2996 = vpop.f32.mrb[0].mxu0
        %v2997 = vadd.f32 0.0, %v2996
        %v2998 = vpop.f32.mrb[0].mxu0
        %v2999 = vpop.f32.mrb[0].mxu0
        %v3000 = vadd.f32 0.0, %v2999
        %v3001 = vpop.f32.mrb[0].mxu0
        %3002 = vmatprep.mubr.bf16.mxu0 0
        %3003 = vmatmul.mubr.bf16.gmra.mrb[0].mxu0 %v2880
        %v3004 = vpop.f32.mrb[0].mxu0
        %v3005 = vadd.f32 0.0, %v3004
        %v3006 = vpop.f32.mrb[0].mxu0
        %v3007 = vpop.f32.mrb[0].mxu0
        %v3008 = vadd.f32 0.0, %v3007
        %v3009 = vpop.f32.mrb[0].mxu0
        %3010 = vmatprep.mubr.bf16.mxu0 0
        %3011 = vmatmul.mubr.bf16.gmra.mrb[0].mxu0 %v2882
        %v3012 = vpop.f32.mrb[0].mxu0
        %v3013 = vadd.f32 0.0, %v3012
        %v3014 = vpop.f32.mrb[0].mxu0
        %v3015 = vpop.f32.mrb[0].mxu0
        %v3016 = vadd.f32 0.0, %v3015
        %v3017 = vpop.f32.mrb[0].mxu0
        %3018 = vmatprep.mubr.bf16.mxu0 0
        %3019 = vmatmul.mubr.bf16.gmra.mrb[0].mxu0 %v2884
        %v3020 = vpop.f32.mrb[0].mxu0
        %v3021 = vadd.f32 0.0, %v3020
        %v3022 = vpop.f32.mrb[0].mxu0
        %v3023 = vpop.f32.mrb[0].mxu0
        %v3024 = vadd.f32 0.0, %v3023
        %v3025 = vpop.f32.mrb[0].mxu0
        %3026 = vmatprep.mubr.bf16.mxu0 0
        %3027 = vmatmul.mubr.bf16.gmra.mrb[0].mxu0 %v2886
        %v3028 = vpop.f32.mrb[0].mxu0
        %v3029 = vadd.f32 0.0, %v3028
        %v3030 = vpop.f32.mrb[0].mxu0
        %v3031 = vpop.f32.mrb[0].mxu0
        %v3032 = vadd.f32 0.0, %v3031
        %v3033 = vpop.f32.mrb[0].mxu0
        %3034 = vmatprep.mubr.bf16.mxu0 0
        %3035 = vmatmul.mubr.bf16.gmra.mrb[0].mxu0 %v2888
        %v3036 = vpop.f32.mrb[0].mxu0
        %v3037 = vadd.f32 0.0, %v3036
        %v3038 = vpop.f32.mrb[0].mxu0
        %v3039 = vpop.f32.mrb[0].mxu0
        %v3040 = vadd.f32 0.0, %v3039
        %v3041 = vpop.f32.mrb[0].mxu0
        %3042 = vmatprep.mubr.bf16.mxu0 0
        %3043 = vmatmul.mubr.bf16.gmra.mrb[0].mxu0 %v2890
        %v3044 = vpop.f32.mrb[0].mxu0
        %v3045 = vadd.f32 0.0, %v3044
        %v3046 = vpop.f32.mrb[0].mxu0
        %v3047 = vpop.f32.mrb[0].mxu0
        %v3048 = vadd.f32 0.0, %v3047
        %v3049 = vpop.f32.mrb[0].mxu0
        %3050 = vmatprep.mubr.bf16.mxu0 0
        %3051 = vmatmul.mubr.bf16.gmra.mrb[0].mxu0 %v2892
        %v3052 = vpop.f32.mrb[0].mxu0
        %v3053 = vadd.f32 0.0, %v3052
        %v3054 = vpop.f32.mrb[0].mxu0
        %v3055 = vpop.f32.mrb[0].mxu0
        %v3056 = vadd.f32 0.0, %v3055
        %v3057 = vpop.f32.mrb[0].mxu0
        %3058 = vdwg.mxu0
        %v3062 = vunpack.c.l.b16 %v2843
        %v3063 = vunpack.c.l.b16 %v2844
        %v3064 = vunpack.c.l.b16 %v2845
        %v3065 = vpack.c.b16 %v3063, %v3062
        %v3066 = vpack.c.b16 %v3064, %v3064
        %v3069 = vsel %vm2645, %v2522, 0
        %v3072 = vsel %vm2645, %v2532, 0
        %v3075 = vsel %vm2645, %v2542, 0
        %v3078 = vsel %vm2645, %v2552, 0
        %v3080 = vsel %vm2645, %v2563, 0
        %v3082 = vsel %vm2645, %v2566, 0
        %v3084 = vsel %vm2645, %v2569, 0
        %v3086 = vsel %vm2645, %v2572, 0
        %v3089 = vsel %vm2645, %v2582, 0
        %v3092 = vsel %vm2645, %v2592, 0
        %v3095 = vsel %vm2645, %v2602, 0
        %v3098 = vsel %vm2645, %v2612, 0
        %v3100 = vsel %vm2645, %v2623, 0
        %v3102 = vsel %vm2645, %v2626, 0
        %v3104 = vsel %vm2645, %v2629, 0
        %v3106 = vsel %vm2645, %v2632, 0
        %vm3108 = vcmask 1043456
        %v3110 = vsel %vm3108, %v3066, 0
        %3112 = vmatprep.subr.bf16.mxu0 0
        %3113 = vmatpush1.bf16.msra.mxu0 %v3065
        %3114 = vmatprep.subr.bf16.mxu0 0
        %3115 = vmatpush1.bf16.msra.mxu0 %v3110
        %3116 = vmatprep.subr.bf16.mxu0 0
        %3117 = vmatpush1.bf16.msra.mxu0 0
        %3118 = vmatprep.subr.bf16.mxu0 0
        %3119 = vmatpush1.bf16.msra.mxu0 0
        %3120 = vmatprep.subr.bf16.mxu0 0
        %3121 = vmatpush1.bf16.msra.mxu0 0
        %3122 = vmatprep.subr.bf16.mxu0 0
        %3123 = vmatpush1.bf16.msra.mxu0 0
        %3124 = vmatprep.subr.bf16.mxu0 0
        %3125 = vmatpush1.bf16.msra.mxu0 0
        %3126 = vmatprep.subr.bf16.mxu0 0
        %3127 = vmatpush1.bf16.msra.mxu0 0
        %3128 = vmatprep.subr.bf16.mxu0 0
        %3129 = vmatpush1.bf16.msra.mxu0 0
        %3130 = vmatprep.subr.bf16.mxu0 0
        %3131 = vmatpush1.bf16.msra.mxu0 0
        %3132 = vmatprep.subr.bf16.mxu0 0
        %3133 = vmatpush1.bf16.msra.mxu0 0
        %3134 = vmatprep.subr.bf16.mxu0 0
        %3135 = vmatpush1.bf16.msra.mxu0 0
        %3136 = vmatprep.subr.bf16.mxu0 0
        %3137 = vmatpush1.bf16.msra.mxu0 0
        %3138 = vmatprep.subr.bf16.mxu0 0
        %3139 = vmatpush1.bf16.msra.mxu0 0
        %3140 = vmatprep.subr.bf16.mxu0 0
        %3141 = vmatpush1.bf16.msra.mxu0 0
        %3142 = vmatprep.subr.bf16.mxu0 0
        %3143 = vmatpush1.bf16.msra.mxu0 0
        %3144 = vmatprep.mubr.bf16.mxu0 0
        %3145 = vmatmul.mubr.bf16.gmra.mrb[0].mxu0 %v3069
        %v3146 = vpop.f32.mrb[0].mxu0
        %v3147 = vadd.f32 %v2933, %v3146
        %v3148 = vpop.f32.mrb[0].mxu0
        %v3149 = vpop.f32.mrb[0].mxu0
        %v3150 = vadd.f32 %v2936, %v3149
        %v3151 = vpop.f32.mrb[0].mxu0
        %3152 = vmatprep.mubr.bf16.mxu0 0
        %3153 = vmatmul.mubr.bf16.gmra.mrb[0].mxu0 %v3072
        %v3154 = vpop.f32.mrb[0].mxu0
        %v3155 = vadd.f32 %v2941, %v3154
        %v3156 = vpop.f32.mrb[0].mxu0
        %v3157 = vpop.f32.mrb[0].mxu0
        %v3158 = vadd.f32 %v2944, %v3157
        %v3159 = vpop.f32.mrb[0].mxu0
        %3160 = vmatprep.mubr.bf16.mxu0 0
        %3161 = vmatmul.mubr.bf16.gmra.mrb[0].mxu0 %v3075
        %v3162 = vpop.f32.mrb[0].mxu0
        %v3163 = vadd.f32 %v2949, %v3162
        %v3164 = vpop.f32.mrb[0].mxu0
        %v3165 = vpop.f32.mrb[0].mxu0
        %v3166 = vadd.f32 %v2952, %v3165
        %v3167 = vpop.f32.mrb[0].mxu0
        %3168 = vmatprep.mubr.bf16.mxu0 0
        %3169 = vmatmul.mubr.bf16.gmra.mrb[0].mxu0 %v3078
        %v3170 = vpop.f32.mrb[0].mxu0
        %v3171 = vadd.f32 %v2957, %v3170
        %v3172 = vpop.f32.mrb[0].mxu0
        %v3173 = vpop.f32.mrb[0].mxu0
        %v3174 = vadd.f32 %v2960, %v3173
        %v3175 = vpop.f32.mrb[0].mxu0
        %3176 = vmatprep.mubr.bf16.mxu0 0
        %3177 = vmatmul.mubr.bf16.gmra.mrb[0].mxu0 %v3080
        %v3178 = vpop.f32.mrb[0].mxu0
        %v3179 = vadd.f32 %v2965, %v3178
        %v3180 = vpop.f32.mrb[0].mxu0
        %v3181 = vpop.f32.mrb[0].mxu0
        %v3182 = vadd.f32 %v2968, %v3181
        %v3183 = vpop.f32.mrb[0].mxu0
        %3184 = vmatprep.mubr.bf16.mxu0 0
        %3185 = vmatmul.mubr.bf16.gmra.mrb[0].mxu0 %v3082
        %v3186 = vpop.f32.mrb[0].mxu0
        %v3187 = vadd.f32 %v2973, %v3186
        %v3188 = vpop.f32.mrb[0].mxu0
        %v3189 = vpop.f32.mrb[0].mxu0
        %v3190 = vadd.f32 %v2976, %v3189
        %v3191 = vpop.f32.mrb[0].mxu0
        %3192 = vmatprep.mubr.bf16.mxu0 0
        %3193 = vmatmul.mubr.bf16.gmra.mrb[0].mxu0 %v3084
        %v3194 = vpop.f32.mrb[0].mxu0
        %v3195 = vadd.f32 %v2981, %v3194
        %v3196 = vpop.f32.mrb[0].mxu0
        %v3197 = vpop.f32.mrb[0].mxu0
        %v3198 = vadd.f32 %v2984, %v3197
        %v3199 = vpop.f32.mrb[0].mxu0
        %3200 = vmatprep.mubr.bf16.mxu0 0
        %3201 = vmatmul.mubr.bf16.gmra.mrb[0].mxu0 %v3086
        %v3202 = vpop.f32.mrb[0].mxu0
        %v3203 = vadd.f32 %v2989, %v3202
        %v3204 = vpop.f32.mrb[0].mxu0
        %v3205 = vpop.f32.mrb[0].mxu0
        %v3206 = vadd.f32 %v2992, %v3205
        %v3207 = vpop.f32.mrb[0].mxu0
        %3208 = vmatprep.mubr.bf16.mxu0 0
        %3209 = vmatmul.mubr.bf16.gmra.mrb[0].mxu0 %v3089
        %v3210 = vpop.f32.mrb[0].mxu0
        %v3211 = vadd.f32 %v2997, %v3210
        %v3212 = vpop.f32.mrb[0].mxu0
        %v3213 = vpop.f32.mrb[0].mxu0
        %v3214 = vadd.f32 %v3000, %v3213
        %v3215 = vpop.f32.mrb[0].mxu0
        %3216 = vmatprep.mubr.bf16.mxu0 0
        %3217 = vmatmul.mubr.bf16.gmra.mrb[0].mxu0 %v3092
        %v3218 = vpop.f32.mrb[0].mxu0
        %v3219 = vadd.f32 %v3005, %v3218
        %v3220 = vpop.f32.mrb[0].mxu0
        %v3221 = vpop.f32.mrb[0].mxu0
        %v3222 = vadd.f32 %v3008, %v3221
        %v3223 = vpop.f32.mrb[0].mxu0
        %3224 = vmatprep.mubr.bf16.mxu0 0
        %3225 = vmatmul.mubr.bf16.gmra.mrb[0].mxu0 %v3095
        %v3226 = vpop.f32.mrb[0].mxu0
        %v3227 = vadd.f32 %v3013, %v3226
        %v3228 = vpop.f32.mrb[0].mxu0
        %v3229 = vpop.f32.mrb[0].mxu0
        %v3230 = vadd.f32 %v3016, %v3229
        %v3231 = vpop.f32.mrb[0].mxu0
        %3232 = vmatprep.mubr.bf16.mxu0 0
        %3233 = vmatmul.mubr.bf16.gmra.mrb[0].mxu0 %v3098
        %v3234 = vpop.f32.mrb[0].mxu0
        %v3235 = vadd.f32 %v3021, %v3234
        %v3236 = vpop.f32.mrb[0].mxu0
        %v3237 = vpop.f32.mrb[0].mxu0
        %v3238 = vadd.f32 %v3024, %v3237
        %v3239 = vpop.f32.mrb[0].mxu0
        %3240 = vmatprep.mubr.bf16.mxu0 0
        %3241 = vmatmul.mubr.bf16.gmra.mrb[0].mxu0 %v3100
        %v3242 = vpop.f32.mrb[0].mxu0
        %v3243 = vadd.f32 %v3029, %v3242
        %v3244 = vpop.f32.mrb[0].mxu0
        %v3245 = vpop.f32.mrb[0].mxu0
        %v3246 = vadd.f32 %v3032, %v3245
        %v3247 = vpop.f32.mrb[0].mxu0
        %3248 = vmatprep.mubr.bf16.mxu0 0
        %3249 = vmatmul.mubr.bf16.gmra.mrb[0].mxu0 %v3102
        %v3250 = vpop.f32.mrb[0].mxu0
        %v3251 = vadd.f32 %v3037, %v3250
        %v3252 = vpop.f32.mrb[0].mxu0
        %v3253 = vpop.f32.mrb[0].mxu0
        %v3254 = vadd.f32 %v3040, %v3253
        %v3255 = vpop.f32.mrb[0].mxu0
        %3256 = vmatprep.mubr.bf16.mxu0 0
        %3257 = vmatmul.mubr.bf16.gmra.mrb[0].mxu0 %v3104
        %v3258 = vpop.f32.mrb[0].mxu0
        %v3259 = vadd.f32 %v3045, %v3258
        %v3260 = vpop.f32.mrb[0].mxu0
        %v3261 = vpop.f32.mrb[0].mxu0
        %v3262 = vadd.f32 %v3048, %v3261
        %v3263 = vpop.f32.mrb[0].mxu0
        %3264 = vmatprep.mubr.bf16.mxu0 0
        %3265 = vmatmul.mubr.bf16.gmra.mrb[0].mxu0 %v3106
        %v3266 = vpop.f32.mrb[0].mxu0
        %v3267 = vadd.f32 %v3053, %v3266
        %v3268 = vpop.f32.mrb[0].mxu0
        %v3269 = vpop.f32.mrb[0].mxu0
        %v3270 = vadd.f32 %v3056, %v3269
        %v3271 = vpop.f32.mrb[0].mxu0
        %3272 = vdwg.mxu0
        %v3273 = vld [vmem:[%s7] sm:$0xf]
        %v3274 = vld [vmem:[%s7 + $0x4] sm:$0xf]
        %v3275 = vld [vmem:[%s7 + $0x8] sm:$0xf]
        %v3279 = vunpack.c.l.b16 %v3273
        %v3280 = vunpack.c.l.b16 %v3274
        %v3281 = vunpack.c.l.b16 %v3275
        %v3282 = vpack.c.b16 %v3280, %v3279
        %v3283 = vpack.c.b16 %v3281, %v3281
        %v3285 = vsel %vm2645, %v2668, 0
        %v3287 = vsel %vm2645, %v2671, 0
        %v3289 = vsel %vm2645, %v2674, 0
        %v3291 = vsel %vm2645, %v2677, 0
        %v3294 = vsel %vm2645, %v2737, 0
        %v3297 = vsel %vm2645, %v2752, 0
        %v3300 = vsel %vm2645, %v2767, 0
        %v3303 = vsel %vm2645, %v2782, 0
        %v3305 = vsel %vm2645, %v2704, 0
        %v3307 = vsel %vm2645, %v2707, 0
        %v3309 = vsel %vm2645, %v2710, 0
        %v3311 = vsel %vm2645, %v2713, 0
        %v3314 = vsel %vm2645, %v2797, 0
        %v3317 = vsel %vm2645, %v2812, 0
        %v3320 = vsel %vm2645, %v2827, 0
        %v3323 = vsel %vm2645, %v2842, 0
        %v3326 = vsel %vm3108, %v3283, 0
        %3328 = vmatprep.subr.bf16.mxu0 0
        %3329 = vmatpush1.bf16.msra.mxu0 %v3282
        %3330 = vmatprep.subr.bf16.mxu0 0
        %3331 = vmatpush1.bf16.msra.mxu0 %v3326
        %3332 = vmatprep.subr.bf16.mxu0 0
        %3333 = vmatpush1.bf16.msra.mxu0 0
        %3334 = vmatprep.subr.bf16.mxu0 0
        %3335 = vmatpush1.bf16.msra.mxu0 0
        %3336 = vmatprep.subr.bf16.mxu0 0
        %3337 = vmatpush1.bf16.msra.mxu0 0
        %3338 = vmatprep.subr.bf16.mxu0 0
        %3339 = vmatpush1.bf16.msra.mxu0 0
        %3340 = vmatprep.subr.bf16.mxu0 0
        %3341 = vmatpush1.bf16.msra.mxu0 0
        %3342 = vmatprep.subr.bf16.mxu0 0
        %3343 = vmatpush1.bf16.msra.mxu0 0
        %3344 = vmatprep.subr.bf16.mxu0 0
        %3345 = vmatpush1.bf16.msra.mxu0 0
        %3346 = vmatprep.subr.bf16.mxu0 0
        %3347 = vmatpush1.bf16.msra.mxu0 0
        %3348 = vmatprep.subr.bf16.mxu0 0
        %3349 = vmatpush1.bf16.msra.mxu0 0
        %3350 = vmatprep.subr.bf16.mxu0 0
        %3351 = vmatpush1.bf16.msra.mxu0 0
        %3352 = vmatprep.subr.bf16.mxu0 0
        %3353 = vmatpush1.bf16.msra.mxu0 0
        %3354 = vmatprep.subr.bf16.mxu0 0
        %3355 = vmatpush1.bf16.msra.mxu0 0
        %3356 = vmatprep.subr.bf16.mxu0 0
        %3357 = vmatpush1.bf16.msra.mxu0 0
        %3358 = vmatprep.subr.bf16.mxu0 0
        %3359 = vmatpush1.bf16.msra.mxu0 0
        %3360 = vmatprep.mubr.bf16.mxu0 0
        %3361 = vmatmul.mubr.bf16.gmra.mrb[0].mxu0 %v3285
        %v3362 = vpop.f32.mrb[0].mxu0
        %v3363 = vadd.f32 0.0, %v3362
        %v3364 = vpop.f32.mrb[0].mxu0
        %v3365 = vpop.f32.mrb[0].mxu0
        %v3366 = vadd.f32 0.0, %v3365
        %v3367 = vpop.f32.mrb[0].mxu0
        %3368 = vmatprep.mubr.bf16.mxu0 0
        %3369 = vmatmul.mubr.bf16.gmra.mrb[0].mxu0 %v3287
        %v3370 = vpop.f32.mrb[0].mxu0
        %v3371 = vadd.f32 0.0, %v3370
        %v3372 = vpop.f32.mrb[0].mxu0
        %v3373 = vpop.f32.mrb[0].mxu0
        %v3374 = vadd.f32 0.0, %v3373
        %v3375 = vpop.f32.mrb[0].mxu0
        %3376 = vmatprep.mubr.bf16.mxu0 0
        %3377 = vmatmul.mubr.bf16.gmra.mrb[0].mxu0 %v3289
        %v3378 = vpop.f32.mrb[0].mxu0
        %v3379 = vadd.f32 0.0, %v3378
        %v3380 = vpop.f32.mrb[0].mxu0
        %v3381 = vpop.f32.mrb[0].mxu0
        %v3382 = vadd.f32 0.0, %v3381
        %v3383 = vpop.f32.mrb[0].mxu0
        %3384 = vmatprep.mubr.bf16.mxu0 0
        %3385 = vmatmul.mubr.bf16.gmra.mrb[0].mxu0 %v3291
        %v3386 = vpop.f32.mrb[0].mxu0
        %v3387 = vadd.f32 0.0, %v3386
        %v3388 = vpop.f32.mrb[0].mxu0
        %v3389 = vpop.f32.mrb[0].mxu0
        %v3390 = vadd.f32 0.0, %v3389
        %v3391 = vpop.f32.mrb[0].mxu0
        %3392 = vmatprep.mubr.bf16.mxu0 0
        %3393 = vmatmul.mubr.bf16.gmra.mrb[0].mxu0 %v3294
        %v3394 = vpop.f32.mrb[0].mxu0
        %v3395 = vadd.f32 0.0, %v3394
        %v3396 = vpop.f32.mrb[0].mxu0
        %v3397 = vpop.f32.mrb[0].mxu0
        %v3398 = vadd.f32 0.0, %v3397
        %v3399 = vpop.f32.mrb[0].mxu0
        %3400 = vmatprep.mubr.bf16.mxu0 0
        %3401 = vmatmul.mubr.bf16.gmra.mrb[0].mxu0 %v3297
        %v3402 = vpop.f32.mrb[0].mxu0
        %v3403 = vadd.f32 0.0, %v3402
        %v3404 = vpop.f32.mrb[0].mxu0
        %v3405 = vpop.f32.mrb[0].mxu0
        %v3406 = vadd.f32 0.0, %v3405
        %v3407 = vpop.f32.mrb[0].mxu0
        %3408 = vmatprep.mubr.bf16.mxu0 0
        %3409 = vmatmul.mubr.bf16.gmra.mrb[0].mxu0 %v3300
        %v3410 = vpop.f32.mrb[0].mxu0
        %v3411 = vadd.f32 0.0, %v3410
        %v3412 = vpop.f32.mrb[0].mxu0
        %v3413 = vpop.f32.mrb[0].mxu0
        %v3414 = vadd.f32 0.0, %v3413
        %v3415 = vpop.f32.mrb[0].mxu0
        %3416 = vmatprep.mubr.bf16.mxu0 0
        %3417 = vmatmul.mubr.bf16.gmra.mrb[0].mxu0 %v3303
        %v3418 = vpop.f32.mrb[0].mxu0
        %v3419 = vadd.f32 0.0, %v3418
        %v3420 = vpop.f32.mrb[0].mxu0
        %v3421 = vpop.f32.mrb[0].mxu0
        %v3422 = vadd.f32 0.0, %v3421
        %v3423 = vpop.f32.mrb[0].mxu0
        %3424 = vmatprep.mubr.bf16.mxu0 0
        %3425 = vmatmul.mubr.bf16.gmra.mrb[0].mxu0 %v3305
        %v3426 = vpop.f32.mrb[0].mxu0
        %v3427 = vadd.f32 0.0, %v3426
        %v3428 = vpop.f32.mrb[0].mxu0
        %v3429 = vpop.f32.mrb[0].mxu0
        %v3430 = vadd.f32 0.0, %v3429
        %v3431 = vpop.f32.mrb[0].mxu0
        %3432 = vmatprep.mubr.bf16.mxu0 0
        %3433 = vmatmul.mubr.bf16.gmra.mrb[0].mxu0 %v3307
        %v3434 = vpop.f32.mrb[0].mxu0
        %v3435 = vadd.f32 0.0, %v3434
        %v3436 = vpop.f32.mrb[0].mxu0
        %v3437 = vpop.f32.mrb[0].mxu0
        %v3438 = vadd.f32 0.0, %v3437
        %v3439 = vpop.f32.mrb[0].mxu0
        %3440 = vmatprep.mubr.bf16.mxu0 0
        %3441 = vmatmul.mubr.bf16.gmra.mrb[0].mxu0 %v3309
        %v3442 = vpop.f32.mrb[0].mxu0
        %v3443 = vadd.f32 0.0, %v3442
        %v3444 = vpop.f32.mrb[0].mxu0
        %v3445 = vpop.f32.mrb[0].mxu0
        %v3446 = vadd.f32 0.0, %v3445
        %v3447 = vpop.f32.mrb[0].mxu0
        %3448 = vmatprep.mubr.bf16.mxu0 0
        %3449 = vmatmul.mubr.bf16.gmra.mrb[0].mxu0 %v3311
        %v3450 = vpop.f32.mrb[0].mxu0
        %v3451 = vadd.f32 0.0, %v3450
        %v3452 = vpop.f32.mrb[0].mxu0
        %v3453 = vpop.f32.mrb[0].mxu0
        %v3454 = vadd.f32 0.0, %v3453
        %v3455 = vpop.f32.mrb[0].mxu0
        %3456 = vmatprep.mubr.bf16.mxu0 0
        %3457 = vmatmul.mubr.bf16.gmra.mrb[0].mxu0 %v3314
        %v3458 = vpop.f32.mrb[0].mxu0
        %v3459 = vadd.f32 0.0, %v3458
        %v3460 = vpop.f32.mrb[0].mxu0
        %v3461 = vpop.f32.mrb[0].mxu0
        %v3462 = vadd.f32 0.0, %v3461
        %v3463 = vpop.f32.mrb[0].mxu0
        %3464 = vmatprep.mubr.bf16.mxu0 0
        %3465 = vmatmul.mubr.bf16.gmra.mrb[0].mxu0 %v3317
        %v3466 = vpop.f32.mrb[0].mxu0
        %v3467 = vadd.f32 0.0, %v3466
        %v3468 = vpop.f32.mrb[0].mxu0
        %v3469 = vpop.f32.mrb[0].mxu0
        %v3470 = vadd.f32 0.0, %v3469
        %v3471 = vpop.f32.mrb[0].mxu0
        %3472 = vmatprep.mubr.bf16.mxu0 0
        %3473 = vmatmul.mubr.bf16.gmra.mrb[0].mxu0 %v3320
        %v3474 = vpop.f32.mrb[0].mxu0
        %v3475 = vadd.f32 0.0, %v3474
        %v3476 = vpop.f32.mrb[0].mxu0
        %v3477 = vpop.f32.mrb[0].mxu0
        %v3478 = vadd.f32 0.0, %v3477
        %v3479 = vpop.f32.mrb[0].mxu0
        %3480 = vmatprep.mubr.bf16.mxu0 0
        %3481 = vmatmul.mubr.bf16.gmra.mrb[0].mxu0 %v3323
        %v3482 = vpop.f32.mrb[0].mxu0
        %v3483 = vadd.f32 0.0, %v3482
        %v3484 = vpop.f32.mrb[0].mxu0
        %v3485 = vpop.f32.mrb[0].mxu0
        %v3486 = vadd.f32 0.0, %v3485
        %v3487 = vpop.f32.mrb[0].mxu0
        %3488 = vdwg.mxu0
        %v3489 = vadd.f32 %v3147, %v3363
        %v3490 = vadd.f32 %v3150, %v3366
        %v3491 = vadd.f32 %v3155, %v3371
        %v3492 = vadd.f32 %v3158, %v3374
        %v3493 = vadd.f32 %v3163, %v3379
        %v3494 = vadd.f32 %v3166, %v3382
        %v3495 = vadd.f32 %v3171, %v3387
        %v3496 = vadd.f32 %v3174, %v3390
        %v3497 = vadd.f32 %v3179, %v3395
        %v3498 = vadd.f32 %v3182, %v3398
        %v3499 = vadd.f32 %v3187, %v3403
        %v3500 = vadd.f32 %v3190, %v3406
        %v3501 = vadd.f32 %v3195, %v3411
        %v3502 = vadd.f32 %v3198, %v3414
        %v3503 = vadd.f32 %v3203, %v3419
        %v3504 = vadd.f32 %v3206, %v3422
        %v3505 = vadd.f32 %v3211, %v3427
        %v3506 = vadd.f32 %v3214, %v3430
        %v3507 = vadd.f32 %v3219, %v3435
        %v3508 = vadd.f32 %v3222, %v3438
        %v3509 = vadd.f32 %v3227, %v3443
        %v3510 = vadd.f32 %v3230, %v3446
        %v3511 = vadd.f32 %v3235, %v3451
        %v3512 = vadd.f32 %v3238, %v3454
        %v3513 = vadd.f32 %v3243, %v3459
        %v3514 = vadd.f32 %v3246, %v3462
        %v3515 = vadd.f32 %v3251, %v3467
        %v3516 = vadd.f32 %v3254, %v3470
        %v3517 = vadd.f32 %v3259, %v3475
        %v3518 = vadd.f32 %v3262, %v3478
        %v3519 = vadd.f32 %v3267, %v3483
        %v3520 = vadd.f32 %v3270, %v3486
        %v3521 = vld [vmem:[%s8] sm:$0x1]
        %v3523 = vlaneseq
        %v3524 = vshrl.u32 %v3523, 7
        %v3525 = vsub.s32 0, %v3524
        %v3526 = vrot.slane %v3521, %v3525
        %v3528 = vadd.f32 %v3489, %v3526
        %v3529 = vadd.f32 %v3490, %v3526
        %v3530 = vadd.f32 %v3491, %v3526
        %v3531 = vadd.f32 %v3492, %v3526
        %v3532 = vadd.f32 %v3493, %v3526
        %v3533 = vadd.f32 %v3494, %v3526
        %v3534 = vadd.f32 %v3495, %v3526
        %v3535 = vadd.f32 %v3496, %v3526
        %v3536 = vadd.f32 %v3497, %v3526
        %v3537 = vadd.f32 %v3498, %v3526
        %v3538 = vadd.f32 %v3499, %v3526
        %v3539 = vadd.f32 %v3500, %v3526
        %v3540 = vadd.f32 %v3501, %v3526
        %v3541 = vadd.f32 %v3502, %v3526
        %v3542 = vadd.f32 %v3503, %v3526
        %v3543 = vadd.f32 %v3504, %v3526
        %v3544 = vadd.f32 %v3505, %v3526
        %v3545 = vadd.f32 %v3506, %v3526
        %v3546 = vadd.f32 %v3507, %v3526
        %v3547 = vadd.f32 %v3508, %v3526
        %v3548 = vadd.f32 %v3509, %v3526
        %v3549 = vadd.f32 %v3510, %v3526
        %v3550 = vadd.f32 %v3511, %v3526
        %v3551 = vadd.f32 %v3512, %v3526
        %v3552 = vadd.f32 %v3513, %v3526
        %v3553 = vadd.f32 %v3514, %v3526
        %v3554 = vadd.f32 %v3515, %v3526
        %v3555 = vadd.f32 %v3516, %v3526
        %v3556 = vadd.f32 %v3517, %v3526
        %v3557 = vadd.f32 %v3518, %v3526
        %v3558 = vadd.f32 %v3519, %v3526
        %v3559 = vadd.f32 %v3520, %v3526
        %3560 = vst.msk [vmem:[%s335] sm:$0xff] %vm863, %v3528
        %3561 = vst.msk [vmem:[%s335 + $0x8] sm:$0xff] %vm863, %v3529
        %3562 = vst.msk [vmem:[%s335 + $0x10] sm:$0xff] %vm863, %v3530
        %3563 = vst.msk [vmem:[%s335 + $0x18] sm:$0xff] %vm863, %v3531
        %3564 = vst.msk [vmem:[%s335 + $0x20] sm:$0xff] %vm863, %v3532
        %3565 = vst.msk [vmem:[%s335 + $0x28] sm:$0xff] %vm863, %v3533
        %3566 = vst.msk [vmem:[%s335 + $0x30] sm:$0xff] %vm863, %v3534
        %3567 = vst.msk [vmem:[%s335 + $0x38] sm:$0xff] %vm863, %v3535
        %3568 = vst.msk [vmem:[%s335 + $0x40] sm:$0xff] %vm863, %v3536
        %3569 = vst.msk [vmem:[%s335 + $0x48] sm:$0xff] %vm863, %v3537
        %3570 = vst.msk [vmem:[%s335 + $0x50] sm:$0xff] %vm863, %v3538
        %3571 = vst.msk [vmem:[%s335 + $0x58] sm:$0xff] %vm863, %v3539
        %3572 = vst.msk [vmem:[%s335 + $0x60] sm:$0xff] %vm863, %v3540
        %3573 = vst.msk [vmem:[%s335 + $0x68] sm:$0xff] %vm863, %v3541
        %3574 = vst.msk [vmem:[%s335 + $0x70] sm:$0xff] %vm863, %v3542
        %3575 = vst.msk [vmem:[%s335 + $0x78] sm:$0xff] %vm863, %v3543
        %3576 = vst.msk [vmem:[%s335 + $0x80] sm:$0xff] %vm863, %v3544
        %3577 = vst.msk [vmem:[%s335 + $0x88] sm:$0xff] %vm863, %v3545
        %3578 = vst.msk [vmem:[%s335 + $0x90] sm:$0xff] %vm863, %v3546
        %3579 = vst.msk [vmem:[%s335 + $0x98] sm:$0xff] %vm863, %v3547
        %3580 = vst.msk [vmem:[%s335 + $0xa0] sm:$0xff] %vm863, %v3548
        %3581 = vst.msk [vmem:[%s335 + $0xa8] sm:$0xff] %vm863, %v3549
        %3582 = vst.msk [vmem:[%s335 + $0xb0] sm:$0xff] %vm863, %v3550
        %3583 = vst.msk [vmem:[%s335 + $0xb8] sm:$0xff] %vm863, %v3551
        %3584 = vst.msk [vmem:[%s335 + $0xc0] sm:$0xff] %vm863, %v3552
        %3585 = vst.msk [vmem:[%s335 + $0xc8] sm:$0xff] %vm863, %v3553
        %3586 = vst.msk [vmem:[%s335 + $0xd0] sm:$0xff] %vm863, %v3554
        %3587 = vst.msk [vmem:[%s335 + $0xd8] sm:$0xff] %vm863, %v3555
        %3588 = vst.msk [vmem:[%s335 + $0xe0] sm:$0xff] %vm863, %v3556
        %3589 = vst.msk [vmem:[%s335 + $0xe8] sm:$0xff] %vm863, %v3557
        %3590 = vst.msk [vmem:[%s335 + $0xf0] sm:$0xff] %vm863, %v3558
        %3591 = vst.msk [vmem:[%s335 + $0xf8] sm:$0xff] %vm863, %v3559
        %s3592 = sand.u32 %s236, 1
        %s3593 = sand.u32 %s236, 1
        %s3594 = smul.addr %s3593, 256
        %s3595 = scalar_lea.vmem [#allocation7], %s3594
        // Predicated region
        $region73: #{res_block_generator.1} parent=55 // pred_check
          %p3596 = pneg %p246
        $region74: #{res_block_generator.1} parent=55 // pred_check_branch
          %3598 = sbr.rel (%p3596) target = $region76
        $region75: #{res_block_generator.1} parent=55 // pred_region
          %s3599 = smul.u32 4, %s25
          %s3600 = smul.addr %s3599, 2
          %s3601 = smul.addr %s24, 128
          %s3602 = sadd.s32 %s3600, %s3601
          %s3603 = smul.addr %s3602, 8
          %s3604 = scalar_lea.vmem %s9, %s3603
          // Predicated region
          $region77: #{res_block_generator.1} parent=75 // pred_check
            _
          $region78: #{res_block_generator.1} parent=75 // pred_check_branch
            %3606 = sbr.rel (0) target = $region80
          $region79: #{res_block_generator.1} parent=75 // pred_region
            // Predicated region
            $region81: #{res_block_generator.1} parent=79 // pred_check
              _
            $region82: #{res_block_generator.1} parent=79 // pred_check_branch
              %3608 = sbr.rel (0) target = $region84
            $region83: #{res_block_generator.1} parent=79 // pred_region
              // Predicated region
              $region96: #{res_block_generator.1} parent=83 // pred_check
                _
              $region97: #{res_block_generator.1} parent=83 // pred_check_branch
                %3685 = sbr.rel (0) target = $region99
              $region98: #{res_block_generator.1} parent=83 // pred_region
                loop: start=0, step=1, limit=1
                $region100: #{res_block_generator.1} parent=98 // loop_pre_header
                  _
                $region101: #{res_block_generator.1} parent=98 // loop_header
                  %s3687 = sphi 0, %s3691
                  %p3688 = scmp.ge.s32.totalorder %s3687, 1
                  %s3692 = sphi %s3595, %s3595
                  %s3693 = sphi %s3604, %s3604
                $region102: #{res_block_generator.1} parent=98 // loop_header_branch
                  %3690 = sbr.rel (%p3688) target = $region106
                $region103: #{res_block_generator.1} parent=98 // loop_body
                  %v3694 = vld [vmem:[%s3692] sm:$0xff]
                  %3695 = vst [vmem:[%s3693] sm:$0xff] %v3694
                  %v3696 = vld [vmem:[%s3692 + $0x8] sm:$0xff]
                  %3697 = vst [vmem:[%s3693 + $0x8] sm:$0xff] %v3696
                  %v3698 = vld [vmem:[%s3692 + $0x10] sm:$0xff]
                  %3699 = vst [vmem:[%s3693 + $0x10] sm:$0xff] %v3698
                  %v3700 = vld [vmem:[%s3692 + $0x18] sm:$0xff]
                  %3701 = vst [vmem:[%s3693 + $0x18] sm:$0xff] %v3700
                  %v3702 = vld [vmem:[%s3692 + $0x20] sm:$0xff]
                  %3703 = vst [vmem:[%s3693 + $0x20] sm:$0xff] %v3702
                  %v3704 = vld [vmem:[%s3692 + $0x28] sm:$0xff]
                  %3705 = vst [vmem:[%s3693 + $0x28] sm:$0xff] %v3704
                  %v3706 = vld [vmem:[%s3692 + $0x30] sm:$0xff]
                  %3707 = vst [vmem:[%s3693 + $0x30] sm:$0xff] %v3706
                  %v3708 = vld [vmem:[%s3692 + $0x38] sm:$0xff]
                  %3709 = vst [vmem:[%s3693 + $0x38] sm:$0xff] %v3708
                  %v3710 = vld [vmem:[%s3692 + $0x40] sm:$0xff]
                  %3711 = vst [vmem:[%s3693 + $0x100] sm:$0xff] %v3710
                  %v3712 = vld [vmem:[%s3692 + $0x48] sm:$0xff]
                  %3713 = vst [vmem:[%s3693 + $0x108] sm:$0xff] %v3712
                  %v3714 = vld [vmem:[%s3692 + $0x50] sm:$0xff]
                  %3715 = vst [vmem:[%s3693 + $0x110] sm:$0xff] %v3714
                  %v3716 = vld [vmem:[%s3692 + $0x58] sm:$0xff]
                  %3717 = vst [vmem:[%s3693 + $0x118] sm:$0xff] %v3716
                  %v3718 = vld [vmem:[%s3692 + $0x60] sm:$0xff]
                  %3719 = vst [vmem:[%s3693 + $0x120] sm:$0xff] %v3718
                  %v3720 = vld [vmem:[%s3692 + $0x68] sm:$0xff]
                  %3721 = vst [vmem:[%s3693 + $0x128] sm:$0xff] %v3720
                  %v3722 = vld [vmem:[%s3692 + $0x70] sm:$0xff]
                  %3723 = vst [vmem:[%s3693 + $0x130] sm:$0xff] %v3722
                  %v3724 = vld [vmem:[%s3692 + $0x78] sm:$0xff]
                  %3725 = vst [vmem:[%s3693 + $0x138] sm:$0xff] %v3724
                  %v3726 = vld [vmem:[%s3692 + $0x80] sm:$0xff]
                  %3727 = vst [vmem:[%s3693 + $0x200] sm:$0xff] %v3726
                  %v3728 = vld [vmem:[%s3692 + $0x88] sm:$0xff]
                  %3729 = vst [vmem:[%s3693 + $0x208] sm:$0xff] %v3728
                  %v3730 = vld [vmem:[%s3692 + $0x90] sm:$0xff]
                  %3731 = vst [vmem:[%s3693 + $0x210] sm:$0xff] %v3730
                  %v3732 = vld [vmem:[%s3692 + $0x98] sm:$0xff]
                  %3733 = vst [vmem:[%s3693 + $0x218] sm:$0xff] %v3732
                  %v3734 = vld [vmem:[%s3692 + $0xa0] sm:$0xff]
                  %3735 = vst [vmem:[%s3693 + $0x220] sm:$0xff] %v3734
                  %v3736 = vld [vmem:[%s3692 + $0xa8] sm:$0xff]
                  %3737 = vst [vmem:[%s3693 + $0x228] sm:$0xff] %v3736
                  %v3738 = vld [vmem:[%s3692 + $0xb0] sm:$0xff]
                  %3739 = vst [vmem:[%s3693 + $0x230] sm:$0xff] %v3738
                  %v3740 = vld [vmem:[%s3692 + $0xb8] sm:$0xff]
                  %3741 = vst [vmem:[%s3693 + $0x238] sm:$0xff] %v3740
                  %v3742 = vld [vmem:[%s3692 + $0xc0] sm:$0xff]
                  %3743 = vst [vmem:[%s3693 + $0x300] sm:$0xff] %v3742
                  %v3744 = vld [vmem:[%s3692 + $0xc8] sm:$0xff]
                  %3745 = vst [vmem:[%s3693 + $0x308] sm:$0xff] %v3744
                  %v3746 = vld [vmem:[%s3692 + $0xd0] sm:$0xff]
                  %3747 = vst [vmem:[%s3693 + $0x310] sm:$0xff] %v3746
                  %v3748 = vld [vmem:[%s3692 + $0xd8] sm:$0xff]
                  %3749 = vst [vmem:[%s3693 + $0x318] sm:$0xff] %v3748
                  %v3750 = vld [vmem:[%s3692 + $0xe0] sm:$0xff]
                  %3751 = vst [vmem:[%s3693 + $0x320] sm:$0xff] %v3750
                  %v3752 = vld [vmem:[%s3692 + $0xe8] sm:$0xff]
                  %3753 = vst [vmem:[%s3693 + $0x328] sm:$0xff] %v3752
                  %v3754 = vld [vmem:[%s3692 + $0xf0] sm:$0xff]
                  %3755 = vst [vmem:[%s3693 + $0x330] sm:$0xff] %v3754
                  %v3756 = vld [vmem:[%s3692 + $0xf8] sm:$0xff]
                  %3757 = vst [vmem:[%s3693 + $0x338] sm:$0xff] %v3756
                $region104: #{res_block_generator.1} parent=98 // loop_footer
                  %s3691 = sadd.s32 1, %s3687
                $region105: #{res_block_generator.1} parent=98 // loop_footer_branch
                  %3686 = sbr.rel target = $region101
                $region106: #{res_block_generator.1} parent=98 // loop_exit
                  _
              $region99: #{res_block_generator.1} parent=83 // pred_fallthru
                _
              // Predicated region
              $region107: #{res_block_generator.1} parent=83 // pred_check
                _
              $region108: #{res_block_generator.1} parent=83 // pred_check_branch
                %3759 = sbr.rel target = $region110
              $region109: #{res_block_generator.1} parent=83 // pred_region
                _
              $region110: #{res_block_generator.1} parent=83 // pred_fallthru
                _
            $region84: #{res_block_generator.1} parent=79 // pred_fallthru
              _
            // Predicated region
            $region85: #{res_block_generator.1} parent=79 // pred_check
              _
            $region86: #{res_block_generator.1} parent=79 // pred_check_branch
              %3610 = sbr.rel target = $region88
            $region87: #{res_block_generator.1} parent=79 // pred_region
              loop: start=0, step=1, limit=1
              $region89: #{res_block_generator.1} parent=87 // loop_pre_header
                _
              $region90: #{res_block_generator.1} parent=87 // loop_header
                %s3613 = sphi 0, %s3617
                %p3614 = scmp.ge.s32.totalorder %s3613, 1
                %s3618 = sphi %s3595, %s3595
                %s3619 = sphi %s3604, %s3604
              $region91: #{res_block_generator.1} parent=87 // loop_header_branch
                %3616 = sbr.rel (%p3614) target = $region95
              $region92: #{res_block_generator.1} parent=87 // loop_body
                %v3620 = vld [vmem:[%s3618] sm:$0xff]
                %3621 = vst [vmem:[%s3619] sm:$0xff] %v3620
                %v3622 = vld [vmem:[%s3618 + $0x8] sm:$0xff]
                %3623 = vst [vmem:[%s3619 + $0x8] sm:$0xff] %v3622
                %v3624 = vld [vmem:[%s3618 + $0x10] sm:$0xff]
                %3625 = vst [vmem:[%s3619 + $0x10] sm:$0xff] %v3624
                %v3626 = vld [vmem:[%s3618 + $0x18] sm:$0xff]
                %3627 = vst [vmem:[%s3619 + $0x18] sm:$0xff] %v3626
                %v3628 = vld [vmem:[%s3618 + $0x20] sm:$0xff]
                %3629 = vst [vmem:[%s3619 + $0x20] sm:$0xff] %v3628
                %v3630 = vld [vmem:[%s3618 + $0x28] sm:$0xff]
                %3631 = vst [vmem:[%s3619 + $0x28] sm:$0xff] %v3630
                %v3632 = vld [vmem:[%s3618 + $0x30] sm:$0xff]
                %3633 = vst [vmem:[%s3619 + $0x30] sm:$0xff] %v3632
                %v3634 = vld [vmem:[%s3618 + $0x38] sm:$0xff]
                %3635 = vst [vmem:[%s3619 + $0x38] sm:$0xff] %v3634
                %v3636 = vld [vmem:[%s3618 + $0x40] sm:$0xff]
                %3637 = vst [vmem:[%s3619 + $0x100] sm:$0xff] %v3636
                %v3638 = vld [vmem:[%s3618 + $0x48] sm:$0xff]
                %3639 = vst [vmem:[%s3619 + $0x108] sm:$0xff] %v3638
                %v3640 = vld [vmem:[%s3618 + $0x50] sm:$0xff]
                %3641 = vst [vmem:[%s3619 + $0x110] sm:$0xff] %v3640
                %v3642 = vld [vmem:[%s3618 + $0x58] sm:$0xff]
                %3643 = vst [vmem:[%s3619 + $0x118] sm:$0xff] %v3642
                %v3644 = vld [vmem:[%s3618 + $0x60] sm:$0xff]
                %3645 = vst [vmem:[%s3619 + $0x120] sm:$0xff] %v3644
                %v3646 = vld [vmem:[%s3618 + $0x68] sm:$0xff]
                %3647 = vst [vmem:[%s3619 + $0x128] sm:$0xff] %v3646
                %v3648 = vld [vmem:[%s3618 + $0x70] sm:$0xff]
                %3649 = vst [vmem:[%s3619 + $0x130] sm:$0xff] %v3648
                %v3650 = vld [vmem:[%s3618 + $0x78] sm:$0xff]
                %3651 = vst [vmem:[%s3619 + $0x138] sm:$0xff] %v3650
                %v3652 = vld [vmem:[%s3618 + $0x80] sm:$0xff]
                %3653 = vst [vmem:[%s3619 + $0x200] sm:$0xff] %v3652
                %v3654 = vld [vmem:[%s3618 + $0x88] sm:$0xff]
                %3655 = vst [vmem:[%s3619 + $0x208] sm:$0xff] %v3654
                %v3656 = vld [vmem:[%s3618 + $0x90] sm:$0xff]
                %3657 = vst [vmem:[%s3619 + $0x210] sm:$0xff] %v3656
                %v3658 = vld [vmem:[%s3618 + $0x98] sm:$0xff]
                %3659 = vst [vmem:[%s3619 + $0x218] sm:$0xff] %v3658
                %v3660 = vld [vmem:[%s3618 + $0xa0] sm:$0xff]
                %3661 = vst [vmem:[%s3619 + $0x220] sm:$0xff] %v3660
                %v3662 = vld [vmem:[%s3618 + $0xa8] sm:$0xff]
                %3663 = vst [vmem:[%s3619 + $0x228] sm:$0xff] %v3662
                %v3664 = vld [vmem:[%s3618 + $0xb0] sm:$0xff]
                %3665 = vst [vmem:[%s3619 + $0x230] sm:$0xff] %v3664
                %v3666 = vld [vmem:[%s3618 + $0xb8] sm:$0xff]
                %3667 = vst [vmem:[%s3619 + $0x238] sm:$0xff] %v3666
                %v3668 = vld [vmem:[%s3618 + $0xc0] sm:$0xff]
                %3669 = vst [vmem:[%s3619 + $0x300] sm:$0xff] %v3668
                %v3670 = vld [vmem:[%s3618 + $0xc8] sm:$0xff]
                %3671 = vst [vmem:[%s3619 + $0x308] sm:$0xff] %v3670
                %v3672 = vld [vmem:[%s3618 + $0xd0] sm:$0xff]
                %3673 = vst [vmem:[%s3619 + $0x310] sm:$0xff] %v3672
                %v3674 = vld [vmem:[%s3618 + $0xd8] sm:$0xff]
                %3675 = vst [vmem:[%s3619 + $0x318] sm:$0xff] %v3674
                %v3676 = vld [vmem:[%s3618 + $0xe0] sm:$0xff]
                %3677 = vst [vmem:[%s3619 + $0x320] sm:$0xff] %v3676
                %v3678 = vld [vmem:[%s3618 + $0xe8] sm:$0xff]
                %3679 = vst [vmem:[%s3619 + $0x328] sm:$0xff] %v3678
                %v3680 = vld [vmem:[%s3618 + $0xf0] sm:$0xff]
                %3681 = vst [vmem:[%s3619 + $0x330] sm:$0xff] %v3680
                %v3682 = vld [vmem:[%s3618 + $0xf8] sm:$0xff]
                %3683 = vst [vmem:[%s3619 + $0x338] sm:$0xff] %v3682
              $region93: #{res_block_generator.1} parent=87 // loop_footer
                %s3617 = sadd.s32 1, %s3613
              $region94: #{res_block_generator.1} parent=87 // loop_footer_branch
                %3612 = sbr.rel target = $region90
              $region95: #{res_block_generator.1} parent=87 // loop_exit
                _
            $region88: #{res_block_generator.1} parent=79 // pred_fallthru
              _
          $region80: #{res_block_generator.1} parent=75 // pred_fallthru
            _
          %3760 = vnop
        $region76: #{res_block_generator.1} parent=55 // pred_fallthru
          _
      $region56: #{res_block_generator.1} parent=5 // pred_fallthru
        _
      %p3761 = scmp.le.s32.totalorder 2, %s15
      // Predicated region
      $region111: #{res_block_generator.1} parent=5 // pred_check
        %p3762 = pneg %p3761
      $region112: #{res_block_generator.1} parent=5 // pred_check_branch
        %3764 = sbr.rel (%p3762) target = $region114
      $region113: #{res_block_generator.1} parent=5 // pred_region
        %s3765 = ssub.s32 %s15, 2
        // Predicated region
        $region115: #{res_block_generator.1} parent=113 // pred_check
          %p3766 = pneg %p252
        $region116: #{res_block_generator.1} parent=113 // pred_check_branch
          %3768 = sbr.rel (%p3766) target = $region118
        $region117: #{res_block_generator.1} parent=113 // pred_region
          %s3769 = sand.u32 %s237, 1
          %s3770 = sand.u32 %s237, 1
          %s3771 = smul.addr %s3770, 256
          %s3772 = scalar_lea.vmem [#allocation7], %s3771
        $region118: #{res_block_generator.1} parent=113 // pred_fallthru
          _
      $region114: #{res_block_generator.1} parent=5 // pred_fallthru
        _
    $region6: #{res_block_generator.1} parent=1 // loop_footer
      %s19 = sadd.s32 1, %s15
    $region7: #{res_block_generator.1} parent=1 // loop_footer_branch
      %14 = sbr.rel target = $region3
    $region8: #{res_block_generator.1} parent=1 // loop_exit
      _

</llo_original>
